<compile_context>
chip_gen: v6e
topology: v6e:2x2x1
jax: 0.10.0
libtpu: 0.0.40
codegen_flags: <defaults>
</compile_context>

<pallas_src>
import functools

import jax
import jax.numpy as jnp
import numpy as np
from jax import lax
from jax.experimental import pallas as pl
from jax.experimental.pallas import tpu as pltpu


def _round_up(x, m):
    return (x + m - 1) // m * m


def _conv_bn_relu_kernel(x_hbm, w_hbm, sb_hbm, o_ref,
                         x_vmem, w_vmem, sb_vmem, lhs_vmem, sem,
                         *, tile_m, slab_rows, cin_pad, tap_offsets, apply_relu):
    """Grid = (num_m_tiles,)  ["arbitrary": sequential, cross-tile slab prefetch].

    x_hbm   : (R_total, cin_pad)       bf16  raw HBM ref (flattened padded NHWC input).
    w_hbm   : (K_pack, cout_pad)       bf16  tap-major packed conv weights.
    sb_hbm  : (2, cout_pad)            f32   row 0 = per-channel scale, row 1 = bias.
    o_ref   : (tile_m, cout_pad)       bf16  output tile (BlockSpec pipelined).
    x_vmem  : (2, slab_rows, cin_pad)  bf16  double-buffered halo slabs.
    w_vmem  : (K_pack, cout_pad)       bf16  resident packed weights (loaded once).
    sb_vmem : (2, cout_pad)            f32   resident scale / bias (loaded once).
    lhs_vmem: (tile_m, K_pack)         bf16  tap-packed LHS for the single MXU dot.
    sem     : (4,) DMA semaphores: 0/1 = x slab slots, 2 = weights, 3 = scale/bias.
    """
    i = pl.program_id(0)
    n_tiles = pl.num_programs(0)

    def slab_copy(tile_idx, slot):
        # Source slice depends only on the tile index, so the descriptor built at
        # wait() time is identical to the one built at start() time (review fix).
        return pltpu.make_async_copy(
            x_hbm.at[pl.ds(tile_idx * tile_m, slab_rows), :],
            x_vmem.at[slot],
            sem.at[slot])

    # First grid step: load the packed weights + scale/bias once and prime the
    # slab pipeline.  Requires sequential ("arbitrary") traversal of the grid.
    @pl.when(i == 0)
    def _():
        w_cp = pltpu.make_async_copy(w_hbm, w_vmem, sem.at[2])
        sb_cp = pltpu.make_async_copy(sb_hbm, sb_vmem, sem.at[3])
        w_cp.start()
        sb_cp.start()
        slab_copy(0, 0).start()
        w_cp.wait()
        sb_cp.wait()

    slot = i % 2
    # Wait for this tile's slab (started either just above at i==0 or as the
    # previous tile's prefetch).
    slab_copy(i, slot).wait()

    # Prefetch the next tile's slab into the other buffer while we compute this one.
    @pl.when(i + 1 < n_tiles)
    def _():
        slab_copy(i + 1, 1 - slot).start()

    # Pack the KH*KW taps into the MXU K dimension: copy statically shifted slices
    # of the halo slab into K-contiguous, lane-aligned column blocks of the LHS,
    # then issue ONE matmul (the MXU performs the cross-tap reduction internally).
    slab = x_vmem.at[slot]
    for t, off in enumerate(tap_offsets):          # static unroll, KH*KW is small
        lhs_vmem[:, t * cin_pad:(t + 1) * cin_pad] = slab[pl.ds(off, tile_m), :]

    y = jnp.dot(lhs_vmem[...], w_vmem[...], preferred_element_type=jnp.float32)
    # f32 epilogue: per-channel BN scale and (conv bias folded with BN shift), ReLU.
    y = y * sb_vmem[0:1, :] + sb_vmem[1:2, :]
    if apply_relu:
        y = jnp.maximum(y, 0.0)
    o_ref[...] = y.astype(o_ref.dtype)             # lane-dense bf16 store


def basic_conv_forward(x, params, *, stride=1, padding=0, dilation=1, groups=1,
                       is_relu=True, is_bn=True, is_bias=True,
                       tile_m=None, out_dtype=jnp.float32):
    """Fused Conv2d + BN(eval) + ReLU.  x is NCHW; returns NCHW in `out_dtype`."""
    w = params["conv_w"]                                   # (C_out, C_in, KH, KW)
    N, C_in, H, W = x.shape
    C_out, C_in_w, KH, KW = w.shape
    assert groups == 1 and C_in == C_in_w, "groups != 1 not supported"  # TODO(synk)

    Hp, Wp = H + 2 * padding, W + 2 * padding
    H_out = (H + 2 * padding - dilation * (KH - 1) - 1) // stride + 1
    W_out = (W + 2 * padding - dilation * (KW - 1) - 1) // stride + 1

    num_taps = KH * KW
    row_step = dilation * Wp                               # flat-row offset per kh
    col_step = dilation                                    # flat-row offset per kw
    tap_offsets = tuple(kh * row_step + kw * col_step
                        for kh in range(KH) for kw in range(KW))
    halo = _round_up(tap_offsets[-1], 8)

    # Lane-dense padding of both channel axes (MXU fill + unmasked stores).
    C_in_pad = _round_up(max(C_in, 128), 128)
    C_out_pad = _round_up(max(C_out, 128), 128)
    K_pack = num_taps * C_in_pad

    # One output row per *padded* spatial position (stride-1 overcompute).  Rows near
    # image edges read zero padding / neighbouring rows in the flattened layout; they
    # are discarded by the wrapper slice below, so results stay correct.
    M_over = N * Hp * Wp

    # ---- tile_m selection under the per-core VMEM budget ----
    if tile_m is None:
        tile_m = 1024                                      # v5e/v6e-friendly default
    tile_m = min(tile_m, _round_up(M_over, 128))
    tile_m = max(128, tile_m // 128 * 128)

    try:
        vmem_cap = int(pltpu.get_tpu_info().vmem_capacity_bytes)
    except Exception:
        vmem_cap = 64 * 2 ** 20                            # v7x per-core floor

    def vmem_need(tm):
        slab = tm + halo
        return (2 * slab * C_in_pad * 2                    # double-buffered input slabs
                + K_pack * C_out_pad * 2                   # resident packed weights (x1)
                + 2 * C_out_pad * 4                        # scale / bias
                + tm * K_pack * 2                          # tap-packed LHS
                + 2 * tm * C_out_pad * 2                   # double-buffered bf16 output
                + tm * C_out_pad * 4)                      # f32 dot result before cast

    while tile_m > 128 and vmem_need(tile_m) > 0.45 * vmem_cap:
        tile_m = max(128, (tile_m // 2) // 128 * 128)

    num_m_tiles = pl.cdiv(M_over, tile_m)
    M_pad = num_m_tiles * tile_m
    slab_rows = tile_m + halo
    R_total = M_pad + halo                                 # rows the slab DMAs may touch

    # ---- NHWC, spatially padded, channel-padded, flattened, bf16 (no im2col) ----
    xp = jnp.transpose(x, (0, 2, 3, 1))                    # NHWC
    xp = jnp.pad(xp, ((0, 0), (padding, padding), (padding, padding),
                      (0, C_in_pad - C_in)))
    x_flat = xp.reshape(N * Hp * Wp, C_in_pad)
    x_flat = jnp.pad(x_flat, ((0, R_total - M_over), (0, 0))).astype(jnp.bfloat16)

    # ---- BN(eval) folded into per-channel scale / bias (applied in f32 epilogue) ----
    conv_b = (params["conv_b"].astype(jnp.float32) if is_bias
              else jnp.zeros((C_out,), jnp.float32))
    if is_bn:
        eps = 1e-5
        inv_std = lax.rsqrt(params["bn_var"].astype(jnp.float32) + eps)
        scale = params["bn_gamma"].astype(jnp.float32) * inv_std
        bias = (conv_b - params["bn_mean"].astype(jnp.float32)) * scale \
            + params["bn_beta"].astype(jnp.float32)
    else:
        scale = jnp.ones((C_out,), jnp.float32)
        bias = conv_b

    # (C_out, C_in, KH, KW) -> tap-major packed K: row (kh*KW + kw)*C_in_pad + c.
    wm = jnp.transpose(w.astype(jnp.float32), (2, 3, 1, 0))          # (KH,KW,C_in,C_out)
    wm = jnp.pad(wm, ((0, 0), (0, 0), (0, C_in_pad - C_in), (0, C_out_pad - C_out)))
    wm = wm.reshape(K_pack, C_out_pad).astype(jnp.bfloat16)
    scale_bias = jnp.stack([jnp.pad(scale, (0, C_out_pad - C_out)),
                            jnp.pad(bias, (0, C_out_pad - C_out))]).astype(jnp.float32)

    need = vmem_need(tile_m)
    vmem_limit = int(min(0.9 * vmem_cap,
                         max(32 * 2 ** 20, 2 * need, need + (8 << 20))))

    cost = pl.CostEstimate(
        flops=2 * M_pad * K_pack * C_out_pad,
        transcendentals=0,
        bytes_accessed=(num_m_tiles * slab_rows * C_in_pad * 2      # input slabs
                        + K_pack * C_out_pad * 2                    # weights (once)
                        + M_pad * C_out_pad * 2))                   # bf16 output

    kernel = functools.partial(
        _conv_bn_relu_kernel,
        tile_m=tile_m, slab_rows=slab_rows, cin_pad=C_in_pad,
        tap_offsets=tap_offsets, apply_relu=is_relu)

    out = pl.pallas_call(
        kernel,
        out_shape=jax.ShapeDtypeStruct((M_pad, C_out_pad), jnp.bfloat16),
        grid_spec=pltpu.PrefetchScalarGridSpec(
            num_scalar_prefetch=0,
            grid=(num_m_tiles,),
            in_specs=[
                pl.BlockSpec(memory_space=pl.ANY),   # x_flat (HBM, manual slab DMA)
                pl.BlockSpec(memory_space=pl.ANY),   # packed weights (loaded once)
                pl.BlockSpec(memory_space=pl.ANY),   # scale / bias   (loaded once)
            ],
            out_specs=pl.BlockSpec((tile_m, C_out_pad), lambda i: (i, 0)),
            scratch_shapes=[
                pltpu.VMEM((2, slab_rows, C_in_pad), jnp.bfloat16),   # x double buffer
                pltpu.VMEM((K_pack, C_out_pad), jnp.bfloat16),        # resident weights
                pltpu.VMEM((2, C_out_pad), jnp.float32),              # scale / bias
                pltpu.VMEM((tile_m, K_pack), jnp.bfloat16),           # tap-packed LHS
                pltpu.SemaphoreType.DMA((4,)),
            ]),
        compiler_params=pltpu.CompilerParams(
            # "arbitrary": cross-tile prefetch and load-once weights need sequential
            # traversal.  TODO(synk): split the M range one level up for v7x megacore.
            dimension_semantics=("arbitrary",),
            vmem_limit_bytes=vmem_limit),
        cost_estimate=cost,
    )(x_flat, wm, scale_bias)

    # Drop padded rows, keep stride-s positions and the valid window, back to NCHW.
    y = out[:M_over].reshape(N, Hp, Wp, C_out_pad)
    y = y[:, ::stride, ::stride, :][:, :H_out, :W_out, :C_out]
    return jnp.transpose(y, (0, 3, 1, 2)).astype(out_dtype)


def _reference(x, params, *, stride, padding, dilation, is_relu, is_bn, is_bias):
    """Pure-JAX reference (lax conv + eval-mode BN + ReLU), all f32."""
    y = lax.conv_general_dilated(
        x, params["conv_w"],
        window_strides=(stride, stride),
        padding=((padding, padding), (padding, padding)),
        rhs_dilation=(dilation, dilation),
        dimension_numbers=("NCHW", "OIHW", "NCHW"))
    if is_bias:
        y = y + params["conv_b"][None, :, None, None]
    if is_bn:
        eps = 1e-5
        inv_std = 1.0 / jnp.sqrt(params["bn_var"] + eps)
        y = (y - params["bn_mean"][None, :, None, None]) * \
            (params["bn_gamma"] * inv_std)[None, :, None, None] + \
            params["bn_beta"][None, :, None, None]
    if is_relu:
        y = jnp.maximum(y, 0.0)
    return y


if __name__ == "__main__":
    # basic_conv(in_planes=4, out_planes=8, kernel_size=3, stride=1, padding=1)
    N, C_in, H, W = 2, 4, 16, 16
    C_out, KH, KW = 8, 3, 3
    stride, padding, dilation = 1, 1, 1

    key = jax.random.PRNGKey(0)
    k = jax.random.split(key, 7)
    x = jax.random.normal(k[0], (N, C_in, H, W), dtype=jnp.float32)
    params = {
        "conv_w": 0.1 * jax.random.normal(k[1], (C_out, C_in, KH, KW), jnp.float32),
        "conv_b": 0.1 * jax.random.normal(k[2], (C_out,), jnp.float32),
        "bn_gamma": 1.0 + 0.1 * jax.random.normal(k[3], (C_out,), jnp.float32),
        "bn_beta": 0.1 * jax.random.normal(k[4], (C_out,), jnp.float32),
        "bn_mean": 0.1 * jax.random.normal(k[5], (C_out,), jnp.float32),
        "bn_var": 1.0 + jnp.abs(0.1 * jax.random.normal(k[6], (C_out,), jnp.float32)),
    }

    # tile_m=256 -> 3 M tiles, which exercises the cross-tile slab prefetch path.
    out = basic_conv_forward(x, params, stride=stride, padding=padding,
                             dilation=dilation, is_relu=True, is_bn=True,
                             is_bias=True, tile_m=256)
    out = jax.block_until_ready(out)

    ref = _reference(x, params, stride=stride, padding=padding, dilation=dilation,
                     is_relu=True, is_bn=True, is_bias=True)
    # bf16 streams + bf16 output with f32 accumulation/epilogue -> loose-ish tolerance.
    np.testing.assert_allclose(np.asarray(out), np.asarray(ref), atol=3e-2, rtol=3e-2)

    print("KERNEL_OK")
</pallas_src>

<mosaic_0001>
module attributes {stable_mosaic.version = 11 : i64} {
  func.func @_conv_bn_relu_kernel(%arg0: i32, %arg1: memref<808x128xbf16, #tpu.memory_space<any>>, %arg2: memref<1152x128xbf16, #tpu.memory_space<any>>, %arg3: memref<2x128xf32, #tpu.memory_space<any>>, %arg4: memref<256x128xbf16, #tpu.memory_space<vmem>>, %arg5: memref<2x296x128xbf16, #tpu.memory_space<vmem>>, %arg6: memref<1152x128xbf16, #tpu.memory_space<vmem>>, %arg7: memref<2x128xf32, #tpu.memory_space<vmem>>, %arg8: memref<256x1152xbf16, #tpu.memory_space<vmem>>, %arg9: memref<4x!tpu.dma_semaphore, #tpu.memory_space<semaphore_mem>>) attributes {dimension_semantics = [#tpu.dimension_semantics<arbitrary>], iteration_bounds = array<i64: 3>, scalar_prefetch = 0 : i64, scratch_operands = 5 : i64, tpu.core_type = #tpu.core_type<tc>, window_params = [{}, {}, {}, {transform_indices = @transform_3, window_bounds = array<i64: 256, 128>}]} {
    %c0_i32 = arith.constant 0 : i32
    %0 = arith.cmpi eq, %arg0, %c0_i32 : i32
    %1 = arith.extui %0 : i1 to i32
    %c0_i32_0 = arith.constant 0 : i32
    %2 = arith.cmpi ne, %1, %c0_i32_0 : i32
    scf.if %2 {
      %c2_i32_58 = arith.constant 2 : i32
      %72 = tpu.memref_slice %arg9[%c2_i32_58] : memref<4x!tpu.dma_semaphore, #tpu.memory_space<semaphore_mem>> -> memref<1x!tpu.dma_semaphore, #tpu.memory_space<semaphore_mem>>
      %73 = tpu.memref_squeeze %72 : memref<1x!tpu.dma_semaphore, #tpu.memory_space<semaphore_mem>> -> memref<!tpu.dma_semaphore, #tpu.memory_space<semaphore_mem>>
      tpu.enqueue_dma source(%arg2 : memref<1152x128xbf16, #tpu.memory_space<any>>) target(%arg6 : memref<1152x128xbf16, #tpu.memory_space<vmem>>) target_semaphore(%73 : memref<!tpu.dma_semaphore, #tpu.memory_space<semaphore_mem>>)
      %c3_i32_59 = arith.constant 3 : i32
      %74 = tpu.memref_slice %arg9[%c3_i32_59] : memref<4x!tpu.dma_semaphore, #tpu.memory_space<semaphore_mem>> -> memref<1x!tpu.dma_semaphore, #tpu.memory_space<semaphore_mem>>
      %75 = tpu.memref_squeeze %74 : memref<1x!tpu.dma_semaphore, #tpu.memory_space<semaphore_mem>> -> memref<!tpu.dma_semaphore, #tpu.memory_space<semaphore_mem>>
      tpu.enqueue_dma source(%arg3 : memref<2x128xf32, #tpu.memory_space<any>>) target(%arg7 : memref<2x128xf32, #tpu.memory_space<vmem>>) target_semaphore(%75 : memref<!tpu.dma_semaphore, #tpu.memory_space<semaphore_mem>>)
      %c0_i32_60 = arith.constant 0 : i32
      %c0_i32_61 = arith.constant 0 : i32
      %c0_i32_62 = arith.constant 0 : i32
      %c0_i32_63 = arith.constant 0 : i32
      %76 = tpu.memref_slice %arg1[%c0_i32_62, %c0_i32_63] : memref<808x128xbf16, #tpu.memory_space<any>> -> memref<296x128xbf16, #tpu.memory_space<any>>
      %c0_i32_64 = arith.constant 0 : i32
      %c0_i32_65 = arith.constant 0 : i32
      %77 = tpu.memref_slice %arg5[%c0_i32_60, %c0_i32_64, %c0_i32_65] : memref<2x296x128xbf16, #tpu.memory_space<vmem>> -> memref<1x296x128xbf16, #tpu.memory_space<vmem>>
      %78 = tpu.memref_squeeze %77 : memref<1x296x128xbf16, #tpu.memory_space<vmem>> -> memref<296x128xbf16, #tpu.memory_space<vmem>>
      %79 = tpu.memref_slice %arg9[%c0_i32_61] : memref<4x!tpu.dma_semaphore, #tpu.memory_space<semaphore_mem>> -> memref<1x!tpu.dma_semaphore, #tpu.memory_space<semaphore_mem>>
      %80 = tpu.memref_squeeze %79 : memref<1x!tpu.dma_semaphore, #tpu.memory_space<semaphore_mem>> -> memref<!tpu.dma_semaphore, #tpu.memory_space<semaphore_mem>>
      tpu.enqueue_dma source(%76 : memref<296x128xbf16, #tpu.memory_space<any>>) target(%78 : memref<296x128xbf16, #tpu.memory_space<vmem>>) target_semaphore(%80 : memref<!tpu.dma_semaphore, #tpu.memory_space<semaphore_mem>>)
      %c2_i32_66 = arith.constant 2 : i32
      %81 = tpu.memref_slice %arg9[%c2_i32_66] : memref<4x!tpu.dma_semaphore, #tpu.memory_space<semaphore_mem>> -> memref<1x!tpu.dma_semaphore, #tpu.memory_space<semaphore_mem>>
      %82 = tpu.memref_squeeze %81 : memref<1x!tpu.dma_semaphore, #tpu.memory_space<semaphore_mem>> -> memref<!tpu.dma_semaphore, #tpu.memory_space<semaphore_mem>>
      tpu.wait_dma2 semaphore(%82 : memref<!tpu.dma_semaphore, #tpu.memory_space<semaphore_mem>>) src(%arg2 : memref<1152x128xbf16, #tpu.memory_space<any>>) dst(%arg6 : memref<1152x128xbf16, #tpu.memory_space<vmem>>)
      %c3_i32_67 = arith.constant 3 : i32
      %83 = tpu.memref_slice %arg9[%c3_i32_67] : memref<4x!tpu.dma_semaphore, #tpu.memory_space<semaphore_mem>> -> memref<1x!tpu.dma_semaphore, #tpu.memory_space<semaphore_mem>>
      %84 = tpu.memref_squeeze %83 : memref<1x!tpu.dma_semaphore, #tpu.memory_space<semaphore_mem>> -> memref<!tpu.dma_semaphore, #tpu.memory_space<semaphore_mem>>
      tpu.wait_dma2 semaphore(%84 : memref<!tpu.dma_semaphore, #tpu.memory_space<semaphore_mem>>) src(%arg3 : memref<2x128xf32, #tpu.memory_space<any>>) dst(%arg7 : memref<2x128xf32, #tpu.memory_space<vmem>>)
    } else {
    }
    %c2_i32 = arith.constant 2 : i32
    %c0_i32_1 = arith.constant 0 : i32
    %3 = arith.cmpi eq, %c2_i32, %c0_i32_1 : i32
    %c1_i32 = arith.constant 1 : i32
    %4 = arith.select %3, %c1_i32, %c2_i32 : i32
    %5 = arith.remsi %arg0, %4 : i32
    %c0_i32_2 = arith.constant 0 : i32
    %6 = arith.cmpi ne, %5, %c0_i32_2 : i32
    %c0_i32_3 = arith.constant 0 : i32
    %7 = arith.cmpi slt, %5, %c0_i32_3 : i32
    %c0_i32_4 = arith.constant 0 : i32
    %8 = arith.cmpi slt, %4, %c0_i32_4 : i32
    %9 = arith.xori %7, %8 : i1
    %10 = arith.andi %9, %6 : i1
    %11 = arith.addi %5, %4 : i32
    %12 = arith.select %10, %11, %5 : i32
    %c256_i32 = arith.constant 256 : i32
    %13 = arith.muli %arg0, %c256_i32 : i32
    %c0_i32_5 = arith.constant 0 : i32
    %14 = tpu.memref_slice %arg1[%13, %c0_i32_5] : memref<808x128xbf16, #tpu.memory_space<any>> -> memref<296x128xbf16, #tpu.memory_space<any>>
    %c0_i32_6 = arith.constant 0 : i32
    %c0_i32_7 = arith.constant 0 : i32
    %15 = tpu.memref_slice %arg5[%12, %c0_i32_6, %c0_i32_7] : memref<2x296x128xbf16, #tpu.memory_space<vmem>> -> memref<1x296x128xbf16, #tpu.memory_space<vmem>>
    %16 = tpu.memref_squeeze %15 : memref<1x296x128xbf16, #tpu.memory_space<vmem>> -> memref<296x128xbf16, #tpu.memory_space<vmem>>
    %17 = tpu.memref_slice %arg9[%12] : memref<4x!tpu.dma_semaphore, #tpu.memory_space<semaphore_mem>> -> memref<1x!tpu.dma_semaphore, #tpu.memory_space<semaphore_mem>>
    %18 = tpu.memref_squeeze %17 : memref<1x!tpu.dma_semaphore, #tpu.memory_space<semaphore_mem>> -> memref<!tpu.dma_semaphore, #tpu.memory_space<semaphore_mem>>
    tpu.wait_dma2 semaphore(%18 : memref<!tpu.dma_semaphore, #tpu.memory_space<semaphore_mem>>) src(%14 : memref<296x128xbf16, #tpu.memory_space<any>>) dst(%16 : memref<296x128xbf16, #tpu.memory_space<vmem>>)
    %c1_i32_8 = arith.constant 1 : i32
    %19 = arith.addi %arg0, %c1_i32_8 : i32
    %c3_i32 = arith.constant 3 : i32
    %20 = arith.cmpi slt, %19, %c3_i32 : i32
    %21 = arith.extui %20 : i1 to i32
    %c0_i32_9 = arith.constant 0 : i32
    %22 = arith.cmpi ne, %21, %c0_i32_9 : i32
    scf.if %22 {
      %c1_i32_58 = arith.constant 1 : i32
      %72 = arith.addi %arg0, %c1_i32_58 : i32
      %c1_i32_59 = arith.constant 1 : i32
      %73 = arith.subi %c1_i32_59, %12 : i32
      %c256_i32_60 = arith.constant 256 : i32
      %74 = arith.muli %72, %c256_i32_60 : i32
      %c0_i32_61 = arith.constant 0 : i32
      %75 = tpu.memref_slice %arg1[%74, %c0_i32_61] : memref<808x128xbf16, #tpu.memory_space<any>> -> memref<296x128xbf16, #tpu.memory_space<any>>
      %c0_i32_62 = arith.constant 0 : i32
      %c0_i32_63 = arith.constant 0 : i32
      %76 = tpu.memref_slice %arg5[%73, %c0_i32_62, %c0_i32_63] : memref<2x296x128xbf16, #tpu.memory_space<vmem>> -> memref<1x296x128xbf16, #tpu.memory_space<vmem>>
      %77 = tpu.memref_squeeze %76 : memref<1x296x128xbf16, #tpu.memory_space<vmem>> -> memref<296x128xbf16, #tpu.memory_space<vmem>>
      %78 = tpu.memref_slice %arg9[%73] : memref<4x!tpu.dma_semaphore, #tpu.memory_space<semaphore_mem>> -> memref<1x!tpu.dma_semaphore, #tpu.memory_space<semaphore_mem>>
      %79 = tpu.memref_squeeze %78 : memref<1x!tpu.dma_semaphore, #tpu.memory_space<semaphore_mem>> -> memref<!tpu.dma_semaphore, #tpu.memory_space<semaphore_mem>>
      tpu.enqueue_dma source(%75 : memref<296x128xbf16, #tpu.memory_space<any>>) target(%77 : memref<296x128xbf16, #tpu.memory_space<vmem>>) target_semaphore(%79 : memref<!tpu.dma_semaphore, #tpu.memory_space<semaphore_mem>>)
    } else {
    }
    %c0_i32_10 = arith.constant 0 : i32
    %c0_i32_11 = arith.constant 0 : i32
    %23 = tpu.memref_slice %arg5[%12, %c0_i32_10, %c0_i32_11] : memref<2x296x128xbf16, #tpu.memory_space<vmem>> -> memref<1x296x128xbf16, #tpu.memory_space<vmem>>
    %24 = tpu.memref_squeeze %23 : memref<1x296x128xbf16, #tpu.memory_space<vmem>> -> memref<296x128xbf16, #tpu.memory_space<vmem>>
    %c0 = arith.constant 0 : index
    %c0_12 = arith.constant 0 : index
    %25 = vector.load %24[%c0, %c0_12] : memref<296x128xbf16, #tpu.memory_space<vmem>>, vector<256x128xbf16>
    %c0_13 = arith.constant 0 : index
    %c0_14 = arith.constant 0 : index
    %26 = vector.load %arg8[%c0_13, %c0_14] : memref<256x1152xbf16, #tpu.memory_space<vmem>>, vector<256x128xbf16>
    tpu.vector_store %arg8[%c0_13, %c0_14], %25 {strides = array<i32>} : memref<256x1152xbf16, #tpu.memory_space<vmem>>, vector<256x128xbf16>,
    %c0_i32_15 = arith.constant 0 : i32
    %c0_i32_16 = arith.constant 0 : i32
    %27 = tpu.memref_slice %arg5[%12, %c0_i32_15, %c0_i32_16] : memref<2x296x128xbf16, #tpu.memory_space<vmem>> -> memref<1x296x128xbf16, #tpu.memory_space<vmem>>
    %28 = tpu.memref_squeeze %27 : memref<1x296x128xbf16, #tpu.memory_space<vmem>> -> memref<296x128xbf16, #tpu.memory_space<vmem>>
    %c1 = arith.constant 1 : index
    %c0_17 = arith.constant 0 : index
    %29 = vector.load %28[%c1, %c0_17] : memref<296x128xbf16, #tpu.memory_space<vmem>>, vector<256x128xbf16>
    %c0_18 = arith.constant 0 : index
    %c128 = arith.constant 128 : index
    %30 = vector.load %arg8[%c0_18, %c128] : memref<256x1152xbf16, #tpu.memory_space<vmem>>, vector<256x128xbf16>
    tpu.vector_store %arg8[%c0_18, %c128], %29 {strides = array<i32>} : memref<256x1152xbf16, #tpu.memory_space<vmem>>, vector<256x128xbf16>,
    %c0_i32_19 = arith.constant 0 : i32
    %c0_i32_20 = arith.constant 0 : i32
    %31 = tpu.memref_slice %arg5[%12, %c0_i32_19, %c0_i32_20] : memref<2x296x128xbf16, #tpu.memory_space<vmem>> -> memref<1x296x128xbf16, #tpu.memory_space<vmem>>
    %32 = tpu.memref_squeeze %31 : memref<1x296x128xbf16, #tpu.memory_space<vmem>> -> memref<296x128xbf16, #tpu.memory_space<vmem>>
    %c2 = arith.constant 2 : index
    %c0_21 = arith.constant 0 : index
    %33 = vector.load %32[%c2, %c0_21] : memref<296x128xbf16, #tpu.memory_space<vmem>>, vector<256x128xbf16>
    %c0_22 = arith.constant 0 : index
    %c256 = arith.constant 256 : index
    %34 = vector.load %arg8[%c0_22, %c256] : memref<256x1152xbf16, #tpu.memory_space<vmem>>, vector<256x128xbf16>
    tpu.vector_store %arg8[%c0_22, %c256], %33 {strides = array<i32>} : memref<256x1152xbf16, #tpu.memory_space<vmem>>, vector<256x128xbf16>,
    %c0_i32_23 = arith.constant 0 : i32
    %c0_i32_24 = arith.constant 0 : i32
    %35 = tpu.memref_slice %arg5[%12, %c0_i32_23, %c0_i32_24] : memref<2x296x128xbf16, #tpu.memory_space<vmem>> -> memref<1x296x128xbf16, #tpu.memory_space<vmem>>
    %36 = tpu.memref_squeeze %35 : memref<1x296x128xbf16, #tpu.memory_space<vmem>> -> memref<296x128xbf16, #tpu.memory_space<vmem>>
    %c18 = arith.constant 18 : index
    %c0_25 = arith.constant 0 : index
    %37 = vector.load %36[%c18, %c0_25] : memref<296x128xbf16, #tpu.memory_space<vmem>>, vector<256x128xbf16>
    %c0_26 = arith.constant 0 : index
    %c384 = arith.constant 384 : index
    %38 = vector.load %arg8[%c0_26, %c384] : memref<256x1152xbf16, #tpu.memory_space<vmem>>, vector<256x128xbf16>
    tpu.vector_store %arg8[%c0_26, %c384], %37 {strides = array<i32>} : memref<256x1152xbf16, #tpu.memory_space<vmem>>, vector<256x128xbf16>,
    %c0_i32_27 = arith.constant 0 : i32
    %c0_i32_28 = arith.constant 0 : i32
    %39 = tpu.memref_slice %arg5[%12, %c0_i32_27, %c0_i32_28] : memref<2x296x128xbf16, #tpu.memory_space<vmem>> -> memref<1x296x128xbf16, #tpu.memory_space<vmem>>
    %40 = tpu.memref_squeeze %39 : memref<1x296x128xbf16, #tpu.memory_space<vmem>> -> memref<296x128xbf16, #tpu.memory_space<vmem>>
    %c19 = arith.constant 19 : index
    %c0_29 = arith.constant 0 : index
    %41 = vector.load %40[%c19, %c0_29] : memref<296x128xbf16, #tpu.memory_space<vmem>>, vector<256x128xbf16>
    %c0_30 = arith.constant 0 : index
    %c512 = arith.constant 512 : index
    %42 = vector.load %arg8[%c0_30, %c512] : memref<256x1152xbf16, #tpu.memory_space<vmem>>, vector<256x128xbf16>
    tpu.vector_store %arg8[%c0_30, %c512], %41 {strides = array<i32>} : memref<256x1152xbf16, #tpu.memory_space<vmem>>, vector<256x128xbf16>,
    %c0_i32_31 = arith.constant 0 : i32
    %c0_i32_32 = arith.constant 0 : i32
    %43 = tpu.memref_slice %arg5[%12, %c0_i32_31, %c0_i32_32] : memref<2x296x128xbf16, #tpu.memory_space<vmem>> -> memref<1x296x128xbf16, #tpu.memory_space<vmem>>
    %44 = tpu.memref_squeeze %43 : memref<1x296x128xbf16, #tpu.memory_space<vmem>> -> memref<296x128xbf16, #tpu.memory_space<vmem>>
    %c20 = arith.constant 20 : index
    %c0_33 = arith.constant 0 : index
    %45 = vector.load %44[%c20, %c0_33] : memref<296x128xbf16, #tpu.memory_space<vmem>>, vector<256x128xbf16>
    %c0_34 = arith.constant 0 : index
    %c640 = arith.constant 640 : index
    %46 = vector.load %arg8[%c0_34, %c640] : memref<256x1152xbf16, #tpu.memory_space<vmem>>, vector<256x128xbf16>
    tpu.vector_store %arg8[%c0_34, %c640], %45 {strides = array<i32>} : memref<256x1152xbf16, #tpu.memory_space<vmem>>, vector<256x128xbf16>,
    %c0_i32_35 = arith.constant 0 : i32
    %c0_i32_36 = arith.constant 0 : i32
    %47 = tpu.memref_slice %arg5[%12, %c0_i32_35, %c0_i32_36] : memref<2x296x128xbf16, #tpu.memory_space<vmem>> -> memref<1x296x128xbf16, #tpu.memory_space<vmem>>
    %48 = tpu.memref_squeeze %47 : memref<1x296x128xbf16, #tpu.memory_space<vmem>> -> memref<296x128xbf16, #tpu.memory_space<vmem>>
    %c36 = arith.constant 36 : index
    %c0_37 = arith.constant 0 : index
    %49 = vector.load %48[%c36, %c0_37] : memref<296x128xbf16, #tpu.memory_space<vmem>>, vector<256x128xbf16>
    %c0_38 = arith.constant 0 : index
    %c768 = arith.constant 768 : index
    %50 = vector.load %arg8[%c0_38, %c768] : memref<256x1152xbf16, #tpu.memory_space<vmem>>, vector<256x128xbf16>
    tpu.vector_store %arg8[%c0_38, %c768], %49 {strides = array<i32>} : memref<256x1152xbf16, #tpu.memory_space<vmem>>, vector<256x128xbf16>,
    %c0_i32_39 = arith.constant 0 : i32
    %c0_i32_40 = arith.constant 0 : i32
    %51 = tpu.memref_slice %arg5[%12, %c0_i32_39, %c0_i32_40] : memref<2x296x128xbf16, #tpu.memory_space<vmem>> -> memref<1x296x128xbf16, #tpu.memory_space<vmem>>
    %52 = tpu.memref_squeeze %51 : memref<1x296x128xbf16, #tpu.memory_space<vmem>> -> memref<296x128xbf16, #tpu.memory_space<vmem>>
    %c37 = arith.constant 37 : index
    %c0_41 = arith.constant 0 : index
    %53 = vector.load %52[%c37, %c0_41] : memref<296x128xbf16, #tpu.memory_space<vmem>>, vector<256x128xbf16>
    %c0_42 = arith.constant 0 : index
    %c896 = arith.constant 896 : index
    %54 = vector.load %arg8[%c0_42, %c896] : memref<256x1152xbf16, #tpu.memory_space<vmem>>, vector<256x128xbf16>
    tpu.vector_store %arg8[%c0_42, %c896], %53 {strides = array<i32>} : memref<256x1152xbf16, #tpu.memory_space<vmem>>, vector<256x128xbf16>,
    %c0_i32_43 = arith.constant 0 : i32
    %c0_i32_44 = arith.constant 0 : i32
    %55 = tpu.memref_slice %arg5[%12, %c0_i32_43, %c0_i32_44] : memref<2x296x128xbf16, #tpu.memory_space<vmem>> -> memref<1x296x128xbf16, #tpu.memory_space<vmem>>
    %56 = tpu.memref_squeeze %55 : memref<1x296x128xbf16, #tpu.memory_space<vmem>> -> memref<296x128xbf16, #tpu.memory_space<vmem>>
    %c38 = arith.constant 38 : index
    %c0_45 = arith.constant 0 : index
    %57 = vector.load %56[%c38, %c0_45] : memref<296x128xbf16, #tpu.memory_space<vmem>>, vector<256x128xbf16>
    %c0_46 = arith.constant 0 : index
    %c1024 = arith.constant 1024 : index
    %58 = vector.load %arg8[%c0_46, %c1024] : memref<256x1152xbf16, #tpu.memory_space<vmem>>, vector<256x128xbf16>
    tpu.vector_store %arg8[%c0_46, %c1024], %57 {strides = array<i32>} : memref<256x1152xbf16, #tpu.memory_space<vmem>>, vector<256x128xbf16>,
    %c0_47 = arith.constant 0 : index
    %c0_48 = arith.constant 0 : index
    %59 = vector.load %arg8[%c0_47, %c0_48] : memref<256x1152xbf16, #tpu.memory_space<vmem>>, vector<256x1152xbf16>
    %c0_49 = arith.constant 0 : index
    %c0_50 = arith.constant 0 : index
    %60 = vector.load %arg6[%c0_49, %c0_50] : memref<1152x128xbf16, #tpu.memory_space<vmem>>, vector<1152x128xbf16>
    %cst = arith.constant dense<0.000000e+00> : vector<256x128xf32>
    %61 = tpu.matmul %59, %60, %cst {dimension_numbers = #tpu.dot_dimension_numbers<[1], [0], [0], [1], [0, 0, 1, 1], [], []>} : vector<256x1152xbf16>, vector<1152x128xbf16>, vector<256x128xf32> -> vector<256x128xf32>
    %c0_51 = arith.constant 0 : index
    %c0_52 = arith.constant 0 : index
    %62 = vector.load %arg7[%c0_51, %c0_52] : memref<2x128xf32, #tpu.memory_space<vmem>>, vector<1x128xf32>
    %63 = vector.broadcast %62 : vector<1x128xf32> to vector<256x128xf32>
    %64 = arith.mulf %61, %63 : vector<256x128xf32>
    %c1_53 = arith.constant 1 : index
    %c0_54 = arith.constant 0 : index
    %65 = vector.load %arg7[%c1_53, %c0_54] : memref<2x128xf32, #tpu.memory_space<vmem>>, vector<1x128xf32>
    %66 = vector.broadcast %65 : vector<1x128xf32> to vector<256x128xf32>
    %67 = arith.addf %64, %66 : vector<256x128xf32>
    %cst_55 = arith.constant 0.000000e+00 : f32
    %68 = vector.broadcast %cst_55 : f32 to vector<256x128xf32>
    %69 = arith.maximumf %67, %68 : vector<256x128xf32>
    %70 = arith.truncf %69 : vector<256x128xf32> to vector<256x128xbf16>
    %c0_56 = arith.constant 0 : index
    %c0_57 = arith.constant 0 : index
    %71 = vector.load %arg4[%c0_56, %c0_57] : memref<256x128xbf16, #tpu.memory_space<vmem>>, vector<256x128xbf16>
    tpu.vector_store %arg4[%c0_56, %c0_57], %70 {strides = array<i32>} : memref<256x128xbf16, #tpu.memory_space<vmem>>, vector<256x128xbf16>,
    return
  }
  func.func @transform_3(%arg0: i32) -> (i32, i32) {
    %c0_i32 = arith.constant 0 : i32
    %c0_i32_0 = arith.constant 0 : i32
    return %arg0, %c0_i32 : i32, i32
  }
}

</mosaic_0001>

<llo_original>
// kernel: tpu_custom_call.1
$region0: #{tpu_custom_call.1}
  #allocation0 [shape = 'u32[]', space=smem, size = 0x4, offset = 0x4, fixed_abs, tag = 'smem constant byte address 0x4 - core index']
  #allocation1 [shape = 'u32[144,128]{1,0:T(1,128)}', space=vmem, size = 0x12000, scoped, tag = 'internal scratch']
  #allocation2 [shape = 'bf16[2,296,128]{2,1,0:T(8,128)(2,1)}', space=vmem, size = 0x25000, scoped, tag = 'scratch operand']
  #allocation3 [shape = 'bf16[1152,128]{1,0:T(8,128)(2,1)}', space=vmem, size = 0x48000, scoped, tag = 'scratch operand']
  #allocation4 [shape = 'f32[2,128]{1,0:T(2,128)}', space=vmem, size = 0x400, scoped, tag = 'scratch operand']
  #allocation5 [shape = 'bf16[256,1152]{1,0:T(8,128)(2,1)}', space=vmem, size = 0x90000, scoped, tag = 'scratch operand']
  #allocation6 [shape = 's32[4]{0}', space=sflag, size = 0x10, scoped, tag = 'scratch operand']
  #allocation9 [shape = 's32[]', space=sflag, size = 0x4, offset = 0, fixed_abs, tag = 'sflag constant byte address 0x0 - dummy sync flag']
  #allocation10 [shape = 's32[]', space=sflag, size = 0x4, offset = 0, fixed_abs, tag = 'sflag constant byte address 0x0 - dummy sync flag']
  #allocation11 [shape = 'u32[]', space=smem, size = 0x4, offset = 0x44, fixed_abs, tag = 'smem constant byte address 0x44 - assertion arg 0']
  #allocation12 [shape = 'u32[]', space=smem, size = 0x4, offset = 0x48, fixed_abs, tag = 'smem constant byte address 0x48 - assertion arg 1']
  #allocation13 [shape = 's32[]', space=sflag, size = 0x4, offset = 0, fixed_abs, tag = 'sflag constant byte address 0x0 - dummy sync flag']
  #allocation14 [shape = 's32[]', space=sflag, size = 0x4, offset = 0, fixed_abs, tag = 'sflag constant byte address 0x0 - dummy sync flag']
  #allocation15 [shape = 's32[]', space=sflag, size = 0x4, offset = 0, fixed_abs, tag = 'sflag constant byte address 0x0 - dummy sync flag']
  #allocation16 [shape = 's32[]', space=sflag, size = 0x4, offset = 0, fixed_abs, tag = 'sflag constant byte address 0x0 - dummy sync flag']
  #allocation17 [shape = 's32[]', space=sflag, size = 0x4, offset = 0, fixed_abs, tag = 'sflag constant byte address 0x0 - dummy sync flag']
  %s0 = inlined_call_operand.hbm [shape: bf16[808,128], index: 0, kind: input, shape index: {}]
  %s1 = inlined_call_operand.hbm [shape: bf16[1152,128], index: 1, kind: input, shape index: {}]
  %s2 = inlined_call_operand.vmem [shape: f32[2,128], index: 2, kind: input, shape index: {}]
  %s3 = inlined_call_operand.hbm [shape: bf16[768,128], index: 3, kind: output, shape index: {}]
  %s4 = sld [smem:[#allocation0]]
  $region75: #{tpu_custom_call.1} parent=0
    _
  %s6 = ssub.s32 1, %s4
  %s7 = scalar_select 0, %s6, %s4
  $region1: #{tpu_custom_call.1} parent=0
    #allocation7 [shape = 'u8[131072]{0}', space=vmem, size = 0x20000, scoped, tag = 'output window, operand 0']
    #allocation8 [shape = 's32[2]{0}', space=sflag, size = 0x8, scoped, tag = 'scoped memory for tpu_custom_call.1']
    %8 = vsyncpa [#allocation8], 0
    %s9 = scalar_lea.sflag [#allocation8], 1
    %10 = vsyncpa %s9, 0
    loop: start=0, step=1, limit=4
    $region2: #{tpu_custom_call.1} parent=1 // loop_pre_header
      _
    $region3: #{tpu_custom_call.1} parent=1 // loop_header
      %s12 = sphi 0, %s16
      %p13 = scmp.ge.s32.totalorder %s12, 4
      %s21 = sphi 0, %s23
      %s24 = sphi 0, %s21
      %s34 = sphi 0, %s24
    $region4: #{tpu_custom_call.1} parent=1 // loop_header_branch
      %15 = sbr.rel (%p13) target = $region8
    $region5: #{tpu_custom_call.1} parent=1 // loop_body
      %s17 = ssub.s32 %s12, 1
      %s18 = sadd.s32 %s12, 1
      %s19 = ssub.s32 %s12, %s18
      %p20 = scmp.eq.s32.totalorder %s19, 0
      %s22 = sadd.s32 %s21, 1
      %s23 = scalar_select %p20, %s21, %s22
      %p25 = pneg %p20
      %p26 = scmp.eq.s32.totalorder %s12, 2
      %p27 = por %p25, %p26
      %p28 = scmp.ne.s32.totalorder %s21, %s24
      %p29 = scmp.eq.s32.totalorder %s12, 0
      %p30 = por %p28, %p29
      %p31 = scmp.ne.s32.totalorder %s21, %s24
      %p32 = scmp.eq.s32.totalorder %s17, 2
      %p33 = por %p31, %p32
      %p35 = scmp.ne.s32.totalorder %s24, %s34
      %p36 = scmp.eq.s32.totalorder %s17, 0
      %p37 = por %p35, %p36
      %p38 = scmp.lt.s32.totalorder %s12, 3
      // Predicated region
      $region9: #{tpu_custom_call.1} parent=5 // pred_check
        %p39 = pneg %p38
      $region10: #{tpu_custom_call.1} parent=5 // pred_check_branch
        %41 = sbr.rel (%p39) target = $region12
      $region11: #{tpu_custom_call.1} parent=5 // pred_region
        %p42 = pneg %p30
        %p43 = pneg %p27
        %s44 = sand.u32 %s21, 1
        %s45 = scalar_lea.sflag [#allocation8], %s44
        %s46 = sand.u32 %s21, 1
        %s47 = smul.addr %s46, 128
        %s48 = scalar_lea.vmem [#allocation7], %s47
        %s49 = smul.u32 32, %s12
        %p51 = scmp.eq.s32.totalorder %s12, 0
        // Predicated region
        $region13: #{tpu_custom_call.1} parent=11 // pred_check
          %p52 = pneg %p51
        $region14: #{tpu_custom_call.1} parent=11 // pred_check_branch
          %54 = sbr.rel (%p52) target = $region16
        $region15: #{tpu_custom_call.1} parent=11 // pred_region
          %s55 = scalar_lea.sflag [#allocation6], 2
          // Predicated region
          $region17: #{tpu_custom_call.1} parent=15 // pred_check
            _
          $region18: #{tpu_custom_call.1} parent=15 // pred_check_branch
            %57 = sbr.rel target = $region20
          $region19: #{tpu_custom_call.1} parent=15 // pred_region
            %58 = sst [smem:[#allocation11]] [#allocation10]
            %59 = sst [smem:[#allocation12]] [#allocation9]
          $region20: #{tpu_custom_call.1} parent=15 // pred_fallthru
            _
          %61 = shalt.err (0)
          %s63 = sshll.u32 [#allocation3], 4
          %s64 = int_to_ptr.vmem [resolvable:$true] %s63
          %66 = dma.hbm_to_vmem [thread:$0]  %s1, 9216, %s64, %s55
          %s67 = scalar_lea.sflag [#allocation6], 3
          %p69 = scmp.lt.u32.totalorder 2, 8
          %p70 = pneg %p69
          // Predicated region
          $region21: #{tpu_custom_call.1} parent=15 // pred_check
            _
          $region22: #{tpu_custom_call.1} parent=15 // pred_check_branch
            %72 = sbr.rel (%p69) target = $region24
          $region23: #{tpu_custom_call.1} parent=15 // pred_region
            %s88 = sand.u32 2, 7
            %p89 = scmp.eq.s32.totalorder %s88, 0
            %p90 = pneg %p89
            // Predicated region
            $region36: #{tpu_custom_call.1} parent=23 // pred_check
              _
            $region37: #{tpu_custom_call.1} parent=23 // pred_check_branch
              %92 = sbr.rel (%p89) target = $region39
            $region38: #{tpu_custom_call.1} parent=23 // pred_region
              %s93 = sand.u32 2, 7
              %s94 = ssub.s32 2, %s93
              %s95 = scalar_lea.vmem %s2, %s94
              %s96 = ssub.s32 2, %s93
              %s97 = scalar_lea.vmem [#allocation4], %s96
              %s98 = sshll.u32 1, %s93
              %s99 = ssub.s32 %s98, 1
              loop: start=0, step=1, limit=1
              $region40: #{tpu_custom_call.1} parent=38 // loop_pre_header
                _
              $region41: #{tpu_custom_call.1} parent=38 // loop_header
                %s101 = sphi 0, %s105
                %p102 = scmp.ge.s32.totalorder %s101, 1
                %s106 = sphi %s95, %s95
                %s107 = sphi %s97, %s97
              $region42: #{tpu_custom_call.1} parent=38 // loop_header_branch
                %104 = sbr.rel (%p102) target = $region46
              $region43: #{tpu_custom_call.1} parent=38 // loop_body
                %v108 = vld [vmem:[%s106] sm:%s99]
                %109 = vst [vmem:[%s107] sm:%s99] %v108
              $region44: #{tpu_custom_call.1} parent=38 // loop_footer
                %s105 = sadd.s32 1, %s101
              $region45: #{tpu_custom_call.1} parent=38 // loop_footer_branch
                %100 = sbr.rel target = $region41
              $region46: #{tpu_custom_call.1} parent=38 // loop_exit
                _
            $region39: #{tpu_custom_call.1} parent=23 // pred_fallthru
              _
          $region24: #{tpu_custom_call.1} parent=15 // pred_fallthru
            _
          // Predicated region
          $region25: #{tpu_custom_call.1} parent=15 // pred_check
            %p73 = pneg %p69
          $region26: #{tpu_custom_call.1} parent=15 // pred_check_branch
            %75 = sbr.rel (%p73) target = $region28
          $region27: #{tpu_custom_call.1} parent=15 // pred_region
            %s76 = sshll.u32 1, 2
            %s77 = ssub.s32 %s76, 1
            loop: start=0, step=1, limit=1
            $region29: #{tpu_custom_call.1} parent=27 // loop_pre_header
              _
            $region30: #{tpu_custom_call.1} parent=27 // loop_header
              %s79 = sphi 0, %s83
              %p80 = scmp.ge.s32.totalorder %s79, 1
              %s84 = sphi %s2, %s2
              %s85 = sphi [#allocation4], [#allocation4]
            $region31: #{tpu_custom_call.1} parent=27 // loop_header_branch
              %82 = sbr.rel (%p80) target = $region35
            $region32: #{tpu_custom_call.1} parent=27 // loop_body
              %v86 = vld [vmem:[%s84] sm:%s77]
              %87 = vst [vmem:[%s85] sm:%s77] %v86
            $region33: #{tpu_custom_call.1} parent=27 // loop_footer
              %s83 = sadd.s32 1, %s79
            $region34: #{tpu_custom_call.1} parent=27 // loop_footer_branch
              %78 = sbr.rel target = $region30
            $region35: #{tpu_custom_call.1} parent=27 // loop_exit
              _
          $region28: #{tpu_custom_call.1} parent=15 // pred_fallthru
            _
          // Predicated region
          $region47: #{tpu_custom_call.1} parent=15 // pred_check
            _
          $region48: #{tpu_custom_call.1} parent=15 // pred_check_branch
            %112 = sbr.rel (0) target = $region50
          $region49: #{tpu_custom_call.1} parent=15 // pred_region
            %113 = vsyncadd %s67, 32
          $region50: #{tpu_custom_call.1} parent=15 // pred_fallthru
            _
          // Predicated region
          $region51: #{tpu_custom_call.1} parent=15 // pred_check
            _
          $region52: #{tpu_custom_call.1} parent=15 // pred_check_branch
            %115 = sbr.rel target = $region54
          $region53: #{tpu_custom_call.1} parent=15 // pred_region
            %116 = sst [smem:[#allocation11]] [#allocation15]
            %117 = sst [smem:[#allocation12]] [#allocation14]
          $region54: #{tpu_custom_call.1} parent=15 // pred_fallthru
            _
          %119 = shalt.err (0)
          %s121 = sshll.u32 [#allocation2], 4
          %s122 = int_to_ptr.vmem [resolvable:$true] %s121
          %124 = dma.hbm_to_vmem [thread:$0]  %s0, 2368, %s122, [#allocation6]
          %s125 = smul.u32 4, 144
          %s126 = smul.u32 %s125, 1
          %s127 = sshll.u32 %s126, 4
          %128 = dma.done %s55, %s127
          %s129 = smul.u32 2, 1
          %s130 = sshll.u32 %s129, 4
          %131 = dma.done %s67, %s130
        $region16: #{tpu_custom_call.1} parent=11 // pred_fallthru
          _
        %p132 = scmp.lt.s32.totalorder %s12, 0
        %s133 = ssub.s32 0, %s12
        %s134 = scalar_select %p132, %s133, %s12
        %s135 = sand.u32 %s134, 1
        %s136 = ssub.s32 0, %s135
        %s137 = scalar_select %p132, %s136, %s135
        %p138 = scmp.ne.s32.totalorder %s137, 0
        %p139 = scmp.lt.s32.totalorder %s137, 0
        %p140 = pnand %p139, %p138
        %p141 = pneg %p140
        %s142 = sadd.s32 %s137, 2
        %s143 = scalar_select %p141, %s142, %s137
        %s144 = smul.u32 %s143, 37
        %s145 = smul.addr %s144, 4
        %s146 = scalar_lea.vmem [#allocation2], %s145
        %s147 = scalar_lea.sflag [#allocation6], %s143
        %s148 = smul.u32 4, 37
        %s149 = smul.u32 %s148, 1
        %s150 = sshll.u32 %s149, 4
        %151 = dma.done %s147, %s150
        %s152 = sadd.s32 %s12, 1
        %p153 = scmp.lt.s32.totalorder %s152, 3
        // Predicated region
        $region55: #{tpu_custom_call.1} parent=11 // pred_check
          %p154 = pneg %p153
        $region56: #{tpu_custom_call.1} parent=11 // pred_check_branch
          %156 = sbr.rel (%p154) target = $region58
        $region57: #{tpu_custom_call.1} parent=11 // pred_region
          %s157 = ssub.s32 1, %s143
          %s158 = smul.u32 %s152, 256
          %s159 = sshra.s32 %s158, 3
          %s160 = sand.u32 %s158, 7
          %s161 = smul.addr %s159, 64
          %s162 = scalar_lea.hbm %s0, %s161
          %s163 = smul.u32 %s157, 37
          %s164 = smul.addr %s163, 4
          %s165 = scalar_lea.vmem [#allocation2], %s164
          %s166 = scalar_lea.sflag [#allocation6], %s157
          // Predicated region
          $region59: #{tpu_custom_call.1} parent=57 // pred_check
            _
          $region60: #{tpu_custom_call.1} parent=57 // pred_check_branch
            %168 = sbr.rel target = $region62
          $region61: #{tpu_custom_call.1} parent=57 // pred_region
            %169 = sst [smem:[#allocation11]] [#allocation17]
            %170 = sst [smem:[#allocation12]] [#allocation16]
          $region62: #{tpu_custom_call.1} parent=57 // pred_fallthru
            _
          %172 = shalt.err (0)
          %s174 = sshll.u32 %s165, 4
          %s175 = int_to_ptr.vmem [resolvable:$true] %s174
          %177 = dma.hbm_to_vmem [thread:$0]  %s162, 2368, %s175, %s166
        $region58: #{tpu_custom_call.1} parent=11 // pred_fallthru
          _
        %v178 = vld [vmem:[%s146] sm:$0xf]
        %v179 = vld [vmem:[%s146 + $0x4] sm:$0xf]
        %v180 = vld [vmem:[%s146 + $0x8] sm:$0xf]
        %v181 = vld [vmem:[%s146 + $0xc] sm:$0xf]
        %v182 = vld [vmem:[%s146 + $0x10] sm:$0xf]
        %v183 = vld [vmem:[%s146 + $0x14] sm:$0xf]
        %v184 = vld [vmem:[%s146 + $0x18] sm:$0xf]
        %v185 = vld [vmem:[%s146 + $0x1c] sm:$0xf]
        %v186 = vld [vmem:[%s146 + $0x20] sm:$0xf]
        %v187 = vld [vmem:[%s146 + $0x24] sm:$0xf]
        %v188 = vld [vmem:[%s146 + $0x28] sm:$0xf]
        %v189 = vld [vmem:[%s146 + $0x2c] sm:$0xf]
        %v190 = vld [vmem:[%s146 + $0x30] sm:$0xf]
        %v191 = vld [vmem:[%s146 + $0x34] sm:$0xf]
        %v192 = vld [vmem:[%s146 + $0x38] sm:$0xf]
        %v193 = vld [vmem:[%s146 + $0x3c] sm:$0xf]
        %v194 = vld [vmem:[%s146 + $0x40] sm:$0xf]
        %v195 = vld [vmem:[%s146 + $0x44] sm:$0xf]
        %v196 = vld [vmem:[%s146 + $0x48] sm:$0xf]
        %v197 = vld [vmem:[%s146 + $0x4c] sm:$0xf]
        %v198 = vld [vmem:[%s146 + $0x50] sm:$0xf]
        %v199 = vld [vmem:[%s146 + $0x54] sm:$0xf]
        %v200 = vld [vmem:[%s146 + $0x58] sm:$0xf]
        %v201 = vld [vmem:[%s146 + $0x5c] sm:$0xf]
        %v202 = vld [vmem:[%s146 + $0x60] sm:$0xf]
        %v203 = vld [vmem:[%s146 + $0x64] sm:$0xf]
        %v204 = vld [vmem:[%s146 + $0x68] sm:$0xf]
        %v205 = vld [vmem:[%s146 + $0x6c] sm:$0xf]
        %v206 = vld [vmem:[%s146 + $0x70] sm:$0xf]
        %v207 = vld [vmem:[%s146 + $0x74] sm:$0xf]
        %v208 = vld [vmem:[%s146 + $0x78] sm:$0xf]
        %v209 = vld [vmem:[%s146 + $0x7c] sm:$0xf]
        %210 = vst [vmem:[#allocation5] sm:$0xf] %v178
        %211 = vst [vmem:[#allocation5 + $0x24] sm:$0xf] %v179
        %212 = vst [vmem:[#allocation5 + $0x48] sm:$0xf] %v180
        %213 = vst [vmem:[#allocation5 + $0x6c] sm:$0xf] %v181
        %214 = vst [vmem:[#allocation5 + $0x90] sm:$0xf] %v182
        %215 = vst [vmem:[#allocation5 + $0xb4] sm:$0xf] %v183
        %216 = vst [vmem:[#allocation5 + $0xd8] sm:$0xf] %v184
        %217 = vst [vmem:[#allocation5 + $0xfc] sm:$0xf] %v185
        %218 = vst [vmem:[#allocation5 + $0x120] sm:$0xf] %v186
        %219 = vst [vmem:[#allocation5 + $0x144] sm:$0xf] %v187
        %220 = vst [vmem:[#allocation5 + $0x168] sm:$0xf] %v188
        %221 = vst [vmem:[#allocation5 + $0x18c] sm:$0xf] %v189
        %222 = vst [vmem:[#allocation5 + $0x1b0] sm:$0xf] %v190
        %223 = vst [vmem:[#allocation5 + $0x1d4] sm:$0xf] %v191
        %224 = vst [vmem:[#allocation5 + $0x1f8] sm:$0xf] %v192
        %225 = vst [vmem:[#allocation5 + $0x21c] sm:$0xf] %v193
        %226 = vst [vmem:[#allocation5 + $0x240] sm:$0xf] %v194
        %227 = vst [vmem:[#allocation5 + $0x264] sm:$0xf] %v195
        %228 = vst [vmem:[#allocation5 + $0x288] sm:$0xf] %v196
        %229 = vst [vmem:[#allocation5 + $0x2ac] sm:$0xf] %v197
        %230 = vst [vmem:[#allocation5 + $0x2d0] sm:$0xf] %v198
        %231 = vst [vmem:[#allocation5 + $0x2f4] sm:$0xf] %v199
        %232 = vst [vmem:[#allocation5 + $0x318] sm:$0xf] %v200
        %233 = vst [vmem:[#allocation5 + $0x33c] sm:$0xf] %v201
        %234 = vst [vmem:[#allocation5 + $0x360] sm:$0xf] %v202
        %235 = vst [vmem:[#allocation5 + $0x384] sm:$0xf] %v203
        %236 = vst [vmem:[#allocation5 + $0x3a8] sm:$0xf] %v204
        %237 = vst [vmem:[#allocation5 + $0x3cc] sm:$0xf] %v205
        %238 = vst [vmem:[#allocation5 + $0x3f0] sm:$0xf] %v206
        %239 = vst [vmem:[#allocation5 + $0x414] sm:$0xf] %v207
        %240 = vst [vmem:[#allocation5 + $0x438] sm:$0xf] %v208
        %241 = vst [vmem:[#allocation5 + $0x45c] sm:$0xf] %v209
        %v242 = vld [vmem:[%s146] sm:$0xf]
        %v243 = vld [vmem:[%s146 + $0x4] sm:$0xf]
        %v244 = vld [vmem:[%s146 + $0x8] sm:$0xf]
        %v245 = vld [vmem:[%s146 + $0xc] sm:$0xf]
        %v246 = vld [vmem:[%s146 + $0x10] sm:$0xf]
        %v247 = vld [vmem:[%s146 + $0x14] sm:$0xf]
        %v248 = vld [vmem:[%s146 + $0x18] sm:$0xf]
        %v249 = vld [vmem:[%s146 + $0x1c] sm:$0xf]
        %v250 = vld [vmem:[%s146 + $0x20] sm:$0xf]
        %v251 = vld [vmem:[%s146 + $0x24] sm:$0xf]
        %v252 = vld [vmem:[%s146 + $0x28] sm:$0xf]
        %v253 = vld [vmem:[%s146 + $0x2c] sm:$0xf]
        %v254 = vld [vmem:[%s146 + $0x30] sm:$0xf]
        %v255 = vld [vmem:[%s146 + $0x34] sm:$0xf]
        %v256 = vld [vmem:[%s146 + $0x38] sm:$0xf]
        %v257 = vld [vmem:[%s146 + $0x3c] sm:$0xf]
        %v258 = vld [vmem:[%s146 + $0x40] sm:$0xf]
        %v259 = vld [vmem:[%s146 + $0x44] sm:$0xf]
        %v260 = vld [vmem:[%s146 + $0x48] sm:$0xf]
        %v261 = vld [vmem:[%s146 + $0x4c] sm:$0xf]
        %v262 = vld [vmem:[%s146 + $0x50] sm:$0xf]
        %v263 = vld [vmem:[%s146 + $0x54] sm:$0xf]
        %v264 = vld [vmem:[%s146 + $0x58] sm:$0xf]
        %v265 = vld [vmem:[%s146 + $0x5c] sm:$0xf]
        %v266 = vld [vmem:[%s146 + $0x60] sm:$0xf]
        %v267 = vld [vmem:[%s146 + $0x64] sm:$0xf]
        %v268 = vld [vmem:[%s146 + $0x68] sm:$0xf]
        %v269 = vld [vmem:[%s146 + $0x6c] sm:$0xf]
        %v270 = vld [vmem:[%s146 + $0x70] sm:$0xf]
        %v271 = vld [vmem:[%s146 + $0x74] sm:$0xf]
        %v272 = vld [vmem:[%s146 + $0x78] sm:$0xf]
        %v273 = vld [vmem:[%s146 + $0x7c] sm:$0xf]
        %v274 = vld [vmem:[%s146 + $0x80] sm:$0x1]
        %vm275 = vsmask.f32 3328
        %vm276 = vsmask.f32 7440
        %vm277 = vmor %vm275, %vm276
        %v279 = vshrl.u32 %v242, 16
        %v281 = vrot.slane %v279, 4
        %v282 = vshll.u32 %v242, 16
        %v284 = vrot.slane %v282, 5
        %v285 = vor.u32 %v281, %v284
        %v286 = vrot.slane %v285, 4
        %v288 = vshll.u32 %v243, 16
        %v290 = vrot.slane %v288, 5
        %v291 = vsel %vm277, %v286, %v290
        %v292 = vshrl.u32 %v243, 16
        %v294 = vrot.slane %v292, 4
        %v295 = vor.u32 %v294, %v290
        %v296 = vrot.slane %v295, 4
        %v298 = vshll.u32 %v244, 16
        %v300 = vrot.slane %v298, 5
        %v301 = vsel %vm277, %v296, %v300
        %v302 = vshrl.u32 %v244, 16
        %v304 = vrot.slane %v302, 4
        %v305 = vor.u32 %v304, %v300
        %v306 = vrot.slane %v305, 4
        %v308 = vshll.u32 %v245, 16
        %v310 = vrot.slane %v308, 5
        %v311 = vsel %vm277, %v306, %v310
        %v312 = vshrl.u32 %v245, 16
        %v314 = vrot.slane %v312, 4
        %v315 = vor.u32 %v314, %v310
        %v316 = vrot.slane %v315, 4
        %v318 = vshll.u32 %v246, 16
        %v320 = vrot.slane %v318, 5
        %v321 = vsel %vm277, %v316, %v320
        %v322 = vshrl.u32 %v246, 16
        %v324 = vrot.slane %v322, 4
        %v325 = vor.u32 %v324, %v320
        %v326 = vrot.slane %v325, 4
        %v328 = vshll.u32 %v247, 16
        %v330 = vrot.slane %v328, 5
        %v331 = vsel %vm277, %v326, %v330
        %v332 = vshrl.u32 %v247, 16
        %v334 = vrot.slane %v332, 4
        %v335 = vor.u32 %v334, %v330
        %v336 = vrot.slane %v335, 4
        %v338 = vshll.u32 %v248, 16
        %v340 = vrot.slane %v338, 5
        %v341 = vsel %vm277, %v336, %v340
        %v342 = vshrl.u32 %v248, 16
        %v344 = vrot.slane %v342, 4
        %v345 = vor.u32 %v344, %v340
        %v346 = vrot.slane %v345, 4
        %v348 = vshll.u32 %v249, 16
        %v350 = vrot.slane %v348, 5
        %v351 = vsel %vm277, %v346, %v350
        %v352 = vshrl.u32 %v249, 16
        %v354 = vrot.slane %v352, 4
        %v355 = vor.u32 %v354, %v350
        %v356 = vrot.slane %v355, 4
        %v358 = vshll.u32 %v250, 16
        %v360 = vrot.slane %v358, 5
        %v361 = vsel %vm277, %v356, %v360
        %v362 = vshrl.u32 %v250, 16
        %v364 = vrot.slane %v362, 4
        %v365 = vor.u32 %v364, %v360
        %v366 = vrot.slane %v365, 4
        %v368 = vshll.u32 %v251, 16
        %v370 = vrot.slane %v368, 5
        %v371 = vsel %vm277, %v366, %v370
        %v372 = vshrl.u32 %v251, 16
        %v374 = vrot.slane %v372, 4
        %v375 = vor.u32 %v374, %v370
        %v376 = vrot.slane %v375, 4
        %v378 = vshll.u32 %v252, 16
        %v380 = vrot.slane %v378, 5
        %v381 = vsel %vm277, %v376, %v380
        %v382 = vshrl.u32 %v252, 16
        %v384 = vrot.slane %v382, 4
        %v385 = vor.u32 %v384, %v380
        %v386 = vrot.slane %v385, 4
        %v388 = vshll.u32 %v253, 16
        %v390 = vrot.slane %v388, 5
        %v391 = vsel %vm277, %v386, %v390
        %v392 = vshrl.u32 %v253, 16
        %v394 = vrot.slane %v392, 4
        %v395 = vor.u32 %v394, %v390
        %v396 = vrot.slane %v395, 4
        %v398 = vshll.u32 %v254, 16
        %v400 = vrot.slane %v398, 5
        %v401 = vsel %vm277, %v396, %v400
        %v402 = vshrl.u32 %v254, 16
        %v404 = vrot.slane %v402, 4
        %v405 = vor.u32 %v404, %v400
        %v406 = vrot.slane %v405, 4
        %v408 = vshll.u32 %v255, 16
        %v410 = vrot.slane %v408, 5
        %v411 = vsel %vm277, %v406, %v410
        %v412 = vshrl.u32 %v255, 16
        %v414 = vrot.slane %v412, 4
        %v415 = vor.u32 %v414, %v410
        %v416 = vrot.slane %v415, 4
        %v418 = vshll.u32 %v256, 16
        %v420 = vrot.slane %v418, 5
        %v421 = vsel %vm277, %v416, %v420
        %v422 = vshrl.u32 %v256, 16
        %v424 = vrot.slane %v422, 4
        %v425 = vor.u32 %v424, %v420
        %v426 = vrot.slane %v425, 4
        %v428 = vshll.u32 %v257, 16
        %v430 = vrot.slane %v428, 5
        %v431 = vsel %vm277, %v426, %v430
        %v432 = vshrl.u32 %v257, 16
        %v434 = vrot.slane %v432, 4
        %v435 = vor.u32 %v434, %v430
        %v436 = vrot.slane %v435, 4
        %v438 = vshll.u32 %v258, 16
        %v440 = vrot.slane %v438, 5
        %v441 = vsel %vm277, %v436, %v440
        %v442 = vshrl.u32 %v258, 16
        %v444 = vrot.slane %v442, 4
        %v445 = vor.u32 %v444, %v440
        %v446 = vrot.slane %v445, 4
        %v448 = vshll.u32 %v259, 16
        %v450 = vrot.slane %v448, 5
        %v451 = vsel %vm277, %v446, %v450
        %v452 = vshrl.u32 %v259, 16
        %v454 = vrot.slane %v452, 4
        %v455 = vor.u32 %v454, %v450
        %v456 = vrot.slane %v455, 4
        %v458 = vshll.u32 %v260, 16
        %v460 = vrot.slane %v458, 5
        %v461 = vsel %vm277, %v456, %v460
        %v462 = vshrl.u32 %v260, 16
        %v464 = vrot.slane %v462, 4
        %v465 = vor.u32 %v464, %v460
        %v466 = vrot.slane %v465, 4
        %v468 = vshll.u32 %v261, 16
        %v470 = vrot.slane %v468, 5
        %v471 = vsel %vm277, %v466, %v470
        %v472 = vshrl.u32 %v261, 16
        %v474 = vrot.slane %v472, 4
        %v475 = vor.u32 %v474, %v470
        %v476 = vrot.slane %v475, 4
        %v478 = vshll.u32 %v262, 16
        %v480 = vrot.slane %v478, 5
        %v481 = vsel %vm277, %v476, %v480
        %v482 = vshrl.u32 %v262, 16
        %v484 = vrot.slane %v482, 4
        %v485 = vor.u32 %v484, %v480
        %v486 = vrot.slane %v485, 4
        %v488 = vshll.u32 %v263, 16
        %v490 = vrot.slane %v488, 5
        %v491 = vsel %vm277, %v486, %v490
        %v492 = vshrl.u32 %v263, 16
        %v494 = vrot.slane %v492, 4
        %v495 = vor.u32 %v494, %v490
        %v496 = vrot.slane %v495, 4
        %v498 = vshll.u32 %v264, 16
        %v500 = vrot.slane %v498, 5
        %v501 = vsel %vm277, %v496, %v500
        %v502 = vshrl.u32 %v264, 16
        %v504 = vrot.slane %v502, 4
        %v505 = vor.u32 %v504, %v500
        %v506 = vrot.slane %v505, 4
        %v508 = vshll.u32 %v265, 16
        %v510 = vrot.slane %v508, 5
        %v511 = vsel %vm277, %v506, %v510
        %v512 = vshrl.u32 %v265, 16
        %v514 = vrot.slane %v512, 4
        %v515 = vor.u32 %v514, %v510
        %v516 = vrot.slane %v515, 4
        %v518 = vshll.u32 %v266, 16
        %v520 = vrot.slane %v518, 5
        %v521 = vsel %vm277, %v516, %v520
        %v522 = vshrl.u32 %v266, 16
        %v524 = vrot.slane %v522, 4
        %v525 = vor.u32 %v524, %v520
        %v526 = vrot.slane %v525, 4
        %v528 = vshll.u32 %v267, 16
        %v530 = vrot.slane %v528, 5
        %v531 = vsel %vm277, %v526, %v530
        %v532 = vshrl.u32 %v267, 16
        %v534 = vrot.slane %v532, 4
        %v535 = vor.u32 %v534, %v530
        %v536 = vrot.slane %v535, 4
        %v538 = vshll.u32 %v268, 16
        %v540 = vrot.slane %v538, 5
        %v541 = vsel %vm277, %v536, %v540
        %v542 = vshrl.u32 %v268, 16
        %v544 = vrot.slane %v542, 4
        %v545 = vor.u32 %v544, %v540
        %v546 = vrot.slane %v545, 4
        %v548 = vshll.u32 %v269, 16
        %v550 = vrot.slane %v548, 5
        %v551 = vsel %vm277, %v546, %v550
        %v552 = vshrl.u32 %v269, 16
        %v554 = vrot.slane %v552, 4
        %v555 = vor.u32 %v554, %v550
        %v556 = vrot.slane %v555, 4
        %v558 = vshll.u32 %v270, 16
        %v560 = vrot.slane %v558, 5
        %v561 = vsel %vm277, %v556, %v560
        %v562 = vshrl.u32 %v270, 16
        %v564 = vrot.slane %v562, 4
        %v565 = vor.u32 %v564, %v560
        %v566 = vrot.slane %v565, 4
        %v568 = vshll.u32 %v271, 16
        %v570 = vrot.slane %v568, 5
        %v571 = vsel %vm277, %v566, %v570
        %v572 = vshrl.u32 %v271, 16
        %v574 = vrot.slane %v572, 4
        %v575 = vor.u32 %v574, %v570
        %v576 = vrot.slane %v575, 4
        %v578 = vshll.u32 %v272, 16
        %v580 = vrot.slane %v578, 5
        %v581 = vsel %vm277, %v576, %v580
        %v582 = vshrl.u32 %v272, 16
        %v584 = vrot.slane %v582, 4
        %v585 = vor.u32 %v584, %v580
        %v586 = vrot.slane %v585, 4
        %v588 = vshll.u32 %v273, 16
        %v590 = vrot.slane %v588, 5
        %v591 = vsel %vm277, %v586, %v590
        %v592 = vshrl.u32 %v273, 16
        %v594 = vrot.slane %v592, 4
        %v595 = vor.u32 %v594, %v590
        %v596 = vrot.slane %v595, 4
        %v598 = vshll.u32 %v274, 16
        %v600 = vrot.slane %v598, 5
        %v601 = vsel %vm277, %v596, %v600
        %634 = vst [vmem:[#allocation5 + $0x4] sm:$0xf] %v291
        %635 = vst [vmem:[#allocation5 + $0x28] sm:$0xf] %v301
        %636 = vst [vmem:[#allocation5 + $0x4c] sm:$0xf] %v311
        %637 = vst [vmem:[#allocation5 + $0x70] sm:$0xf] %v321
        %638 = vst [vmem:[#allocation5 + $0x94] sm:$0xf] %v331
        %639 = vst [vmem:[#allocation5 + $0xb8] sm:$0xf] %v341
        %640 = vst [vmem:[#allocation5 + $0xdc] sm:$0xf] %v351
        %641 = vst [vmem:[#allocation5 + $0x100] sm:$0xf] %v361
        %642 = vst [vmem:[#allocation5 + $0x124] sm:$0xf] %v371
        %643 = vst [vmem:[#allocation5 + $0x148] sm:$0xf] %v381
        %644 = vst [vmem:[#allocation5 + $0x16c] sm:$0xf] %v391
        %645 = vst [vmem:[#allocation5 + $0x190] sm:$0xf] %v401
        %646 = vst [vmem:[#allocation5 + $0x1b4] sm:$0xf] %v411
        %647 = vst [vmem:[#allocation5 + $0x1d8] sm:$0xf] %v421
        %648 = vst [vmem:[#allocation5 + $0x1fc] sm:$0xf] %v431
        %649 = vst [vmem:[#allocation5 + $0x220] sm:$0xf] %v441
        %650 = vst [vmem:[#allocation5 + $0x244] sm:$0xf] %v451
        %651 = vst [vmem:[#allocation5 + $0x268] sm:$0xf] %v461
        %652 = vst [vmem:[#allocation5 + $0x28c] sm:$0xf] %v471
        %653 = vst [vmem:[#allocation5 + $0x2b0] sm:$0xf] %v481
        %654 = vst [vmem:[#allocation5 + $0x2d4] sm:$0xf] %v491
        %655 = vst [vmem:[#allocation5 + $0x2f8] sm:$0xf] %v501
        %656 = vst [vmem:[#allocation5 + $0x31c] sm:$0xf] %v511
        %657 = vst [vmem:[#allocation5 + $0x340] sm:$0xf] %v521
        %658 = vst [vmem:[#allocation5 + $0x364] sm:$0xf] %v531
        %659 = vst [vmem:[#allocation5 + $0x388] sm:$0xf] %v541
        %660 = vst [vmem:[#allocation5 + $0x3ac] sm:$0xf] %v551
        %661 = vst [vmem:[#allocation5 + $0x3d0] sm:$0xf] %v561
        %662 = vst [vmem:[#allocation5 + $0x3f4] sm:$0xf] %v571
        %663 = vst [vmem:[#allocation5 + $0x418] sm:$0xf] %v581
        %664 = vst [vmem:[#allocation5 + $0x43c] sm:$0xf] %v591
        %665 = vst [vmem:[#allocation5 + $0x460] sm:$0xf] %v601
        %v666 = vld [vmem:[%s146] sm:$0xe]
        %v667 = vld [vmem:[%s146 + $0x4] sm:$0xf]
        %v668 = vld [vmem:[%s146 + $0x8] sm:$0xf]
        %v669 = vld [vmem:[%s146 + $0xc] sm:$0xf]
        %v670 = vld [vmem:[%s146 + $0x10] sm:$0xf]
        %v671 = vld [vmem:[%s146 + $0x14] sm:$0xf]
        %v672 = vld [vmem:[%s146 + $0x18] sm:$0xf]
        %v673 = vld [vmem:[%s146 + $0x1c] sm:$0xf]
        %v674 = vld [vmem:[%s146 + $0x20] sm:$0xf]
        %v675 = vld [vmem:[%s146 + $0x24] sm:$0xf]
        %v676 = vld [vmem:[%s146 + $0x28] sm:$0xf]
        %v677 = vld [vmem:[%s146 + $0x2c] sm:$0xf]
        %v678 = vld [vmem:[%s146 + $0x30] sm:$0xf]
        %v679 = vld [vmem:[%s146 + $0x34] sm:$0xf]
        %v680 = vld [vmem:[%s146 + $0x38] sm:$0xf]
        %v681 = vld [vmem:[%s146 + $0x3c] sm:$0xf]
        %v682 = vld [vmem:[%s146 + $0x40] sm:$0xf]
        %v683 = vld [vmem:[%s146 + $0x44] sm:$0xf]
        %v684 = vld [vmem:[%s146 + $0x48] sm:$0xf]
        %v685 = vld [vmem:[%s146 + $0x4c] sm:$0xf]
        %v686 = vld [vmem:[%s146 + $0x50] sm:$0xf]
        %v687 = vld [vmem:[%s146 + $0x54] sm:$0xf]
        %v688 = vld [vmem:[%s146 + $0x58] sm:$0xf]
        %v689 = vld [vmem:[%s146 + $0x5c] sm:$0xf]
        %v690 = vld [vmem:[%s146 + $0x60] sm:$0xf]
        %v691 = vld [vmem:[%s146 + $0x64] sm:$0xf]
        %v692 = vld [vmem:[%s146 + $0x68] sm:$0xf]
        %v693 = vld [vmem:[%s146 + $0x6c] sm:$0xf]
        %v694 = vld [vmem:[%s146 + $0x70] sm:$0xf]
        %v695 = vld [vmem:[%s146 + $0x74] sm:$0xf]
        %v696 = vld [vmem:[%s146 + $0x78] sm:$0xf]
        %v697 = vld [vmem:[%s146 + $0x7c] sm:$0xf]
        %v698 = vld [vmem:[%s146 + $0x80] sm:$0x1]
        %vm732 = vcmask 1042432
        %vm733 = vcmask 1046532
        %vm734 = vmor %vm732, %vm733
        %v735 = vrot.slane %v666, 5
        %v736 = vrot.slane %v735, 4
        %v737 = vrot.slane %v667, 5
        %v738 = vsel %vm734, %v736, %v737
        %v739 = vrot.slane %v737, 4
        %v740 = vrot.slane %v668, 5
        %v741 = vsel %vm734, %v739, %v740
        %v742 = vrot.slane %v740, 4
        %v743 = vrot.slane %v669, 5
        %v744 = vsel %vm734, %v742, %v743
        %v745 = vrot.slane %v743, 4
        %v746 = vrot.slane %v670, 5
        %v747 = vsel %vm734, %v745, %v746
        %v748 = vrot.slane %v746, 4
        %v749 = vrot.slane %v671, 5
        %v750 = vsel %vm734, %v748, %v749
        %v751 = vrot.slane %v749, 4
        %v752 = vrot.slane %v672, 5
        %v753 = vsel %vm734, %v751, %v752
        %v754 = vrot.slane %v752, 4
        %v755 = vrot.slane %v673, 5
        %v756 = vsel %vm734, %v754, %v755
        %v757 = vrot.slane %v755, 4
        %v758 = vrot.slane %v674, 5
        %v759 = vsel %vm734, %v757, %v758
        %v760 = vrot.slane %v758, 4
        %v761 = vrot.slane %v675, 5
        %v762 = vsel %vm734, %v760, %v761
        %v763 = vrot.slane %v761, 4
        %v764 = vrot.slane %v676, 5
        %v765 = vsel %vm734, %v763, %v764
        %v766 = vrot.slane %v764, 4
        %v767 = vrot.slane %v677, 5
        %v768 = vsel %vm734, %v766, %v767
        %v769 = vrot.slane %v767, 4
        %v770 = vrot.slane %v678, 5
        %v771 = vsel %vm734, %v769, %v770
        %v772 = vrot.slane %v770, 4
        %v773 = vrot.slane %v679, 5
        %v774 = vsel %vm734, %v772, %v773
        %v775 = vrot.slane %v773, 4
        %v776 = vrot.slane %v680, 5
        %v777 = vsel %vm734, %v775, %v776
        %v778 = vrot.slane %v776, 4
        %v779 = vrot.slane %v681, 5
        %v780 = vsel %vm734, %v778, %v779
        %v781 = vrot.slane %v779, 4
        %v782 = vrot.slane %v682, 5
        %v783 = vsel %vm734, %v781, %v782
        %v784 = vrot.slane %v782, 4
        %v785 = vrot.slane %v683, 5
        %v786 = vsel %vm734, %v784, %v785
        %v787 = vrot.slane %v785, 4
        %v788 = vrot.slane %v684, 5
        %v789 = vsel %vm734, %v787, %v788
        %v790 = vrot.slane %v788, 4
        %v791 = vrot.slane %v685, 5
        %v792 = vsel %vm734, %v790, %v791
        %v793 = vrot.slane %v791, 4
        %v794 = vrot.slane %v686, 5
        %v795 = vsel %vm734, %v793, %v794
        %v796 = vrot.slane %v794, 4
        %v797 = vrot.slane %v687, 5
        %v798 = vsel %vm734, %v796, %v797
        %v799 = vrot.slane %v797, 4
        %v800 = vrot.slane %v688, 5
        %v801 = vsel %vm734, %v799, %v800
        %v802 = vrot.slane %v800, 4
        %v803 = vrot.slane %v689, 5
        %v804 = vsel %vm734, %v802, %v803
        %v805 = vrot.slane %v803, 4
        %v806 = vrot.slane %v690, 5
        %v807 = vsel %vm734, %v805, %v806
        %v808 = vrot.slane %v806, 4
        %v809 = vrot.slane %v691, 5
        %v810 = vsel %vm734, %v808, %v809
        %v811 = vrot.slane %v809, 4
        %v812 = vrot.slane %v692, 5
        %v813 = vsel %vm734, %v811, %v812
        %v814 = vrot.slane %v812, 4
        %v815 = vrot.slane %v693, 5
        %v816 = vsel %vm734, %v814, %v815
        %v817 = vrot.slane %v815, 4
        %v818 = vrot.slane %v694, 5
        %v819 = vsel %vm734, %v817, %v818
        %v820 = vrot.slane %v818, 4
        %v821 = vrot.slane %v695, 5
        %v822 = vsel %vm734, %v820, %v821
        %v823 = vrot.slane %v821, 4
        %v824 = vrot.slane %v696, 5
        %v825 = vsel %vm734, %v823, %v824
        %v826 = vrot.slane %v824, 4
        %v827 = vrot.slane %v697, 5
        %v828 = vsel %vm734, %v826, %v827
        %v829 = vrot.slane %v827, 4
        %v830 = vrot.slane %v698, 5
        %v831 = vsel %vm734, %v829, %v830
        %864 = vst [vmem:[#allocation5 + $0x8] sm:$0xf] %v738
        %865 = vst [vmem:[#allocation5 + $0x2c] sm:$0xf] %v741
        %866 = vst [vmem:[#allocation5 + $0x50] sm:$0xf] %v744
        %867 = vst [vmem:[#allocation5 + $0x74] sm:$0xf] %v747
        %868 = vst [vmem:[#allocation5 + $0x98] sm:$0xf] %v750
        %869 = vst [vmem:[#allocation5 + $0xbc] sm:$0xf] %v753
        %870 = vst [vmem:[#allocation5 + $0xe0] sm:$0xf] %v756
        %871 = vst [vmem:[#allocation5 + $0x104] sm:$0xf] %v759
        %872 = vst [vmem:[#allocation5 + $0x128] sm:$0xf] %v762
        %873 = vst [vmem:[#allocation5 + $0x14c] sm:$0xf] %v765
        %874 = vst [vmem:[#allocation5 + $0x170] sm:$0xf] %v768
        %875 = vst [vmem:[#allocation5 + $0x194] sm:$0xf] %v771
        %876 = vst [vmem:[#allocation5 + $0x1b8] sm:$0xf] %v774
        %877 = vst [vmem:[#allocation5 + $0x1dc] sm:$0xf] %v777
        %878 = vst [vmem:[#allocation5 + $0x200] sm:$0xf] %v780
        %879 = vst [vmem:[#allocation5 + $0x224] sm:$0xf] %v783
        %880 = vst [vmem:[#allocation5 + $0x248] sm:$0xf] %v786
        %881 = vst [vmem:[#allocation5 + $0x26c] sm:$0xf] %v789
        %882 = vst [vmem:[#allocation5 + $0x290] sm:$0xf] %v792
        %883 = vst [vmem:[#allocation5 + $0x2b4] sm:$0xf] %v795
        %884 = vst [vmem:[#allocation5 + $0x2d8] sm:$0xf] %v798
        %885 = vst [vmem:[#allocation5 + $0x2fc] sm:$0xf] %v801
        %886 = vst [vmem:[#allocation5 + $0x320] sm:$0xf] %v804
        %887 = vst [vmem:[#allocation5 + $0x344] sm:$0xf] %v807
        %888 = vst [vmem:[#allocation5 + $0x368] sm:$0xf] %v810
        %889 = vst [vmem:[#allocation5 + $0x38c] sm:$0xf] %v813
        %890 = vst [vmem:[#allocation5 + $0x3b0] sm:$0xf] %v816
        %891 = vst [vmem:[#allocation5 + $0x3d4] sm:$0xf] %v819
        %892 = vst [vmem:[#allocation5 + $0x3f8] sm:$0xf] %v822
        %893 = vst [vmem:[#allocation5 + $0x41c] sm:$0xf] %v825
        %894 = vst [vmem:[#allocation5 + $0x440] sm:$0xf] %v828
        %895 = vst [vmem:[#allocation5 + $0x464] sm:$0xf] %v831
        %v896 = vld [vmem:[%s146 + $0x8] sm:$0xe]
        %v897 = vld [vmem:[%s146 + $0xc] sm:$0xf]
        %v898 = vld [vmem:[%s146 + $0x10] sm:$0xf]
        %v899 = vld [vmem:[%s146 + $0x14] sm:$0xf]
        %v900 = vld [vmem:[%s146 + $0x18] sm:$0xf]
        %v901 = vld [vmem:[%s146 + $0x1c] sm:$0xf]
        %v902 = vld [vmem:[%s146 + $0x20] sm:$0xf]
        %v903 = vld [vmem:[%s146 + $0x24] sm:$0xf]
        %v904 = vld [vmem:[%s146 + $0x28] sm:$0xf]
        %v905 = vld [vmem:[%s146 + $0x2c] sm:$0xf]
        %v906 = vld [vmem:[%s146 + $0x30] sm:$0xf]
        %v907 = vld [vmem:[%s146 + $0x34] sm:$0xf]
        %v908 = vld [vmem:[%s146 + $0x38] sm:$0xf]
        %v909 = vld [vmem:[%s146 + $0x3c] sm:$0xf]
        %v910 = vld [vmem:[%s146 + $0x40] sm:$0xf]
        %v911 = vld [vmem:[%s146 + $0x44] sm:$0xf]
        %v912 = vld [vmem:[%s146 + $0x48] sm:$0xf]
        %v913 = vld [vmem:[%s146 + $0x4c] sm:$0xf]
        %v914 = vld [vmem:[%s146 + $0x50] sm:$0xf]
        %v915 = vld [vmem:[%s146 + $0x54] sm:$0xf]
        %v916 = vld [vmem:[%s146 + $0x58] sm:$0xf]
        %v917 = vld [vmem:[%s146 + $0x5c] sm:$0xf]
        %v918 = vld [vmem:[%s146 + $0x60] sm:$0xf]
        %v919 = vld [vmem:[%s146 + $0x64] sm:$0xf]
        %v920 = vld [vmem:[%s146 + $0x68] sm:$0xf]
        %v921 = vld [vmem:[%s146 + $0x6c] sm:$0xf]
        %v922 = vld [vmem:[%s146 + $0x70] sm:$0xf]
        %v923 = vld [vmem:[%s146 + $0x74] sm:$0xf]
        %v924 = vld [vmem:[%s146 + $0x78] sm:$0xf]
        %v925 = vld [vmem:[%s146 + $0x7c] sm:$0xf]
        %v926 = vld [vmem:[%s146 + $0x80] sm:$0xf]
        %v927 = vld [vmem:[%s146 + $0x84] sm:$0xf]
        %v928 = vld [vmem:[%s146 + $0x88] sm:$0x1]
        %v962 = vrot.slane %v896, 5
        %v963 = vrot.slane %v962, 4
        %v964 = vrot.slane %v897, 5
        %v965 = vsel %vm734, %v963, %v964
        %v966 = vrot.slane %v964, 4
        %v967 = vrot.slane %v898, 5
        %v968 = vsel %vm734, %v966, %v967
        %v969 = vrot.slane %v967, 4
        %v970 = vrot.slane %v899, 5
        %v971 = vsel %vm734, %v969, %v970
        %v972 = vrot.slane %v970, 4
        %v973 = vrot.slane %v900, 5
        %v974 = vsel %vm734, %v972, %v973
        %v975 = vrot.slane %v973, 4
        %v976 = vrot.slane %v901, 5
        %v977 = vsel %vm734, %v975, %v976
        %v978 = vrot.slane %v976, 4
        %v979 = vrot.slane %v902, 5
        %v980 = vsel %vm734, %v978, %v979
        %v981 = vrot.slane %v979, 4
        %v982 = vrot.slane %v903, 5
        %v983 = vsel %vm734, %v981, %v982
        %v984 = vrot.slane %v982, 4
        %v985 = vrot.slane %v904, 5
        %v986 = vsel %vm734, %v984, %v985
        %v987 = vrot.slane %v985, 4
        %v988 = vrot.slane %v905, 5
        %v989 = vsel %vm734, %v987, %v988
        %v990 = vrot.slane %v988, 4
        %v991 = vrot.slane %v906, 5
        %v992 = vsel %vm734, %v990, %v991
        %v993 = vrot.slane %v991, 4
        %v994 = vrot.slane %v907, 5
        %v995 = vsel %vm734, %v993, %v994
        %v996 = vrot.slane %v994, 4
        %v997 = vrot.slane %v908, 5
        %v998 = vsel %vm734, %v996, %v997
        %v999 = vrot.slane %v997, 4
        %v1000 = vrot.slane %v909, 5
        %v1001 = vsel %vm734, %v999, %v1000
        %v1002 = vrot.slane %v1000, 4
        %v1003 = vrot.slane %v910, 5
        %v1004 = vsel %vm734, %v1002, %v1003
        %v1005 = vrot.slane %v1003, 4
        %v1006 = vrot.slane %v911, 5
        %v1007 = vsel %vm734, %v1005, %v1006
        %v1008 = vrot.slane %v1006, 4
        %v1009 = vrot.slane %v912, 5
        %v1010 = vsel %vm734, %v1008, %v1009
        %v1011 = vrot.slane %v1009, 4
        %v1012 = vrot.slane %v913, 5
        %v1013 = vsel %vm734, %v1011, %v1012
        %v1014 = vrot.slane %v1012, 4
        %v1015 = vrot.slane %v914, 5
        %v1016 = vsel %vm734, %v1014, %v1015
        %v1017 = vrot.slane %v1015, 4
        %v1018 = vrot.slane %v915, 5
        %v1019 = vsel %vm734, %v1017, %v1018
        %v1020 = vrot.slane %v1018, 4
        %v1021 = vrot.slane %v916, 5
        %v1022 = vsel %vm734, %v1020, %v1021
        %v1023 = vrot.slane %v1021, 4
        %v1024 = vrot.slane %v917, 5
        %v1025 = vsel %vm734, %v1023, %v1024
        %v1026 = vrot.slane %v1024, 4
        %v1027 = vrot.slane %v918, 5
        %v1028 = vsel %vm734, %v1026, %v1027
        %v1029 = vrot.slane %v1027, 4
        %v1030 = vrot.slane %v919, 5
        %v1031 = vsel %vm734, %v1029, %v1030
        %v1032 = vrot.slane %v1030, 4
        %v1033 = vrot.slane %v920, 5
        %v1034 = vsel %vm734, %v1032, %v1033
        %v1035 = vrot.slane %v1033, 4
        %v1036 = vrot.slane %v921, 5
        %v1037 = vsel %vm734, %v1035, %v1036
        %v1038 = vrot.slane %v1036, 4
        %v1039 = vrot.slane %v922, 5
        %v1040 = vsel %vm734, %v1038, %v1039
        %v1041 = vrot.slane %v1039, 4
        %v1042 = vrot.slane %v923, 5
        %v1043 = vsel %vm734, %v1041, %v1042
        %v1044 = vrot.slane %v1042, 4
        %v1045 = vrot.slane %v924, 5
        %v1046 = vsel %vm734, %v1044, %v1045
        %v1047 = vrot.slane %v1045, 4
        %v1048 = vrot.slane %v925, 5
        %v1049 = vsel %vm734, %v1047, %v1048
        %v1050 = vrot.slane %v1048, 4
        %v1051 = vrot.slane %v926, 5
        %v1052 = vsel %vm734, %v1050, %v1051
        %v1053 = vrot.slane %v1051, 4
        %v1054 = vrot.slane %v927, 5
        %v1055 = vsel %vm734, %v1053, %v1054
        %v1056 = vrot.slane %v1054, 4
        %v1057 = vrot.slane %v928, 5
        %v1058 = vsel %vm734, %v1056, %v1057
        %1091 = vst [vmem:[#allocation5 + $0xc] sm:$0xf] %v965
        %1092 = vst [vmem:[#allocation5 + $0x30] sm:$0xf] %v968
        %1093 = vst [vmem:[#allocation5 + $0x54] sm:$0xf] %v971
        %1094 = vst [vmem:[#allocation5 + $0x78] sm:$0xf] %v974
        %1095 = vst [vmem:[#allocation5 + $0x9c] sm:$0xf] %v977
        %1096 = vst [vmem:[#allocation5 + $0xc0] sm:$0xf] %v980
        %1097 = vst [vmem:[#allocation5 + $0xe4] sm:$0xf] %v983
        %1098 = vst [vmem:[#allocation5 + $0x108] sm:$0xf] %v986
        %1099 = vst [vmem:[#allocation5 + $0x12c] sm:$0xf] %v989
        %1100 = vst [vmem:[#allocation5 + $0x150] sm:$0xf] %v992
        %1101 = vst [vmem:[#allocation5 + $0x174] sm:$0xf] %v995
        %1102 = vst [vmem:[#allocation5 + $0x198] sm:$0xf] %v998
        %1103 = vst [vmem:[#allocation5 + $0x1bc] sm:$0xf] %v1001
        %1104 = vst [vmem:[#allocation5 + $0x1e0] sm:$0xf] %v1004
        %1105 = vst [vmem:[#allocation5 + $0x204] sm:$0xf] %v1007
        %1106 = vst [vmem:[#allocation5 + $0x228] sm:$0xf] %v1010
        %1107 = vst [vmem:[#allocation5 + $0x24c] sm:$0xf] %v1013
        %1108 = vst [vmem:[#allocation5 + $0x270] sm:$0xf] %v1016
        %1109 = vst [vmem:[#allocation5 + $0x294] sm:$0xf] %v1019
        %1110 = vst [vmem:[#allocation5 + $0x2b8] sm:$0xf] %v1022
        %1111 = vst [vmem:[#allocation5 + $0x2dc] sm:$0xf] %v1025
        %1112 = vst [vmem:[#allocation5 + $0x300] sm:$0xf] %v1028
        %1113 = vst [vmem:[#allocation5 + $0x324] sm:$0xf] %v1031
        %1114 = vst [vmem:[#allocation5 + $0x348] sm:$0xf] %v1034
        %1115 = vst [vmem:[#allocation5 + $0x36c] sm:$0xf] %v1037
        %1116 = vst [vmem:[#allocation5 + $0x390] sm:$0xf] %v1040
        %1117 = vst [vmem:[#allocation5 + $0x3b4] sm:$0xf] %v1043
        %1118 = vst [vmem:[#allocation5 + $0x3d8] sm:$0xf] %v1046
        %1119 = vst [vmem:[#allocation5 + $0x3fc] sm:$0xf] %v1049
        %1120 = vst [vmem:[#allocation5 + $0x420] sm:$0xf] %v1052
        %1121 = vst [vmem:[#allocation5 + $0x444] sm:$0xf] %v1055
        %1122 = vst [vmem:[#allocation5 + $0x468] sm:$0xf] %v1058
        %v1123 = vld [vmem:[%s146 + $0x8] sm:$0xe]
        %v1124 = vld [vmem:[%s146 + $0xc] sm:$0xf]
        %v1125 = vld [vmem:[%s146 + $0x10] sm:$0xf]
        %v1126 = vld [vmem:[%s146 + $0x14] sm:$0xf]
        %v1127 = vld [vmem:[%s146 + $0x18] sm:$0xf]
        %v1128 = vld [vmem:[%s146 + $0x1c] sm:$0xf]
        %v1129 = vld [vmem:[%s146 + $0x20] sm:$0xf]
        %v1130 = vld [vmem:[%s146 + $0x24] sm:$0xf]
        %v1131 = vld [vmem:[%s146 + $0x28] sm:$0xf]
        %v1132 = vld [vmem:[%s146 + $0x2c] sm:$0xf]
        %v1133 = vld [vmem:[%s146 + $0x30] sm:$0xf]
        %v1134 = vld [vmem:[%s146 + $0x34] sm:$0xf]
        %v1135 = vld [vmem:[%s146 + $0x38] sm:$0xf]
        %v1136 = vld [vmem:[%s146 + $0x3c] sm:$0xf]
        %v1137 = vld [vmem:[%s146 + $0x40] sm:$0xf]
        %v1138 = vld [vmem:[%s146 + $0x44] sm:$0xf]
        %v1139 = vld [vmem:[%s146 + $0x48] sm:$0xf]
        %v1140 = vld [vmem:[%s146 + $0x4c] sm:$0xf]
        %v1141 = vld [vmem:[%s146 + $0x50] sm:$0xf]
        %v1142 = vld [vmem:[%s146 + $0x54] sm:$0xf]
        %v1143 = vld [vmem:[%s146 + $0x58] sm:$0xf]
        %v1144 = vld [vmem:[%s146 + $0x5c] sm:$0xf]
        %v1145 = vld [vmem:[%s146 + $0x60] sm:$0xf]
        %v1146 = vld [vmem:[%s146 + $0x64] sm:$0xf]
        %v1147 = vld [vmem:[%s146 + $0x68] sm:$0xf]
        %v1148 = vld [vmem:[%s146 + $0x6c] sm:$0xf]
        %v1149 = vld [vmem:[%s146 + $0x70] sm:$0xf]
        %v1150 = vld [vmem:[%s146 + $0x74] sm:$0xf]
        %v1151 = vld [vmem:[%s146 + $0x78] sm:$0xf]
        %v1152 = vld [vmem:[%s146 + $0x7c] sm:$0xf]
        %v1153 = vld [vmem:[%s146 + $0x80] sm:$0xf]
        %v1154 = vld [vmem:[%s146 + $0x84] sm:$0xf]
        %v1155 = vld [vmem:[%s146 + $0x88] sm:$0x3]
        %vm1156 = vsmask.f32 2304
        %vm1157 = vsmask.f32 6416
        %vm1158 = vmor %vm1156, %vm1157
        %v1160 = vshrl.u32 %v1123, 16
        %v1162 = vrot.slane %v1160, 5
        %v1163 = vshll.u32 %v1123, 16
        %v1165 = vrot.slane %v1163, 6
        %v1166 = vor.u32 %v1162, %v1165
        %v1167 = vrot.slane %v1166, 4
        %v1169 = vshrl.u32 %v1124, 16
        %v1171 = vrot.slane %v1169, 5
        %v1172 = vshll.u32 %v1124, 16
        %v1174 = vrot.slane %v1172, 6
        %v1175 = vor.u32 %v1171, %v1174
        %v1176 = vsel %vm1158, %v1167, %v1175
        %v1177 = vrot.slane %v1175, 4
        %v1179 = vshrl.u32 %v1125, 16
        %v1181 = vrot.slane %v1179, 5
        %v1182 = vshll.u32 %v1125, 16
        %v1184 = vrot.slane %v1182, 6
        %v1185 = vor.u32 %v1181, %v1184
        %v1186 = vsel %vm1158, %v1177, %v1185
        %v1187 = vrot.slane %v1185, 4
        %v1189 = vshrl.u32 %v1126, 16
        %v1191 = vrot.slane %v1189, 5
        %v1192 = vshll.u32 %v1126, 16
        %v1194 = vrot.slane %v1192, 6
        %v1195 = vor.u32 %v1191, %v1194
        %v1196 = vsel %vm1158, %v1187, %v1195
        %v1197 = vrot.slane %v1195, 4
        %v1199 = vshrl.u32 %v1127, 16
        %v1201 = vrot.slane %v1199, 5
        %v1202 = vshll.u32 %v1127, 16
        %v1204 = vrot.slane %v1202, 6
        %v1205 = vor.u32 %v1201, %v1204
        %v1206 = vsel %vm1158, %v1197, %v1205
        %v1207 = vrot.slane %v1205, 4
        %v1209 = vshrl.u32 %v1128, 16
        %v1211 = vrot.slane %v1209, 5
        %v1212 = vshll.u32 %v1128, 16
        %v1214 = vrot.slane %v1212, 6
        %v1215 = vor.u32 %v1211, %v1214
        %v1216 = vsel %vm1158, %v1207, %v1215
        %v1217 = vrot.slane %v1215, 4
        %v1219 = vshrl.u32 %v1129, 16
        %v1221 = vrot.slane %v1219, 5
        %v1222 = vshll.u32 %v1129, 16
        %v1224 = vrot.slane %v1222, 6
        %v1225 = vor.u32 %v1221, %v1224
        %v1226 = vsel %vm1158, %v1217, %v1225
        %v1227 = vrot.slane %v1225, 4
        %v1229 = vshrl.u32 %v1130, 16
        %v1231 = vrot.slane %v1229, 5
        %v1232 = vshll.u32 %v1130, 16
        %v1234 = vrot.slane %v1232, 6
        %v1235 = vor.u32 %v1231, %v1234
        %v1236 = vsel %vm1158, %v1227, %v1235
        %v1237 = vrot.slane %v1235, 4
        %v1239 = vshrl.u32 %v1131, 16
        %v1241 = vrot.slane %v1239, 5
        %v1242 = vshll.u32 %v1131, 16
        %v1244 = vrot.slane %v1242, 6
        %v1245 = vor.u32 %v1241, %v1244
        %v1246 = vsel %vm1158, %v1237, %v1245
        %v1247 = vrot.slane %v1245, 4
        %v1249 = vshrl.u32 %v1132, 16
        %v1251 = vrot.slane %v1249, 5
        %v1252 = vshll.u32 %v1132, 16
        %v1254 = vrot.slane %v1252, 6
        %v1255 = vor.u32 %v1251, %v1254
        %v1256 = vsel %vm1158, %v1247, %v1255
        %v1257 = vrot.slane %v1255, 4
        %v1259 = vshrl.u32 %v1133, 16
        %v1261 = vrot.slane %v1259, 5
        %v1262 = vshll.u32 %v1133, 16
        %v1264 = vrot.slane %v1262, 6
        %v1265 = vor.u32 %v1261, %v1264
        %v1266 = vsel %vm1158, %v1257, %v1265
        %v1267 = vrot.slane %v1265, 4
        %v1269 = vshrl.u32 %v1134, 16
        %v1271 = vrot.slane %v1269, 5
        %v1272 = vshll.u32 %v1134, 16
        %v1274 = vrot.slane %v1272, 6
        %v1275 = vor.u32 %v1271, %v1274
        %v1276 = vsel %vm1158, %v1267, %v1275
        %v1277 = vrot.slane %v1275, 4
        %v1279 = vshrl.u32 %v1135, 16
        %v1281 = vrot.slane %v1279, 5
        %v1282 = vshll.u32 %v1135, 16
        %v1284 = vrot.slane %v1282, 6
        %v1285 = vor.u32 %v1281, %v1284
        %v1286 = vsel %vm1158, %v1277, %v1285
        %v1287 = vrot.slane %v1285, 4
        %v1289 = vshrl.u32 %v1136, 16
        %v1291 = vrot.slane %v1289, 5
        %v1292 = vshll.u32 %v1136, 16
        %v1294 = vrot.slane %v1292, 6
        %v1295 = vor.u32 %v1291, %v1294
        %v1296 = vsel %vm1158, %v1287, %v1295
        %v1297 = vrot.slane %v1295, 4
        %v1299 = vshrl.u32 %v1137, 16
        %v1301 = vrot.slane %v1299, 5
        %v1302 = vshll.u32 %v1137, 16
        %v1304 = vrot.slane %v1302, 6
        %v1305 = vor.u32 %v1301, %v1304
        %v1306 = vsel %vm1158, %v1297, %v1305
        %v1307 = vrot.slane %v1305, 4
        %v1309 = vshrl.u32 %v1138, 16
        %v1311 = vrot.slane %v1309, 5
        %v1312 = vshll.u32 %v1138, 16
        %v1314 = vrot.slane %v1312, 6
        %v1315 = vor.u32 %v1311, %v1314
        %v1316 = vsel %vm1158, %v1307, %v1315
        %v1317 = vrot.slane %v1315, 4
        %v1319 = vshrl.u32 %v1139, 16
        %v1321 = vrot.slane %v1319, 5
        %v1322 = vshll.u32 %v1139, 16
        %v1324 = vrot.slane %v1322, 6
        %v1325 = vor.u32 %v1321, %v1324
        %v1326 = vsel %vm1158, %v1317, %v1325
        %v1327 = vrot.slane %v1325, 4
        %v1329 = vshrl.u32 %v1140, 16
        %v1331 = vrot.slane %v1329, 5
        %v1332 = vshll.u32 %v1140, 16
        %v1334 = vrot.slane %v1332, 6
        %v1335 = vor.u32 %v1331, %v1334
        %v1336 = vsel %vm1158, %v1327, %v1335
        %v1337 = vrot.slane %v1335, 4
        %v1339 = vshrl.u32 %v1141, 16
        %v1341 = vrot.slane %v1339, 5
        %v1342 = vshll.u32 %v1141, 16
        %v1344 = vrot.slane %v1342, 6
        %v1345 = vor.u32 %v1341, %v1344
        %v1346 = vsel %vm1158, %v1337, %v1345
        %v1347 = vrot.slane %v1345, 4
        %v1349 = vshrl.u32 %v1142, 16
        %v1351 = vrot.slane %v1349, 5
        %v1352 = vshll.u32 %v1142, 16
        %v1354 = vrot.slane %v1352, 6
        %v1355 = vor.u32 %v1351, %v1354
        %v1356 = vsel %vm1158, %v1347, %v1355
        %v1357 = vrot.slane %v1355, 4
        %v1359 = vshrl.u32 %v1143, 16
        %v1361 = vrot.slane %v1359, 5
        %v1362 = vshll.u32 %v1143, 16
        %v1364 = vrot.slane %v1362, 6
        %v1365 = vor.u32 %v1361, %v1364
        %v1366 = vsel %vm1158, %v1357, %v1365
        %v1367 = vrot.slane %v1365, 4
        %v1369 = vshrl.u32 %v1144, 16
        %v1371 = vrot.slane %v1369, 5
        %v1372 = vshll.u32 %v1144, 16
        %v1374 = vrot.slane %v1372, 6
        %v1375 = vor.u32 %v1371, %v1374
        %v1376 = vsel %vm1158, %v1367, %v1375
        %v1377 = vrot.slane %v1375, 4
        %v1379 = vshrl.u32 %v1145, 16
        %v1381 = vrot.slane %v1379, 5
        %v1382 = vshll.u32 %v1145, 16
        %v1384 = vrot.slane %v1382, 6
        %v1385 = vor.u32 %v1381, %v1384
        %v1386 = vsel %vm1158, %v1377, %v1385
        %v1387 = vrot.slane %v1385, 4
        %v1389 = vshrl.u32 %v1146, 16
        %v1391 = vrot.slane %v1389, 5
        %v1392 = vshll.u32 %v1146, 16
        %v1394 = vrot.slane %v1392, 6
        %v1395 = vor.u32 %v1391, %v1394
        %v1396 = vsel %vm1158, %v1387, %v1395
        %v1397 = vrot.slane %v1395, 4
        %v1399 = vshrl.u32 %v1147, 16
        %v1401 = vrot.slane %v1399, 5
        %v1402 = vshll.u32 %v1147, 16
        %v1404 = vrot.slane %v1402, 6
        %v1405 = vor.u32 %v1401, %v1404
        %v1406 = vsel %vm1158, %v1397, %v1405
        %v1407 = vrot.slane %v1405, 4
        %v1409 = vshrl.u32 %v1148, 16
        %v1411 = vrot.slane %v1409, 5
        %v1412 = vshll.u32 %v1148, 16
        %v1414 = vrot.slane %v1412, 6
        %v1415 = vor.u32 %v1411, %v1414
        %v1416 = vsel %vm1158, %v1407, %v1415
        %v1417 = vrot.slane %v1415, 4
        %v1419 = vshrl.u32 %v1149, 16
        %v1421 = vrot.slane %v1419, 5
        %v1422 = vshll.u32 %v1149, 16
        %v1424 = vrot.slane %v1422, 6
        %v1425 = vor.u32 %v1421, %v1424
        %v1426 = vsel %vm1158, %v1417, %v1425
        %v1427 = vrot.slane %v1425, 4
        %v1429 = vshrl.u32 %v1150, 16
        %v1431 = vrot.slane %v1429, 5
        %v1432 = vshll.u32 %v1150, 16
        %v1434 = vrot.slane %v1432, 6
        %v1435 = vor.u32 %v1431, %v1434
        %v1436 = vsel %vm1158, %v1427, %v1435
        %v1437 = vrot.slane %v1435, 4
        %v1439 = vshrl.u32 %v1151, 16
        %v1441 = vrot.slane %v1439, 5
        %v1442 = vshll.u32 %v1151, 16
        %v1444 = vrot.slane %v1442, 6
        %v1445 = vor.u32 %v1441, %v1444
        %v1446 = vsel %vm1158, %v1437, %v1445
        %v1447 = vrot.slane %v1445, 4
        %v1449 = vshrl.u32 %v1152, 16
        %v1451 = vrot.slane %v1449, 5
        %v1452 = vshll.u32 %v1152, 16
        %v1454 = vrot.slane %v1452, 6
        %v1455 = vor.u32 %v1451, %v1454
        %v1456 = vsel %vm1158, %v1447, %v1455
        %v1457 = vrot.slane %v1455, 4
        %v1459 = vshrl.u32 %v1153, 16
        %v1461 = vrot.slane %v1459, 5
        %v1462 = vshll.u32 %v1153, 16
        %v1464 = vrot.slane %v1462, 6
        %v1465 = vor.u32 %v1461, %v1464
        %v1466 = vsel %vm1158, %v1457, %v1465
        %v1467 = vrot.slane %v1465, 4
        %v1469 = vshrl.u32 %v1154, 16
        %v1471 = vrot.slane %v1469, 5
        %v1472 = vshll.u32 %v1154, 16
        %v1474 = vrot.slane %v1472, 6
        %v1475 = vor.u32 %v1471, %v1474
        %v1476 = vsel %vm1158, %v1467, %v1475
        %v1477 = vrot.slane %v1475, 4
        %v1479 = vshrl.u32 %v1155, 16
        %v1481 = vrot.slane %v1479, 5
        %v1482 = vshll.u32 %v1155, 16
        %v1484 = vrot.slane %v1482, 6
        %v1485 = vor.u32 %v1481, %v1484
        %v1486 = vsel %vm1158, %v1477, %v1485
        %1519 = vst [vmem:[#allocation5 + $0x10] sm:$0xf] %v1176
        %1520 = vst [vmem:[#allocation5 + $0x34] sm:$0xf] %v1186
        %1521 = vst [vmem:[#allocation5 + $0x58] sm:$0xf] %v1196
        %1522 = vst [vmem:[#allocation5 + $0x7c] sm:$0xf] %v1206
        %1523 = vst [vmem:[#allocation5 + $0xa0] sm:$0xf] %v1216
        %1524 = vst [vmem:[#allocation5 + $0xc4] sm:$0xf] %v1226
        %1525 = vst [vmem:[#allocation5 + $0xe8] sm:$0xf] %v1236
        %1526 = vst [vmem:[#allocation5 + $0x10c] sm:$0xf] %v1246
        %1527 = vst [vmem:[#allocation5 + $0x130] sm:$0xf] %v1256
        %1528 = vst [vmem:[#allocation5 + $0x154] sm:$0xf] %v1266
        %1529 = vst [vmem:[#allocation5 + $0x178] sm:$0xf] %v1276
        %1530 = vst [vmem:[#allocation5 + $0x19c] sm:$0xf] %v1286
        %1531 = vst [vmem:[#allocation5 + $0x1c0] sm:$0xf] %v1296
        %1532 = vst [vmem:[#allocation5 + $0x1e4] sm:$0xf] %v1306
        %1533 = vst [vmem:[#allocation5 + $0x208] sm:$0xf] %v1316
        %1534 = vst [vmem:[#allocation5 + $0x22c] sm:$0xf] %v1326
        %1535 = vst [vmem:[#allocation5 + $0x250] sm:$0xf] %v1336
        %1536 = vst [vmem:[#allocation5 + $0x274] sm:$0xf] %v1346
        %1537 = vst [vmem:[#allocation5 + $0x298] sm:$0xf] %v1356
        %1538 = vst [vmem:[#allocation5 + $0x2bc] sm:$0xf] %v1366
        %1539 = vst [vmem:[#allocation5 + $0x2e0] sm:$0xf] %v1376
        %1540 = vst [vmem:[#allocation5 + $0x304] sm:$0xf] %v1386
        %1541 = vst [vmem:[#allocation5 + $0x328] sm:$0xf] %v1396
        %1542 = vst [vmem:[#allocation5 + $0x34c] sm:$0xf] %v1406
        %1543 = vst [vmem:[#allocation5 + $0x370] sm:$0xf] %v1416
        %1544 = vst [vmem:[#allocation5 + $0x394] sm:$0xf] %v1426
        %1545 = vst [vmem:[#allocation5 + $0x3b8] sm:$0xf] %v1436
        %1546 = vst [vmem:[#allocation5 + $0x3dc] sm:$0xf] %v1446
        %1547 = vst [vmem:[#allocation5 + $0x400] sm:$0xf] %v1456
        %1548 = vst [vmem:[#allocation5 + $0x424] sm:$0xf] %v1466
        %1549 = vst [vmem:[#allocation5 + $0x448] sm:$0xf] %v1476
        %1550 = vst [vmem:[#allocation5 + $0x46c] sm:$0xf] %v1486
        %v1551 = vld [vmem:[%s146 + $0x8] sm:$0xc]
        %v1552 = vld [vmem:[%s146 + $0xc] sm:$0xf]
        %v1553 = vld [vmem:[%s146 + $0x10] sm:$0xf]
        %v1554 = vld [vmem:[%s146 + $0x14] sm:$0xf]
        %v1555 = vld [vmem:[%s146 + $0x18] sm:$0xf]
        %v1556 = vld [vmem:[%s146 + $0x1c] sm:$0xf]
        %v1557 = vld [vmem:[%s146 + $0x20] sm:$0xf]
        %v1558 = vld [vmem:[%s146 + $0x24] sm:$0xf]
        %v1559 = vld [vmem:[%s146 + $0x28] sm:$0xf]
        %v1560 = vld [vmem:[%s146 + $0x2c] sm:$0xf]
        %v1561 = vld [vmem:[%s146 + $0x30] sm:$0xf]
        %v1562 = vld [vmem:[%s146 + $0x34] sm:$0xf]
        %v1563 = vld [vmem:[%s146 + $0x38] sm:$0xf]
        %v1564 = vld [vmem:[%s146 + $0x3c] sm:$0xf]
        %v1565 = vld [vmem:[%s146 + $0x40] sm:$0xf]
        %v1566 = vld [vmem:[%s146 + $0x44] sm:$0xf]
        %v1567 = vld [vmem:[%s146 + $0x48] sm:$0xf]
        %v1568 = vld [vmem:[%s146 + $0x4c] sm:$0xf]
        %v1569 = vld [vmem:[%s146 + $0x50] sm:$0xf]
        %v1570 = vld [vmem:[%s146 + $0x54] sm:$0xf]
        %v1571 = vld [vmem:[%s146 + $0x58] sm:$0xf]
        %v1572 = vld [vmem:[%s146 + $0x5c] sm:$0xf]
        %v1573 = vld [vmem:[%s146 + $0x60] sm:$0xf]
        %v1574 = vld [vmem:[%s146 + $0x64] sm:$0xf]
        %v1575 = vld [vmem:[%s146 + $0x68] sm:$0xf]
        %v1576 = vld [vmem:[%s146 + $0x6c] sm:$0xf]
        %v1577 = vld [vmem:[%s146 + $0x70] sm:$0xf]
        %v1578 = vld [vmem:[%s146 + $0x74] sm:$0xf]
        %v1579 = vld [vmem:[%s146 + $0x78] sm:$0xf]
        %v1580 = vld [vmem:[%s146 + $0x7c] sm:$0xf]
        %v1581 = vld [vmem:[%s146 + $0x80] sm:$0xf]
        %v1582 = vld [vmem:[%s146 + $0x84] sm:$0xf]
        %v1583 = vld [vmem:[%s146 + $0x88] sm:$0x3]
        %vm1617 = vcmask 1041408
        %vm1618 = vcmask 1045508
        %vm1619 = vmor %vm1617, %vm1618
        %v1620 = vrot.slane %v1551, 6
        %v1621 = vrot.slane %v1620, 4
        %v1622 = vrot.slane %v1552, 6
        %v1623 = vsel %vm1619, %v1621, %v1622
        %v1624 = vrot.slane %v1622, 4
        %v1625 = vrot.slane %v1553, 6
        %v1626 = vsel %vm1619, %v1624, %v1625
        %v1627 = vrot.slane %v1625, 4
        %v1628 = vrot.slane %v1554, 6
        %v1629 = vsel %vm1619, %v1627, %v1628
        %v1630 = vrot.slane %v1628, 4
        %v1631 = vrot.slane %v1555, 6
        %v1632 = vsel %vm1619, %v1630, %v1631
        %v1633 = vrot.slane %v1631, 4
        %v1634 = vrot.slane %v1556, 6
        %v1635 = vsel %vm1619, %v1633, %v1634
        %v1636 = vrot.slane %v1634, 4
        %v1637 = vrot.slane %v1557, 6
        %v1638 = vsel %vm1619, %v1636, %v1637
        %v1639 = vrot.slane %v1637, 4
        %v1640 = vrot.slane %v1558, 6
        %v1641 = vsel %vm1619, %v1639, %v1640
        %v1642 = vrot.slane %v1640, 4
        %v1643 = vrot.slane %v1559, 6
        %v1644 = vsel %vm1619, %v1642, %v1643
        %v1645 = vrot.slane %v1643, 4
        %v1646 = vrot.slane %v1560, 6
        %v1647 = vsel %vm1619, %v1645, %v1646
        %v1648 = vrot.slane %v1646, 4
        %v1649 = vrot.slane %v1561, 6
        %v1650 = vsel %vm1619, %v1648, %v1649
        %v1651 = vrot.slane %v1649, 4
        %v1652 = vrot.slane %v1562, 6
        %v1653 = vsel %vm1619, %v1651, %v1652
        %v1654 = vrot.slane %v1652, 4
        %v1655 = vrot.slane %v1563, 6
        %v1656 = vsel %vm1619, %v1654, %v1655
        %v1657 = vrot.slane %v1655, 4
        %v1658 = vrot.slane %v1564, 6
        %v1659 = vsel %vm1619, %v1657, %v1658
        %v1660 = vrot.slane %v1658, 4
        %v1661 = vrot.slane %v1565, 6
        %v1662 = vsel %vm1619, %v1660, %v1661
        %v1663 = vrot.slane %v1661, 4
        %v1664 = vrot.slane %v1566, 6
        %v1665 = vsel %vm1619, %v1663, %v1664
        %v1666 = vrot.slane %v1664, 4
        %v1667 = vrot.slane %v1567, 6
        %v1668 = vsel %vm1619, %v1666, %v1667
        %v1669 = vrot.slane %v1667, 4
        %v1670 = vrot.slane %v1568, 6
        %v1671 = vsel %vm1619, %v1669, %v1670
        %v1672 = vrot.slane %v1670, 4
        %v1673 = vrot.slane %v1569, 6
        %v1674 = vsel %vm1619, %v1672, %v1673
        %v1675 = vrot.slane %v1673, 4
        %v1676 = vrot.slane %v1570, 6
        %v1677 = vsel %vm1619, %v1675, %v1676
        %v1678 = vrot.slane %v1676, 4
        %v1679 = vrot.slane %v1571, 6
        %v1680 = vsel %vm1619, %v1678, %v1679
        %v1681 = vrot.slane %v1679, 4
        %v1682 = vrot.slane %v1572, 6
        %v1683 = vsel %vm1619, %v1681, %v1682
        %v1684 = vrot.slane %v1682, 4
        %v1685 = vrot.slane %v1573, 6
        %v1686 = vsel %vm1619, %v1684, %v1685
        %v1687 = vrot.slane %v1685, 4
        %v1688 = vrot.slane %v1574, 6
        %v1689 = vsel %vm1619, %v1687, %v1688
        %v1690 = vrot.slane %v1688, 4
        %v1691 = vrot.slane %v1575, 6
        %v1692 = vsel %vm1619, %v1690, %v1691
        %v1693 = vrot.slane %v1691, 4
        %v1694 = vrot.slane %v1576, 6
        %v1695 = vsel %vm1619, %v1693, %v1694
        %v1696 = vrot.slane %v1694, 4
        %v1697 = vrot.slane %v1577, 6
        %v1698 = vsel %vm1619, %v1696, %v1697
        %v1699 = vrot.slane %v1697, 4
        %v1700 = vrot.slane %v1578, 6
        %v1701 = vsel %vm1619, %v1699, %v1700
        %v1702 = vrot.slane %v1700, 4
        %v1703 = vrot.slane %v1579, 6
        %v1704 = vsel %vm1619, %v1702, %v1703
        %v1705 = vrot.slane %v1703, 4
        %v1706 = vrot.slane %v1580, 6
        %v1707 = vsel %vm1619, %v1705, %v1706
        %v1708 = vrot.slane %v1706, 4
        %v1709 = vrot.slane %v1581, 6
        %v1710 = vsel %vm1619, %v1708, %v1709
        %v1711 = vrot.slane %v1709, 4
        %v1712 = vrot.slane %v1582, 6
        %v1713 = vsel %vm1619, %v1711, %v1712
        %v1714 = vrot.slane %v1712, 4
        %v1715 = vrot.slane %v1583, 6
        %v1716 = vsel %vm1619, %v1714, %v1715
        %1749 = vst [vmem:[#allocation5 + $0x14] sm:$0xf] %v1623
        %1750 = vst [vmem:[#allocation5 + $0x38] sm:$0xf] %v1626
        %1751 = vst [vmem:[#allocation5 + $0x5c] sm:$0xf] %v1629
        %1752 = vst [vmem:[#allocation5 + $0x80] sm:$0xf] %v1632
        %1753 = vst [vmem:[#allocation5 + $0xa4] sm:$0xf] %v1635
        %1754 = vst [vmem:[#allocation5 + $0xc8] sm:$0xf] %v1638
        %1755 = vst [vmem:[#allocation5 + $0xec] sm:$0xf] %v1641
        %1756 = vst [vmem:[#allocation5 + $0x110] sm:$0xf] %v1644
        %1757 = vst [vmem:[#allocation5 + $0x134] sm:$0xf] %v1647
        %1758 = vst [vmem:[#allocation5 + $0x158] sm:$0xf] %v1650
        %1759 = vst [vmem:[#allocation5 + $0x17c] sm:$0xf] %v1653
        %1760 = vst [vmem:[#allocation5 + $0x1a0] sm:$0xf] %v1656
        %1761 = vst [vmem:[#allocation5 + $0x1c4] sm:$0xf] %v1659
        %1762 = vst [vmem:[#allocation5 + $0x1e8] sm:$0xf] %v1662
        %1763 = vst [vmem:[#allocation5 + $0x20c] sm:$0xf] %v1665
        %1764 = vst [vmem:[#allocation5 + $0x230] sm:$0xf] %v1668
        %1765 = vst [vmem:[#allocation5 + $0x254] sm:$0xf] %v1671
        %1766 = vst [vmem:[#allocation5 + $0x278] sm:$0xf] %v1674
        %1767 = vst [vmem:[#allocation5 + $0x29c] sm:$0xf] %v1677
        %1768 = vst [vmem:[#allocation5 + $0x2c0] sm:$0xf] %v1680
        %1769 = vst [vmem:[#allocation5 + $0x2e4] sm:$0xf] %v1683
        %1770 = vst [vmem:[#allocation5 + $0x308] sm:$0xf] %v1686
        %1771 = vst [vmem:[#allocation5 + $0x32c] sm:$0xf] %v1689
        %1772 = vst [vmem:[#allocation5 + $0x350] sm:$0xf] %v1692
        %1773 = vst [vmem:[#allocation5 + $0x374] sm:$0xf] %v1695
        %1774 = vst [vmem:[#allocation5 + $0x398] sm:$0xf] %v1698
        %1775 = vst [vmem:[#allocation5 + $0x3bc] sm:$0xf] %v1701
        %1776 = vst [vmem:[#allocation5 + $0x3e0] sm:$0xf] %v1704
        %1777 = vst [vmem:[#allocation5 + $0x404] sm:$0xf] %v1707
        %1778 = vst [vmem:[#allocation5 + $0x428] sm:$0xf] %v1710
        %1779 = vst [vmem:[#allocation5 + $0x44c] sm:$0xf] %v1713
        %1780 = vst [vmem:[#allocation5 + $0x470] sm:$0xf] %v1716
        %v1781 = vld [vmem:[%s146 + $0x10] sm:$0xc]
        %v1782 = vld [vmem:[%s146 + $0x14] sm:$0xf]
        %v1783 = vld [vmem:[%s146 + $0x18] sm:$0xf]
        %v1784 = vld [vmem:[%s146 + $0x1c] sm:$0xf]
        %v1785 = vld [vmem:[%s146 + $0x20] sm:$0xf]
        %v1786 = vld [vmem:[%s146 + $0x24] sm:$0xf]
        %v1787 = vld [vmem:[%s146 + $0x28] sm:$0xf]
        %v1788 = vld [vmem:[%s146 + $0x2c] sm:$0xf]
        %v1789 = vld [vmem:[%s146 + $0x30] sm:$0xf]
        %v1790 = vld [vmem:[%s146 + $0x34] sm:$0xf]
        %v1791 = vld [vmem:[%s146 + $0x38] sm:$0xf]
        %v1792 = vld [vmem:[%s146 + $0x3c] sm:$0xf]
        %v1793 = vld [vmem:[%s146 + $0x40] sm:$0xf]
        %v1794 = vld [vmem:[%s146 + $0x44] sm:$0xf]
        %v1795 = vld [vmem:[%s146 + $0x48] sm:$0xf]
        %v1796 = vld [vmem:[%s146 + $0x4c] sm:$0xf]
        %v1797 = vld [vmem:[%s146 + $0x50] sm:$0xf]
        %v1798 = vld [vmem:[%s146 + $0x54] sm:$0xf]
        %v1799 = vld [vmem:[%s146 + $0x58] sm:$0xf]
        %v1800 = vld [vmem:[%s146 + $0x5c] sm:$0xf]
        %v1801 = vld [vmem:[%s146 + $0x60] sm:$0xf]
        %v1802 = vld [vmem:[%s146 + $0x64] sm:$0xf]
        %v1803 = vld [vmem:[%s146 + $0x68] sm:$0xf]
        %v1804 = vld [vmem:[%s146 + $0x6c] sm:$0xf]
        %v1805 = vld [vmem:[%s146 + $0x70] sm:$0xf]
        %v1806 = vld [vmem:[%s146 + $0x74] sm:$0xf]
        %v1807 = vld [vmem:[%s146 + $0x78] sm:$0xf]
        %v1808 = vld [vmem:[%s146 + $0x7c] sm:$0xf]
        %v1809 = vld [vmem:[%s146 + $0x80] sm:$0xf]
        %v1810 = vld [vmem:[%s146 + $0x84] sm:$0xf]
        %v1811 = vld [vmem:[%s146 + $0x88] sm:$0xf]
        %v1812 = vld [vmem:[%s146 + $0x8c] sm:$0xf]
        %v1813 = vld [vmem:[%s146 + $0x90] sm:$0x3]
        %v1847 = vrot.slane %v1781, 6
        %v1848 = vrot.slane %v1847, 4
        %v1849 = vrot.slane %v1782, 6
        %v1850 = vsel %vm1619, %v1848, %v1849
        %v1851 = vrot.slane %v1849, 4
        %v1852 = vrot.slane %v1783, 6
        %v1853 = vsel %vm1619, %v1851, %v1852
        %v1854 = vrot.slane %v1852, 4
        %v1855 = vrot.slane %v1784, 6
        %v1856 = vsel %vm1619, %v1854, %v1855
        %v1857 = vrot.slane %v1855, 4
        %v1858 = vrot.slane %v1785, 6
        %v1859 = vsel %vm1619, %v1857, %v1858
        %v1860 = vrot.slane %v1858, 4
        %v1861 = vrot.slane %v1786, 6
        %v1862 = vsel %vm1619, %v1860, %v1861
        %v1863 = vrot.slane %v1861, 4
        %v1864 = vrot.slane %v1787, 6
        %v1865 = vsel %vm1619, %v1863, %v1864
        %v1866 = vrot.slane %v1864, 4
        %v1867 = vrot.slane %v1788, 6
        %v1868 = vsel %vm1619, %v1866, %v1867
        %v1869 = vrot.slane %v1867, 4
        %v1870 = vrot.slane %v1789, 6
        %v1871 = vsel %vm1619, %v1869, %v1870
        %v1872 = vrot.slane %v1870, 4
        %v1873 = vrot.slane %v1790, 6
        %v1874 = vsel %vm1619, %v1872, %v1873
        %v1875 = vrot.slane %v1873, 4
        %v1876 = vrot.slane %v1791, 6
        %v1877 = vsel %vm1619, %v1875, %v1876
        %v1878 = vrot.slane %v1876, 4
        %v1879 = vrot.slane %v1792, 6
        %v1880 = vsel %vm1619, %v1878, %v1879
        %v1881 = vrot.slane %v1879, 4
        %v1882 = vrot.slane %v1793, 6
        %v1883 = vsel %vm1619, %v1881, %v1882
        %v1884 = vrot.slane %v1882, 4
        %v1885 = vrot.slane %v1794, 6
        %v1886 = vsel %vm1619, %v1884, %v1885
        %v1887 = vrot.slane %v1885, 4
        %v1888 = vrot.slane %v1795, 6
        %v1889 = vsel %vm1619, %v1887, %v1888
        %v1890 = vrot.slane %v1888, 4
        %v1891 = vrot.slane %v1796, 6
        %v1892 = vsel %vm1619, %v1890, %v1891
        %v1893 = vrot.slane %v1891, 4
        %v1894 = vrot.slane %v1797, 6
        %v1895 = vsel %vm1619, %v1893, %v1894
        %v1896 = vrot.slane %v1894, 4
        %v1897 = vrot.slane %v1798, 6
        %v1898 = vsel %vm1619, %v1896, %v1897
        %v1899 = vrot.slane %v1897, 4
        %v1900 = vrot.slane %v1799, 6
        %v1901 = vsel %vm1619, %v1899, %v1900
        %v1902 = vrot.slane %v1900, 4
        %v1903 = vrot.slane %v1800, 6
        %v1904 = vsel %vm1619, %v1902, %v1903
        %v1905 = vrot.slane %v1903, 4
        %v1906 = vrot.slane %v1801, 6
        %v1907 = vsel %vm1619, %v1905, %v1906
        %v1908 = vrot.slane %v1906, 4
        %v1909 = vrot.slane %v1802, 6
        %v1910 = vsel %vm1619, %v1908, %v1909
        %v1911 = vrot.slane %v1909, 4
        %v1912 = vrot.slane %v1803, 6
        %v1913 = vsel %vm1619, %v1911, %v1912
        %v1914 = vrot.slane %v1912, 4
        %v1915 = vrot.slane %v1804, 6
        %v1916 = vsel %vm1619, %v1914, %v1915
        %v1917 = vrot.slane %v1915, 4
        %v1918 = vrot.slane %v1805, 6
        %v1919 = vsel %vm1619, %v1917, %v1918
        %v1920 = vrot.slane %v1918, 4
        %v1921 = vrot.slane %v1806, 6
        %v1922 = vsel %vm1619, %v1920, %v1921
        %v1923 = vrot.slane %v1921, 4
        %v1924 = vrot.slane %v1807, 6
        %v1925 = vsel %vm1619, %v1923, %v1924
        %v1926 = vrot.slane %v1924, 4
        %v1927 = vrot.slane %v1808, 6
        %v1928 = vsel %vm1619, %v1926, %v1927
        %v1929 = vrot.slane %v1927, 4
        %v1930 = vrot.slane %v1809, 6
        %v1931 = vsel %vm1619, %v1929, %v1930
        %v1932 = vrot.slane %v1930, 4
        %v1933 = vrot.slane %v1810, 6
        %v1934 = vsel %vm1619, %v1932, %v1933
        %v1935 = vrot.slane %v1933, 4
        %v1936 = vrot.slane %v1811, 6
        %v1937 = vsel %vm1619, %v1935, %v1936
        %v1938 = vrot.slane %v1936, 4
        %v1939 = vrot.slane %v1812, 6
        %v1940 = vsel %vm1619, %v1938, %v1939
        %v1941 = vrot.slane %v1939, 4
        %v1942 = vrot.slane %v1813, 6
        %v1943 = vsel %vm1619, %v1941, %v1942
        %1976 = vst [vmem:[#allocation5 + $0x18] sm:$0xf] %v1850
        %1977 = vst [vmem:[#allocation5 + $0x3c] sm:$0xf] %v1853
        %1978 = vst [vmem:[#allocation5 + $0x60] sm:$0xf] %v1856
        %1979 = vst [vmem:[#allocation5 + $0x84] sm:$0xf] %v1859
        %1980 = vst [vmem:[#allocation5 + $0xa8] sm:$0xf] %v1862
        %1981 = vst [vmem:[#allocation5 + $0xcc] sm:$0xf] %v1865
        %1982 = vst [vmem:[#allocation5 + $0xf0] sm:$0xf] %v1868
        %1983 = vst [vmem:[#allocation5 + $0x114] sm:$0xf] %v1871
        %1984 = vst [vmem:[#allocation5 + $0x138] sm:$0xf] %v1874
        %1985 = vst [vmem:[#allocation5 + $0x15c] sm:$0xf] %v1877
        %1986 = vst [vmem:[#allocation5 + $0x180] sm:$0xf] %v1880
        %1987 = vst [vmem:[#allocation5 + $0x1a4] sm:$0xf] %v1883
        %1988 = vst [vmem:[#allocation5 + $0x1c8] sm:$0xf] %v1886
        %1989 = vst [vmem:[#allocation5 + $0x1ec] sm:$0xf] %v1889
        %1990 = vst [vmem:[#allocation5 + $0x210] sm:$0xf] %v1892
        %1991 = vst [vmem:[#allocation5 + $0x234] sm:$0xf] %v1895
        %1992 = vst [vmem:[#allocation5 + $0x258] sm:$0xf] %v1898
        %1993 = vst [vmem:[#allocation5 + $0x27c] sm:$0xf] %v1901
        %1994 = vst [vmem:[#allocation5 + $0x2a0] sm:$0xf] %v1904
        %1995 = vst [vmem:[#allocation5 + $0x2c4] sm:$0xf] %v1907
        %1996 = vst [vmem:[#allocation5 + $0x2e8] sm:$0xf] %v1910
        %1997 = vst [vmem:[#allocation5 + $0x30c] sm:$0xf] %v1913
        %1998 = vst [vmem:[#allocation5 + $0x330] sm:$0xf] %v1916
        %1999 = vst [vmem:[#allocation5 + $0x354] sm:$0xf] %v1919
        %2000 = vst [vmem:[#allocation5 + $0x378] sm:$0xf] %v1922
        %2001 = vst [vmem:[#allocation5 + $0x39c] sm:$0xf] %v1925
        %2002 = vst [vmem:[#allocation5 + $0x3c0] sm:$0xf] %v1928
        %2003 = vst [vmem:[#allocation5 + $0x3e4] sm:$0xf] %v1931
        %2004 = vst [vmem:[#allocation5 + $0x408] sm:$0xf] %v1934
        %2005 = vst [vmem:[#allocation5 + $0x42c] sm:$0xf] %v1937
        %2006 = vst [vmem:[#allocation5 + $0x450] sm:$0xf] %v1940
        %2007 = vst [vmem:[#allocation5 + $0x474] sm:$0xf] %v1943
        %v2008 = vld [vmem:[%s146 + $0x10] sm:$0xc]
        %v2009 = vld [vmem:[%s146 + $0x14] sm:$0xf]
        %v2010 = vld [vmem:[%s146 + $0x18] sm:$0xf]
        %v2011 = vld [vmem:[%s146 + $0x1c] sm:$0xf]
        %v2012 = vld [vmem:[%s146 + $0x20] sm:$0xf]
        %v2013 = vld [vmem:[%s146 + $0x24] sm:$0xf]
        %v2014 = vld [vmem:[%s146 + $0x28] sm:$0xf]
        %v2015 = vld [vmem:[%s146 + $0x2c] sm:$0xf]
        %v2016 = vld [vmem:[%s146 + $0x30] sm:$0xf]
        %v2017 = vld [vmem:[%s146 + $0x34] sm:$0xf]
        %v2018 = vld [vmem:[%s146 + $0x38] sm:$0xf]
        %v2019 = vld [vmem:[%s146 + $0x3c] sm:$0xf]
        %v2020 = vld [vmem:[%s146 + $0x40] sm:$0xf]
        %v2021 = vld [vmem:[%s146 + $0x44] sm:$0xf]
        %v2022 = vld [vmem:[%s146 + $0x48] sm:$0xf]
        %v2023 = vld [vmem:[%s146 + $0x4c] sm:$0xf]
        %v2024 = vld [vmem:[%s146 + $0x50] sm:$0xf]
        %v2025 = vld [vmem:[%s146 + $0x54] sm:$0xf]
        %v2026 = vld [vmem:[%s146 + $0x58] sm:$0xf]
        %v2027 = vld [vmem:[%s146 + $0x5c] sm:$0xf]
        %v2028 = vld [vmem:[%s146 + $0x60] sm:$0xf]
        %v2029 = vld [vmem:[%s146 + $0x64] sm:$0xf]
        %v2030 = vld [vmem:[%s146 + $0x68] sm:$0xf]
        %v2031 = vld [vmem:[%s146 + $0x6c] sm:$0xf]
        %v2032 = vld [vmem:[%s146 + $0x70] sm:$0xf]
        %v2033 = vld [vmem:[%s146 + $0x74] sm:$0xf]
        %v2034 = vld [vmem:[%s146 + $0x78] sm:$0xf]
        %v2035 = vld [vmem:[%s146 + $0x7c] sm:$0xf]
        %v2036 = vld [vmem:[%s146 + $0x80] sm:$0xf]
        %v2037 = vld [vmem:[%s146 + $0x84] sm:$0xf]
        %v2038 = vld [vmem:[%s146 + $0x88] sm:$0xf]
        %v2039 = vld [vmem:[%s146 + $0x8c] sm:$0xf]
        %v2040 = vld [vmem:[%s146 + $0x90] sm:$0x7]
        %vm2041 = vsmask.f32 1280
        %vm2042 = vsmask.f32 5392
        %vm2043 = vmor %vm2041, %vm2042
        %v2045 = vshrl.u32 %v2008, 16
        %v2047 = vrot.slane %v2045, 6
        %v2048 = vshll.u32 %v2008, 16
        %v2050 = vrot.slane %v2048, 7
        %v2051 = vor.u32 %v2047, %v2050
        %v2052 = vrot.slane %v2051, 4
        %v2054 = vshrl.u32 %v2009, 16
        %v2056 = vrot.slane %v2054, 6
        %v2057 = vshll.u32 %v2009, 16
        %v2059 = vrot.slane %v2057, 7
        %v2060 = vor.u32 %v2056, %v2059
        %v2061 = vsel %vm2043, %v2052, %v2060
        %v2062 = vrot.slane %v2060, 4
        %v2064 = vshrl.u32 %v2010, 16
        %v2066 = vrot.slane %v2064, 6
        %v2067 = vshll.u32 %v2010, 16
        %v2069 = vrot.slane %v2067, 7
        %v2070 = vor.u32 %v2066, %v2069
        %v2071 = vsel %vm2043, %v2062, %v2070
        %v2072 = vrot.slane %v2070, 4
        %v2074 = vshrl.u32 %v2011, 16
        %v2076 = vrot.slane %v2074, 6
        %v2077 = vshll.u32 %v2011, 16
        %v2079 = vrot.slane %v2077, 7
        %v2080 = vor.u32 %v2076, %v2079
        %v2081 = vsel %vm2043, %v2072, %v2080
        %v2082 = vrot.slane %v2080, 4
        %v2084 = vshrl.u32 %v2012, 16
        %v2086 = vrot.slane %v2084, 6
        %v2087 = vshll.u32 %v2012, 16
        %v2089 = vrot.slane %v2087, 7
        %v2090 = vor.u32 %v2086, %v2089
        %v2091 = vsel %vm2043, %v2082, %v2090
        %v2092 = vrot.slane %v2090, 4
        %v2094 = vshrl.u32 %v2013, 16
        %v2096 = vrot.slane %v2094, 6
        %v2097 = vshll.u32 %v2013, 16
        %v2099 = vrot.slane %v2097, 7
        %v2100 = vor.u32 %v2096, %v2099
        %v2101 = vsel %vm2043, %v2092, %v2100
        %v2102 = vrot.slane %v2100, 4
        %v2104 = vshrl.u32 %v2014, 16
        %v2106 = vrot.slane %v2104, 6
        %v2107 = vshll.u32 %v2014, 16
        %v2109 = vrot.slane %v2107, 7
        %v2110 = vor.u32 %v2106, %v2109
        %v2111 = vsel %vm2043, %v2102, %v2110
        %v2112 = vrot.slane %v2110, 4
        %v2114 = vshrl.u32 %v2015, 16
        %v2116 = vrot.slane %v2114, 6
        %v2117 = vshll.u32 %v2015, 16
        %v2119 = vrot.slane %v2117, 7
        %v2120 = vor.u32 %v2116, %v2119
        %v2121 = vsel %vm2043, %v2112, %v2120
        %v2122 = vrot.slane %v2120, 4
        %v2124 = vshrl.u32 %v2016, 16
        %v2126 = vrot.slane %v2124, 6
        %v2127 = vshll.u32 %v2016, 16
        %v2129 = vrot.slane %v2127, 7
        %v2130 = vor.u32 %v2126, %v2129
        %v2131 = vsel %vm2043, %v2122, %v2130
        %v2132 = vrot.slane %v2130, 4
        %v2134 = vshrl.u32 %v2017, 16
        %v2136 = vrot.slane %v2134, 6
        %v2137 = vshll.u32 %v2017, 16
        %v2139 = vrot.slane %v2137, 7
        %v2140 = vor.u32 %v2136, %v2139
        %v2141 = vsel %vm2043, %v2132, %v2140
        %v2142 = vrot.slane %v2140, 4
        %v2144 = vshrl.u32 %v2018, 16
        %v2146 = vrot.slane %v2144, 6
        %v2147 = vshll.u32 %v2018, 16
        %v2149 = vrot.slane %v2147, 7
        %v2150 = vor.u32 %v2146, %v2149
        %v2151 = vsel %vm2043, %v2142, %v2150
        %v2152 = vrot.slane %v2150, 4
        %v2154 = vshrl.u32 %v2019, 16
        %v2156 = vrot.slane %v2154, 6
        %v2157 = vshll.u32 %v2019, 16
        %v2159 = vrot.slane %v2157, 7
        %v2160 = vor.u32 %v2156, %v2159
        %v2161 = vsel %vm2043, %v2152, %v2160
        %v2162 = vrot.slane %v2160, 4
        %v2164 = vshrl.u32 %v2020, 16
        %v2166 = vrot.slane %v2164, 6
        %v2167 = vshll.u32 %v2020, 16
        %v2169 = vrot.slane %v2167, 7
        %v2170 = vor.u32 %v2166, %v2169
        %v2171 = vsel %vm2043, %v2162, %v2170
        %v2172 = vrot.slane %v2170, 4
        %v2174 = vshrl.u32 %v2021, 16
        %v2176 = vrot.slane %v2174, 6
        %v2177 = vshll.u32 %v2021, 16
        %v2179 = vrot.slane %v2177, 7
        %v2180 = vor.u32 %v2176, %v2179
        %v2181 = vsel %vm2043, %v2172, %v2180
        %v2182 = vrot.slane %v2180, 4
        %v2184 = vshrl.u32 %v2022, 16
        %v2186 = vrot.slane %v2184, 6
        %v2187 = vshll.u32 %v2022, 16
        %v2189 = vrot.slane %v2187, 7
        %v2190 = vor.u32 %v2186, %v2189
        %v2191 = vsel %vm2043, %v2182, %v2190
        %v2192 = vrot.slane %v2190, 4
        %v2194 = vshrl.u32 %v2023, 16
        %v2196 = vrot.slane %v2194, 6
        %v2197 = vshll.u32 %v2023, 16
        %v2199 = vrot.slane %v2197, 7
        %v2200 = vor.u32 %v2196, %v2199
        %v2201 = vsel %vm2043, %v2192, %v2200
        %v2202 = vrot.slane %v2200, 4
        %v2204 = vshrl.u32 %v2024, 16
        %v2206 = vrot.slane %v2204, 6
        %v2207 = vshll.u32 %v2024, 16
        %v2209 = vrot.slane %v2207, 7
        %v2210 = vor.u32 %v2206, %v2209
        %v2211 = vsel %vm2043, %v2202, %v2210
        %v2212 = vrot.slane %v2210, 4
        %v2214 = vshrl.u32 %v2025, 16
        %v2216 = vrot.slane %v2214, 6
        %v2217 = vshll.u32 %v2025, 16
        %v2219 = vrot.slane %v2217, 7
        %v2220 = vor.u32 %v2216, %v2219
        %v2221 = vsel %vm2043, %v2212, %v2220
        %v2222 = vrot.slane %v2220, 4
        %v2224 = vshrl.u32 %v2026, 16
        %v2226 = vrot.slane %v2224, 6
        %v2227 = vshll.u32 %v2026, 16
        %v2229 = vrot.slane %v2227, 7
        %v2230 = vor.u32 %v2226, %v2229
        %v2231 = vsel %vm2043, %v2222, %v2230
        %v2232 = vrot.slane %v2230, 4
        %v2234 = vshrl.u32 %v2027, 16
        %v2236 = vrot.slane %v2234, 6
        %v2237 = vshll.u32 %v2027, 16
        %v2239 = vrot.slane %v2237, 7
        %v2240 = vor.u32 %v2236, %v2239
        %v2241 = vsel %vm2043, %v2232, %v2240
        %v2242 = vrot.slane %v2240, 4
        %v2244 = vshrl.u32 %v2028, 16
        %v2246 = vrot.slane %v2244, 6
        %v2247 = vshll.u32 %v2028, 16
        %v2249 = vrot.slane %v2247, 7
        %v2250 = vor.u32 %v2246, %v2249
        %v2251 = vsel %vm2043, %v2242, %v2250
        %v2252 = vrot.slane %v2250, 4
        %v2254 = vshrl.u32 %v2029, 16
        %v2256 = vrot.slane %v2254, 6
        %v2257 = vshll.u32 %v2029, 16
        %v2259 = vrot.slane %v2257, 7
        %v2260 = vor.u32 %v2256, %v2259
        %v2261 = vsel %vm2043, %v2252, %v2260
        %v2262 = vrot.slane %v2260, 4
        %v2264 = vshrl.u32 %v2030, 16
        %v2266 = vrot.slane %v2264, 6
        %v2267 = vshll.u32 %v2030, 16
        %v2269 = vrot.slane %v2267, 7
        %v2270 = vor.u32 %v2266, %v2269
        %v2271 = vsel %vm2043, %v2262, %v2270
        %v2272 = vrot.slane %v2270, 4
        %v2274 = vshrl.u32 %v2031, 16
        %v2276 = vrot.slane %v2274, 6
        %v2277 = vshll.u32 %v2031, 16
        %v2279 = vrot.slane %v2277, 7
        %v2280 = vor.u32 %v2276, %v2279
        %v2281 = vsel %vm2043, %v2272, %v2280
        %v2282 = vrot.slane %v2280, 4
        %v2284 = vshrl.u32 %v2032, 16
        %v2286 = vrot.slane %v2284, 6
        %v2287 = vshll.u32 %v2032, 16
        %v2289 = vrot.slane %v2287, 7
        %v2290 = vor.u32 %v2286, %v2289
        %v2291 = vsel %vm2043, %v2282, %v2290
        %v2292 = vrot.slane %v2290, 4
        %v2294 = vshrl.u32 %v2033, 16
        %v2296 = vrot.slane %v2294, 6
        %v2297 = vshll.u32 %v2033, 16
        %v2299 = vrot.slane %v2297, 7
        %v2300 = vor.u32 %v2296, %v2299
        %v2301 = vsel %vm2043, %v2292, %v2300
        %v2302 = vrot.slane %v2300, 4
        %v2304 = vshrl.u32 %v2034, 16
        %v2306 = vrot.slane %v2304, 6
        %v2307 = vshll.u32 %v2034, 16
        %v2309 = vrot.slane %v2307, 7
        %v2310 = vor.u32 %v2306, %v2309
        %v2311 = vsel %vm2043, %v2302, %v2310
        %v2312 = vrot.slane %v2310, 4
        %v2314 = vshrl.u32 %v2035, 16
        %v2316 = vrot.slane %v2314, 6
        %v2317 = vshll.u32 %v2035, 16
        %v2319 = vrot.slane %v2317, 7
        %v2320 = vor.u32 %v2316, %v2319
        %v2321 = vsel %vm2043, %v2312, %v2320
        %v2322 = vrot.slane %v2320, 4
        %v2324 = vshrl.u32 %v2036, 16
        %v2326 = vrot.slane %v2324, 6
        %v2327 = vshll.u32 %v2036, 16
        %v2329 = vrot.slane %v2327, 7
        %v2330 = vor.u32 %v2326, %v2329
        %v2331 = vsel %vm2043, %v2322, %v2330
        %v2332 = vrot.slane %v2330, 4
        %v2334 = vshrl.u32 %v2037, 16
        %v2336 = vrot.slane %v2334, 6
        %v2337 = vshll.u32 %v2037, 16
        %v2339 = vrot.slane %v2337, 7
        %v2340 = vor.u32 %v2336, %v2339
        %v2341 = vsel %vm2043, %v2332, %v2340
        %v2342 = vrot.slane %v2340, 4
        %v2344 = vshrl.u32 %v2038, 16
        %v2346 = vrot.slane %v2344, 6
        %v2347 = vshll.u32 %v2038, 16
        %v2349 = vrot.slane %v2347, 7
        %v2350 = vor.u32 %v2346, %v2349
        %v2351 = vsel %vm2043, %v2342, %v2350
        %v2352 = vrot.slane %v2350, 4
        %v2354 = vshrl.u32 %v2039, 16
        %v2356 = vrot.slane %v2354, 6
        %v2357 = vshll.u32 %v2039, 16
        %v2359 = vrot.slane %v2357, 7
        %v2360 = vor.u32 %v2356, %v2359
        %v2361 = vsel %vm2043, %v2352, %v2360
        %v2362 = vrot.slane %v2360, 4
        %v2364 = vshrl.u32 %v2040, 16
        %v2366 = vrot.slane %v2364, 6
        %v2367 = vshll.u32 %v2040, 16
        %v2369 = vrot.slane %v2367, 7
        %v2370 = vor.u32 %v2366, %v2369
        %v2371 = vsel %vm2043, %v2362, %v2370
        %2404 = vst [vmem:[#allocation5 + $0x1c] sm:$0xf] %v2061
        %2405 = vst [vmem:[#allocation5 + $0x40] sm:$0xf] %v2071
        %2406 = vst [vmem:[#allocation5 + $0x64] sm:$0xf] %v2081
        %2407 = vst [vmem:[#allocation5 + $0x88] sm:$0xf] %v2091
        %2408 = vst [vmem:[#allocation5 + $0xac] sm:$0xf] %v2101
        %2409 = vst [vmem:[#allocation5 + $0xd0] sm:$0xf] %v2111
        %2410 = vst [vmem:[#allocation5 + $0xf4] sm:$0xf] %v2121
        %2411 = vst [vmem:[#allocation5 + $0x118] sm:$0xf] %v2131
        %2412 = vst [vmem:[#allocation5 + $0x13c] sm:$0xf] %v2141
        %2413 = vst [vmem:[#allocation5 + $0x160] sm:$0xf] %v2151
        %2414 = vst [vmem:[#allocation5 + $0x184] sm:$0xf] %v2161
        %2415 = vst [vmem:[#allocation5 + $0x1a8] sm:$0xf] %v2171
        %2416 = vst [vmem:[#allocation5 + $0x1cc] sm:$0xf] %v2181
        %2417 = vst [vmem:[#allocation5 + $0x1f0] sm:$0xf] %v2191
        %2418 = vst [vmem:[#allocation5 + $0x214] sm:$0xf] %v2201
        %2419 = vst [vmem:[#allocation5 + $0x238] sm:$0xf] %v2211
        %2420 = vst [vmem:[#allocation5 + $0x25c] sm:$0xf] %v2221
        %2421 = vst [vmem:[#allocation5 + $0x280] sm:$0xf] %v2231
        %2422 = vst [vmem:[#allocation5 + $0x2a4] sm:$0xf] %v2241
        %2423 = vst [vmem:[#allocation5 + $0x2c8] sm:$0xf] %v2251
        %2424 = vst [vmem:[#allocation5 + $0x2ec] sm:$0xf] %v2261
        %2425 = vst [vmem:[#allocation5 + $0x310] sm:$0xf] %v2271
        %2426 = vst [vmem:[#allocation5 + $0x334] sm:$0xf] %v2281
        %2427 = vst [vmem:[#allocation5 + $0x358] sm:$0xf] %v2291
        %2428 = vst [vmem:[#allocation5 + $0x37c] sm:$0xf] %v2301
        %2429 = vst [vmem:[#allocation5 + $0x3a0] sm:$0xf] %v2311
        %2430 = vst [vmem:[#allocation5 + $0x3c4] sm:$0xf] %v2321
        %2431 = vst [vmem:[#allocation5 + $0x3e8] sm:$0xf] %v2331
        %2432 = vst [vmem:[#allocation5 + $0x40c] sm:$0xf] %v2341
        %2433 = vst [vmem:[#allocation5 + $0x430] sm:$0xf] %v2351
        %2434 = vst [vmem:[#allocation5 + $0x454] sm:$0xf] %v2361
        %2435 = vst [vmem:[#allocation5 + $0x478] sm:$0xf] %v2371
        %v2436 = vld [vmem:[%s146 + $0x10] sm:$0x8]
        %v2437 = vld [vmem:[%s146 + $0x14] sm:$0xf]
        %v2438 = vld [vmem:[%s146 + $0x18] sm:$0xf]
        %v2439 = vld [vmem:[%s146 + $0x1c] sm:$0xf]
        %v2440 = vld [vmem:[%s146 + $0x20] sm:$0xf]
        %v2441 = vld [vmem:[%s146 + $0x24] sm:$0xf]
        %v2442 = vld [vmem:[%s146 + $0x28] sm:$0xf]
        %v2443 = vld [vmem:[%s146 + $0x2c] sm:$0xf]
        %v2444 = vld [vmem:[%s146 + $0x30] sm:$0xf]
        %v2445 = vld [vmem:[%s146 + $0x34] sm:$0xf]
        %v2446 = vld [vmem:[%s146 + $0x38] sm:$0xf]
        %v2447 = vld [vmem:[%s146 + $0x3c] sm:$0xf]
        %v2448 = vld [vmem:[%s146 + $0x40] sm:$0xf]
        %v2449 = vld [vmem:[%s146 + $0x44] sm:$0xf]
        %v2450 = vld [vmem:[%s146 + $0x48] sm:$0xf]
        %v2451 = vld [vmem:[%s146 + $0x4c] sm:$0xf]
        %v2452 = vld [vmem:[%s146 + $0x50] sm:$0xf]
        %v2453 = vld [vmem:[%s146 + $0x54] sm:$0xf]
        %v2454 = vld [vmem:[%s146 + $0x58] sm:$0xf]
        %v2455 = vld [vmem:[%s146 + $0x5c] sm:$0xf]
        %v2456 = vld [vmem:[%s146 + $0x60] sm:$0xf]
        %v2457 = vld [vmem:[%s146 + $0x64] sm:$0xf]
        %v2458 = vld [vmem:[%s146 + $0x68] sm:$0xf]
        %v2459 = vld [vmem:[%s146 + $0x6c] sm:$0xf]
        %v2460 = vld [vmem:[%s146 + $0x70] sm:$0xf]
        %v2461 = vld [vmem:[%s146 + $0x74] sm:$0xf]
        %v2462 = vld [vmem:[%s146 + $0x78] sm:$0xf]
        %v2463 = vld [vmem:[%s146 + $0x7c] sm:$0xf]
        %v2464 = vld [vmem:[%s146 + $0x80] sm:$0xf]
        %v2465 = vld [vmem:[%s146 + $0x84] sm:$0xf]
        %v2466 = vld [vmem:[%s146 + $0x88] sm:$0xf]
        %v2467 = vld [vmem:[%s146 + $0x8c] sm:$0xf]
        %v2468 = vld [vmem:[%s146 + $0x90] sm:$0x7]
        %vm2502 = vcmask 1040384
        %vm2503 = vcmask 1044484
        %vm2504 = vmor %vm2502, %vm2503
        %v2505 = vrot.slane %v2436, 7
        %v2506 = vrot.slane %v2505, 4
        %v2507 = vrot.slane %v2437, 7
        %v2508 = vsel %vm2504, %v2506, %v2507
        %v2509 = vrot.slane %v2507, 4
        %v2510 = vrot.slane %v2438, 7
        %v2511 = vsel %vm2504, %v2509, %v2510
        %v2512 = vrot.slane %v2510, 4
        %v2513 = vrot.slane %v2439, 7
        %v2514 = vsel %vm2504, %v2512, %v2513
        %v2515 = vrot.slane %v2513, 4
        %v2516 = vrot.slane %v2440, 7
        %v2517 = vsel %vm2504, %v2515, %v2516
        %v2518 = vrot.slane %v2516, 4
        %v2519 = vrot.slane %v2441, 7
        %v2520 = vsel %vm2504, %v2518, %v2519
        %v2521 = vrot.slane %v2519, 4
        %v2522 = vrot.slane %v2442, 7
        %v2523 = vsel %vm2504, %v2521, %v2522
        %v2524 = vrot.slane %v2522, 4
        %v2525 = vrot.slane %v2443, 7
        %v2526 = vsel %vm2504, %v2524, %v2525
        %v2527 = vrot.slane %v2525, 4
        %v2528 = vrot.slane %v2444, 7
        %v2529 = vsel %vm2504, %v2527, %v2528
        %v2530 = vrot.slane %v2528, 4
        %v2531 = vrot.slane %v2445, 7
        %v2532 = vsel %vm2504, %v2530, %v2531
        %v2533 = vrot.slane %v2531, 4
        %v2534 = vrot.slane %v2446, 7
        %v2535 = vsel %vm2504, %v2533, %v2534
        %v2536 = vrot.slane %v2534, 4
        %v2537 = vrot.slane %v2447, 7
        %v2538 = vsel %vm2504, %v2536, %v2537
        %v2539 = vrot.slane %v2537, 4
        %v2540 = vrot.slane %v2448, 7
        %v2541 = vsel %vm2504, %v2539, %v2540
        %v2542 = vrot.slane %v2540, 4
        %v2543 = vrot.slane %v2449, 7
        %v2544 = vsel %vm2504, %v2542, %v2543
        %v2545 = vrot.slane %v2543, 4
        %v2546 = vrot.slane %v2450, 7
        %v2547 = vsel %vm2504, %v2545, %v2546
        %v2548 = vrot.slane %v2546, 4
        %v2549 = vrot.slane %v2451, 7
        %v2550 = vsel %vm2504, %v2548, %v2549
        %v2551 = vrot.slane %v2549, 4
        %v2552 = vrot.slane %v2452, 7
        %v2553 = vsel %vm2504, %v2551, %v2552
        %v2554 = vrot.slane %v2552, 4
        %v2555 = vrot.slane %v2453, 7
        %v2556 = vsel %vm2504, %v2554, %v2555
        %v2557 = vrot.slane %v2555, 4
        %v2558 = vrot.slane %v2454, 7
        %v2559 = vsel %vm2504, %v2557, %v2558
        %v2560 = vrot.slane %v2558, 4
        %v2561 = vrot.slane %v2455, 7
        %v2562 = vsel %vm2504, %v2560, %v2561
        %v2563 = vrot.slane %v2561, 4
        %v2564 = vrot.slane %v2456, 7
        %v2565 = vsel %vm2504, %v2563, %v2564
        %v2566 = vrot.slane %v2564, 4
        %v2567 = vrot.slane %v2457, 7
        %v2568 = vsel %vm2504, %v2566, %v2567
        %v2569 = vrot.slane %v2567, 4
        %v2570 = vrot.slane %v2458, 7
        %v2571 = vsel %vm2504, %v2569, %v2570
        %v2572 = vrot.slane %v2570, 4
        %v2573 = vrot.slane %v2459, 7
        %v2574 = vsel %vm2504, %v2572, %v2573
        %v2575 = vrot.slane %v2573, 4
        %v2576 = vrot.slane %v2460, 7
        %v2577 = vsel %vm2504, %v2575, %v2576
        %v2578 = vrot.slane %v2576, 4
        %v2579 = vrot.slane %v2461, 7
        %v2580 = vsel %vm2504, %v2578, %v2579
        %v2581 = vrot.slane %v2579, 4
        %v2582 = vrot.slane %v2462, 7
        %v2583 = vsel %vm2504, %v2581, %v2582
        %v2584 = vrot.slane %v2582, 4
        %v2585 = vrot.slane %v2463, 7
        %v2586 = vsel %vm2504, %v2584, %v2585
        %v2587 = vrot.slane %v2585, 4
        %v2588 = vrot.slane %v2464, 7
        %v2589 = vsel %vm2504, %v2587, %v2588
        %v2590 = vrot.slane %v2588, 4
        %v2591 = vrot.slane %v2465, 7
        %v2592 = vsel %vm2504, %v2590, %v2591
        %v2593 = vrot.slane %v2591, 4
        %v2594 = vrot.slane %v2466, 7
        %v2595 = vsel %vm2504, %v2593, %v2594
        %v2596 = vrot.slane %v2594, 4
        %v2597 = vrot.slane %v2467, 7
        %v2598 = vsel %vm2504, %v2596, %v2597
        %v2599 = vrot.slane %v2597, 4
        %v2600 = vrot.slane %v2468, 7
        %v2601 = vsel %vm2504, %v2599, %v2600
        %2634 = vst [vmem:[#allocation5 + $0x20] sm:$0xf] %v2508
        %2635 = vst [vmem:[#allocation5 + $0x44] sm:$0xf] %v2511
        %2636 = vst [vmem:[#allocation5 + $0x68] sm:$0xf] %v2514
        %2637 = vst [vmem:[#allocation5 + $0x8c] sm:$0xf] %v2517
        %2638 = vst [vmem:[#allocation5 + $0xb0] sm:$0xf] %v2520
        %2639 = vst [vmem:[#allocation5 + $0xd4] sm:$0xf] %v2523
        %2640 = vst [vmem:[#allocation5 + $0xf8] sm:$0xf] %v2526
        %2641 = vst [vmem:[#allocation5 + $0x11c] sm:$0xf] %v2529
        %2642 = vst [vmem:[#allocation5 + $0x140] sm:$0xf] %v2532
        %2643 = vst [vmem:[#allocation5 + $0x164] sm:$0xf] %v2535
        %2644 = vst [vmem:[#allocation5 + $0x188] sm:$0xf] %v2538
        %2645 = vst [vmem:[#allocation5 + $0x1ac] sm:$0xf] %v2541
        %2646 = vst [vmem:[#allocation5 + $0x1d0] sm:$0xf] %v2544
        %2647 = vst [vmem:[#allocation5 + $0x1f4] sm:$0xf] %v2547
        %2648 = vst [vmem:[#allocation5 + $0x218] sm:$0xf] %v2550
        %2649 = vst [vmem:[#allocation5 + $0x23c] sm:$0xf] %v2553
        %2650 = vst [vmem:[#allocation5 + $0x260] sm:$0xf] %v2556
        %2651 = vst [vmem:[#allocation5 + $0x284] sm:$0xf] %v2559
        %2652 = vst [vmem:[#allocation5 + $0x2a8] sm:$0xf] %v2562
        %2653 = vst [vmem:[#allocation5 + $0x2cc] sm:$0xf] %v2565
        %2654 = vst [vmem:[#allocation5 + $0x2f0] sm:$0xf] %v2568
        %2655 = vst [vmem:[#allocation5 + $0x314] sm:$0xf] %v2571
        %2656 = vst [vmem:[#allocation5 + $0x338] sm:$0xf] %v2574
        %2657 = vst [vmem:[#allocation5 + $0x35c] sm:$0xf] %v2577
        %2658 = vst [vmem:[#allocation5 + $0x380] sm:$0xf] %v2580
        %2659 = vst [vmem:[#allocation5 + $0x3a4] sm:$0xf] %v2583
        %2660 = vst [vmem:[#allocation5 + $0x3c8] sm:$0xf] %v2586
        %2661 = vst [vmem:[#allocation5 + $0x3ec] sm:$0xf] %v2589
        %2662 = vst [vmem:[#allocation5 + $0x410] sm:$0xf] %v2592
        %2663 = vst [vmem:[#allocation5 + $0x434] sm:$0xf] %v2595
        %2664 = vst [vmem:[#allocation5 + $0x458] sm:$0xf] %v2598
        %2665 = vst [vmem:[#allocation5 + $0x47c] sm:$0xf] %v2601
        %v2666 = vld [vmem:[#allocation5] sm:$0xff]
        %v2667 = vld [vmem:[#allocation5 + $0x8] sm:$0xff]
        %v2668 = vld [vmem:[#allocation5 + $0x10] sm:$0xff]
        %v2669 = vld [vmem:[#allocation5 + $0x18] sm:$0xff]
        %v2670 = vld [vmem:[#allocation5 + $0x20] sm:$0xf]
        %v2671 = vld [vmem:[#allocation5 + $0x24] sm:$0xff]
        %v2672 = vld [vmem:[#allocation5 + $0x2c] sm:$0xff]
        %v2673 = vld [vmem:[#allocation5 + $0x34] sm:$0xff]
        %v2674 = vld [vmem:[#allocation5 + $0x3c] sm:$0xff]
        %v2675 = vld [vmem:[#allocation5 + $0x44] sm:$0xf]
        %v2676 = vld [vmem:[#allocation5 + $0x48] sm:$0xff]
        %v2677 = vld [vmem:[#allocation5 + $0x50] sm:$0xff]
        %v2678 = vld [vmem:[#allocation5 + $0x58] sm:$0xff]
        %v2679 = vld [vmem:[#allocation5 + $0x60] sm:$0xff]
        %v2680 = vld [vmem:[#allocation5 + $0x68] sm:$0xf]
        %v2681 = vld [vmem:[#allocation5 + $0x6c] sm:$0xff]
        %v2682 = vld [vmem:[#allocation5 + $0x74] sm:$0xff]
        %v2683 = vld [vmem:[#allocation5 + $0x7c] sm:$0xff]
        %v2684 = vld [vmem:[#allocation5 + $0x84] sm:$0xff]
        %v2685 = vld [vmem:[#allocation5 + $0x8c] sm:$0xf]
        %v2686 = vld [vmem:[#allocation5 + $0x90] sm:$0xff]
        %v2687 = vld [vmem:[#allocation5 + $0x98] sm:$0xff]
        %v2688 = vld [vmem:[#allocation5 + $0xa0] sm:$0xff]
        %v2689 = vld [vmem:[#allocation5 + $0xa8] sm:$0xff]
        %v2690 = vld [vmem:[#allocation5 + $0xb0] sm:$0xf]
        %v2691 = vld [vmem:[#allocation5 + $0xb4] sm:$0xff]
        %v2692 = vld [vmem:[#allocation5 + $0xbc] sm:$0xff]
        %v2693 = vld [vmem:[#allocation5 + $0xc4] sm:$0xff]
        %v2694 = vld [vmem:[#allocation5 + $0xcc] sm:$0xff]
        %v2695 = vld [vmem:[#allocation5 + $0xd4] sm:$0xf]
        %v2696 = vld [vmem:[#allocation5 + $0xd8] sm:$0xff]
        %v2697 = vld [vmem:[#allocation5 + $0xe0] sm:$0xff]
        %v2698 = vld [vmem:[#allocation5 + $0xe8] sm:$0xff]
        %v2699 = vld [vmem:[#allocation5 + $0xf0] sm:$0xff]
        %v2700 = vld [vmem:[#allocation5 + $0xf8] sm:$0xf]
        %v2701 = vld [vmem:[#allocation5 + $0xfc] sm:$0xff]
        %v2702 = vld [vmem:[#allocation5 + $0x104] sm:$0xff]
        %v2703 = vld [vmem:[#allocation5 + $0x10c] sm:$0xff]
        %v2704 = vld [vmem:[#allocation5 + $0x114] sm:$0xff]
        %v2705 = vld [vmem:[#allocation5 + $0x11c] sm:$0xf]
        %v2706 = vld [vmem:[#allocation5 + $0x120] sm:$0xff]
        %v2707 = vld [vmem:[#allocation5 + $0x128] sm:$0xff]
        %v2708 = vld [vmem:[#allocation5 + $0x130] sm:$0xff]
        %v2709 = vld [vmem:[#allocation5 + $0x138] sm:$0xff]
        %v2710 = vld [vmem:[#allocation5 + $0x140] sm:$0xf]
        %v2711 = vld [vmem:[#allocation5 + $0x144] sm:$0xff]
        %v2712 = vld [vmem:[#allocation5 + $0x14c] sm:$0xff]
        %v2713 = vld [vmem:[#allocation5 + $0x154] sm:$0xff]
        %v2714 = vld [vmem:[#allocation5 + $0x15c] sm:$0xff]
        %v2715 = vld [vmem:[#allocation5 + $0x164] sm:$0xf]
        %v2716 = vld [vmem:[#allocation5 + $0x168] sm:$0xff]
        %v2717 = vld [vmem:[#allocation5 + $0x170] sm:$0xff]
        %v2718 = vld [vmem:[#allocation5 + $0x178] sm:$0xff]
        %v2719 = vld [vmem:[#allocation5 + $0x180] sm:$0xff]
        %v2720 = vld [vmem:[#allocation5 + $0x188] sm:$0xf]
        %v2721 = vld [vmem:[#allocation5 + $0x18c] sm:$0xff]
        %v2722 = vld [vmem:[#allocation5 + $0x194] sm:$0xff]
        %v2723 = vld [vmem:[#allocation5 + $0x19c] sm:$0xff]
        %v2724 = vld [vmem:[#allocation5 + $0x1a4] sm:$0xff]
        %v2725 = vld [vmem:[#allocation5 + $0x1ac] sm:$0xf]
        %v2726 = vld [vmem:[#allocation5 + $0x1b0] sm:$0xff]
        %v2727 = vld [vmem:[#allocation5 + $0x1b8] sm:$0xff]
        %v2728 = vld [vmem:[#allocation5 + $0x1c0] sm:$0xff]
        %v2729 = vld [vmem:[#allocation5 + $0x1c8] sm:$0xff]
        %v2730 = vld [vmem:[#allocation5 + $0x1d0] sm:$0xf]
        %v2731 = vld [vmem:[#allocation5 + $0x1d4] sm:$0xff]
        %v2732 = vld [vmem:[#allocation5 + $0x1dc] sm:$0xff]
        %v2733 = vld [vmem:[#allocation5 + $0x1e4] sm:$0xff]
        %v2734 = vld [vmem:[#allocation5 + $0x1ec] sm:$0xff]
        %v2735 = vld [vmem:[#allocation5 + $0x1f4] sm:$0xf]
        %v2736 = vld [vmem:[#allocation5 + $0x1f8] sm:$0xff]
        %v2737 = vld [vmem:[#allocation5 + $0x200] sm:$0xff]
        %v2738 = vld [vmem:[#allocation5 + $0x208] sm:$0xff]
        %v2739 = vld [vmem:[#allocation5 + $0x210] sm:$0xff]
        %v2740 = vld [vmem:[#allocation5 + $0x218] sm:$0xf]
        %v2741 = vld [vmem:[#allocation5 + $0x21c] sm:$0xff]
        %v2742 = vld [vmem:[#allocation5 + $0x224] sm:$0xff]
        %v2743 = vld [vmem:[#allocation5 + $0x22c] sm:$0xff]
        %v2744 = vld [vmem:[#allocation5 + $0x234] sm:$0xff]
        %v2745 = vld [vmem:[#allocation5 + $0x23c] sm:$0xf]
        %v2746 = vld [vmem:[#allocation5 + $0x240] sm:$0xff]
        %v2747 = vld [vmem:[#allocation5 + $0x248] sm:$0xff]
        %v2748 = vld [vmem:[#allocation5 + $0x250] sm:$0xff]
        %v2749 = vld [vmem:[#allocation5 + $0x258] sm:$0xff]
        %v2750 = vld [vmem:[#allocation5 + $0x260] sm:$0xf]
        %v2751 = vld [vmem:[#allocation5 + $0x264] sm:$0xff]
        %v2752 = vld [vmem:[#allocation5 + $0x26c] sm:$0xff]
        %v2753 = vld [vmem:[#allocation5 + $0x274] sm:$0xff]
        %v2754 = vld [vmem:[#allocation5 + $0x27c] sm:$0xff]
        %v2755 = vld [vmem:[#allocation5 + $0x284] sm:$0xf]
        %v2756 = vld [vmem:[#allocation5 + $0x288] sm:$0xff]
        %v2757 = vld [vmem:[#allocation5 + $0x290] sm:$0xff]
        %v2758 = vld [vmem:[#allocation5 + $0x298] sm:$0xff]
        %v2759 = vld [vmem:[#allocation5 + $0x2a0] sm:$0xff]
        %v2760 = vld [vmem:[#allocation5 + $0x2a8] sm:$0xf]
        %v2761 = vld [vmem:[#allocation5 + $0x2ac] sm:$0xff]
        %v2762 = vld [vmem:[#allocation5 + $0x2b4] sm:$0xff]
        %v2763 = vld [vmem:[#allocation5 + $0x2bc] sm:$0xff]
        %v2764 = vld [vmem:[#allocation5 + $0x2c4] sm:$0xff]
        %v2765 = vld [vmem:[#allocation5 + $0x2cc] sm:$0xf]
        %v2766 = vld [vmem:[#allocation5 + $0x2d0] sm:$0xff]
        %v2767 = vld [vmem:[#allocation5 + $0x2d8] sm:$0xff]
        %v2768 = vld [vmem:[#allocation5 + $0x2e0] sm:$0xff]
        %v2769 = vld [vmem:[#allocation5 + $0x2e8] sm:$0xff]
        %v2770 = vld [vmem:[#allocation5 + $0x2f0] sm:$0xf]
        %v2771 = vld [vmem:[#allocation5 + $0x2f4] sm:$0xff]
        %v2772 = vld [vmem:[#allocation5 + $0x2fc] sm:$0xff]
        %v2773 = vld [vmem:[#allocation5 + $0x304] sm:$0xff]
        %v2774 = vld [vmem:[#allocation5 + $0x30c] sm:$0xff]
        %v2775 = vld [vmem:[#allocation5 + $0x314] sm:$0xf]
        %v2776 = vld [vmem:[#allocation5 + $0x318] sm:$0xff]
        %v2777 = vld [vmem:[#allocation5 + $0x320] sm:$0xff]
        %v2778 = vld [vmem:[#allocation5 + $0x328] sm:$0xff]
        %v2779 = vld [vmem:[#allocation5 + $0x330] sm:$0xff]
        %v2780 = vld [vmem:[#allocation5 + $0x338] sm:$0xf]
        %v2781 = vld [vmem:[#allocation5 + $0x33c] sm:$0xff]
        %v2782 = vld [vmem:[#allocation5 + $0x344] sm:$0xff]
        %v2783 = vld [vmem:[#allocation5 + $0x34c] sm:$0xff]
        %v2784 = vld [vmem:[#allocation5 + $0x354] sm:$0xff]
        %v2785 = vld [vmem:[#allocation5 + $0x35c] sm:$0xf]
        %v2786 = vld [vmem:[#allocation5 + $0x360] sm:$0xff]
        %v2787 = vld [vmem:[#allocation5 + $0x368] sm:$0xff]
        %v2788 = vld [vmem:[#allocation5 + $0x370] sm:$0xff]
        %v2789 = vld [vmem:[#allocation5 + $0x378] sm:$0xff]
        %v2790 = vld [vmem:[#allocation5 + $0x380] sm:$0xf]
        %v2791 = vld [vmem:[#allocation5 + $0x384] sm:$0xff]
        %v2792 = vld [vmem:[#allocation5 + $0x38c] sm:$0xff]
        %v2793 = vld [vmem:[#allocation5 + $0x394] sm:$0xff]
        %v2794 = vld [vmem:[#allocation5 + $0x39c] sm:$0xff]
        %v2795 = vld [vmem:[#allocation5 + $0x3a4] sm:$0xf]
        %v2796 = vld [vmem:[#allocation5 + $0x3a8] sm:$0xff]
        %v2797 = vld [vmem:[#allocation5 + $0x3b0] sm:$0xff]
        %v2798 = vld [vmem:[#allocation5 + $0x3b8] sm:$0xff]
        %v2799 = vld [vmem:[#allocation5 + $0x3c0] sm:$0xff]
        %v2800 = vld [vmem:[#allocation5 + $0x3c8] sm:$0xf]
        %v2801 = vld [vmem:[#allocation5 + $0x3cc] sm:$0xff]
        %v2802 = vld [vmem:[#allocation5 + $0x3d4] sm:$0xff]
        %v2803 = vld [vmem:[#allocation5 + $0x3dc] sm:$0xff]
        %v2804 = vld [vmem:[#allocation5 + $0x3e4] sm:$0xff]
        %v2805 = vld [vmem:[#allocation5 + $0x3ec] sm:$0xf]
        %v2806 = vld [vmem:[#allocation5 + $0x3f0] sm:$0xff]
        %v2807 = vld [vmem:[#allocation5 + $0x3f8] sm:$0xff]
        %v2808 = vld [vmem:[#allocation5 + $0x400] sm:$0xff]
        %v2809 = vld [vmem:[#allocation5 + $0x408] sm:$0xff]
        %v2810 = vld [vmem:[#allocation5 + $0x410] sm:$0xf]
        %v2811 = vld [vmem:[#allocation5 + $0x414] sm:$0xff]
        %v2812 = vld [vmem:[#allocation5 + $0x41c] sm:$0xff]
        %v2813 = vld [vmem:[#allocation5 + $0x424] sm:$0xff]
        %v2814 = vld [vmem:[#allocation5 + $0x42c] sm:$0xff]
        %v2815 = vld [vmem:[#allocation5 + $0x434] sm:$0xf]
        %v2816 = vld [vmem:[#allocation5 + $0x438] sm:$0xff]
        %v2817 = vld [vmem:[#allocation5 + $0x440] sm:$0xff]
        %v2818 = vld [vmem:[#allocation5 + $0x448] sm:$0xff]
        %v2819 = vld [vmem:[#allocation5 + $0x450] sm:$0xff]
        %v2820 = vld [vmem:[#allocation5 + $0x458] sm:$0xf]
        %v2821 = vld [vmem:[#allocation5 + $0x45c] sm:$0xff]
        %v2822 = vld [vmem:[#allocation5 + $0x464] sm:$0xff]
        %v2823 = vld [vmem:[#allocation5 + $0x46c] sm:$0xff]
        %v2824 = vld [vmem:[#allocation5 + $0x474] sm:$0xff]
        %v2825 = vld [vmem:[#allocation5 + $0x47c] sm:$0xf]
        %v2826 = vld [vmem:[#allocation3] sm:$0xf]
        %v2827 = vld [vmem:[#allocation3 + $0x4] sm:$0xf]
        %v2828 = vld [vmem:[#allocation3 + $0x8] sm:$0xf]
        %v2829 = vld [vmem:[#allocation3 + $0xc] sm:$0xf]
        %v2830 = vld [vmem:[#allocation3 + $0x10] sm:$0xf]
        %v2831 = vld [vmem:[#allocation3 + $0x14] sm:$0xf]
        %v2832 = vld [vmem:[#allocation3 + $0x18] sm:$0xf]
        %v2833 = vld [vmem:[#allocation3 + $0x1c] sm:$0xf]
        %v2834 = vld [vmem:[#allocation3 + $0x20] sm:$0xf]
        %v2835 = vld [vmem:[#allocation3 + $0x24] sm:$0xf]
        %v2836 = vld [vmem:[#allocation3 + $0x28] sm:$0xf]
        %v2837 = vld [vmem:[#allocation3 + $0x2c] sm:$0xf]
        %v2838 = vld [vmem:[#allocation3 + $0x30] sm:$0xf]
        %v2839 = vld [vmem:[#allocation3 + $0x34] sm:$0xf]
        %v2840 = vld [vmem:[#allocation3 + $0x38] sm:$0xf]
        %v2841 = vld [vmem:[#allocation3 + $0x3c] sm:$0xf]
        %v2842 = vld [vmem:[#allocation3 + $0x40] sm:$0xf]
        %v2843 = vld [vmem:[#allocation3 + $0x44] sm:$0xf]
        %v2844 = vld [vmem:[#allocation3 + $0x48] sm:$0xf]
        %v2845 = vld [vmem:[#allocation3 + $0x4c] sm:$0xf]
        %v2846 = vld [vmem:[#allocation3 + $0x50] sm:$0xf]
        %v2847 = vld [vmem:[#allocation3 + $0x54] sm:$0xf]
        %v2848 = vld [vmem:[#allocation3 + $0x58] sm:$0xf]
        %v2849 = vld [vmem:[#allocation3 + $0x5c] sm:$0xf]
        %v2850 = vld [vmem:[#allocation3 + $0x60] sm:$0xf]
        %v2851 = vld [vmem:[#allocation3 + $0x64] sm:$0xf]
        %v2852 = vld [vmem:[#allocation3 + $0x68] sm:$0xf]
        %v2853 = vld [vmem:[#allocation3 + $0x6c] sm:$0xf]
        %v2854 = vld [vmem:[#allocation3 + $0x70] sm:$0xf]
        %v2855 = vld [vmem:[#allocation3 + $0x74] sm:$0xf]
        %v2856 = vld [vmem:[#allocation3 + $0x78] sm:$0xf]
        %v2857 = vld [vmem:[#allocation3 + $0x7c] sm:$0xf]
        %v2858 = vld [vmem:[#allocation3 + $0x80] sm:$0xf]
        %v2859 = vld [vmem:[#allocation3 + $0x84] sm:$0xf]
        %v2860 = vld [vmem:[#allocation3 + $0x88] sm:$0xf]
        %v2861 = vld [vmem:[#allocation3 + $0x8c] sm:$0xf]
        %v2862 = vld [vmem:[#allocation3 + $0x90] sm:$0xf]
        %v2863 = vld [vmem:[#allocation3 + $0x94] sm:$0xf]
        %v2864 = vld [vmem:[#allocation3 + $0x98] sm:$0xf]
        %v2865 = vld [vmem:[#allocation3 + $0x9c] sm:$0xf]
        %v2866 = vld [vmem:[#allocation3 + $0xa0] sm:$0xf]
        %v2867 = vld [vmem:[#allocation3 + $0xa4] sm:$0xf]
        %v2868 = vld [vmem:[#allocation3 + $0xa8] sm:$0xf]
        %v2869 = vld [vmem:[#allocation3 + $0xac] sm:$0xf]
        %v2870 = vld [vmem:[#allocation3 + $0xb0] sm:$0xf]
        %v2871 = vld [vmem:[#allocation3 + $0xb4] sm:$0xf]
        %v2872 = vld [vmem:[#allocation3 + $0xb8] sm:$0xf]
        %v2873 = vld [vmem:[#allocation3 + $0xbc] sm:$0xf]
        %v2874 = vld [vmem:[#allocation3 + $0xc0] sm:$0xf]
        %v2875 = vld [vmem:[#allocation3 + $0xc4] sm:$0xf]
        %v2876 = vld [vmem:[#allocation3 + $0xc8] sm:$0xf]
        %v2877 = vld [vmem:[#allocation3 + $0xcc] sm:$0xf]
        %v2878 = vld [vmem:[#allocation3 + $0xd0] sm:$0xf]
        %v2879 = vld [vmem:[#allocation3 + $0xd4] sm:$0xf]
        %v2880 = vld [vmem:[#allocation3 + $0xd8] sm:$0xf]
        %v2881 = vld [vmem:[#allocation3 + $0xdc] sm:$0xf]
        %v2882 = vld [vmem:[#allocation3 + $0xe0] sm:$0xf]
        %v2883 = vld [vmem:[#allocation3 + $0xe4] sm:$0xf]
        %v2884 = vld [vmem:[#allocation3 + $0xe8] sm:$0xf]
        %v2885 = vld [vmem:[#allocation3 + $0xec] sm:$0xf]
        %v2886 = vld [vmem:[#allocation3 + $0xf0] sm:$0xf]
        %v2887 = vld [vmem:[#allocation3 + $0xf4] sm:$0xf]
        %v2888 = vld [vmem:[#allocation3 + $0xf8] sm:$0xf]
        %v2889 = vld [vmem:[#allocation3 + $0xfc] sm:$0xf]
        %v2890 = vld [vmem:[#allocation3 + $0x100] sm:$0xf]
        %v2891 = vld [vmem:[#allocation3 + $0x104] sm:$0xf]
        %v2892 = vld [vmem:[#allocation3 + $0x108] sm:$0xf]
        %v2893 = vld [vmem:[#allocation3 + $0x10c] sm:$0xf]
        %v2894 = vld [vmem:[#allocation3 + $0x110] sm:$0xf]
        %v2895 = vld [vmem:[#allocation3 + $0x114] sm:$0xf]
        %v2896 = vld [vmem:[#allocation3 + $0x118] sm:$0xf]
        %v2897 = vld [vmem:[#allocation3 + $0x11c] sm:$0xf]
        %v2898 = vld [vmem:[#allocation3 + $0x120] sm:$0xf]
        %v2899 = vld [vmem:[#allocation3 + $0x124] sm:$0xf]
        %v2900 = vld [vmem:[#allocation3 + $0x128] sm:$0xf]
        %v2901 = vld [vmem:[#allocation3 + $0x12c] sm:$0xf]
        %v2902 = vld [vmem:[#allocation3 + $0x130] sm:$0xf]
        %v2903 = vld [vmem:[#allocation3 + $0x134] sm:$0xf]
        %v2904 = vld [vmem:[#allocation3 + $0x138] sm:$0xf]
        %v2905 = vld [vmem:[#allocation3 + $0x13c] sm:$0xf]
        %v2906 = vld [vmem:[#allocation3 + $0x140] sm:$0xf]
        %v2907 = vld [vmem:[#allocation3 + $0x144] sm:$0xf]
        %v2908 = vld [vmem:[#allocation3 + $0x148] sm:$0xf]
        %v2909 = vld [vmem:[#allocation3 + $0x14c] sm:$0xf]
        %v2910 = vld [vmem:[#allocation3 + $0x150] sm:$0xf]
        %v2911 = vld [vmem:[#allocation3 + $0x154] sm:$0xf]
        %v2912 = vld [vmem:[#allocation3 + $0x158] sm:$0xf]
        %v2913 = vld [vmem:[#allocation3 + $0x15c] sm:$0xf]
        %v2914 = vld [vmem:[#allocation3 + $0x160] sm:$0xf]
        %v2915 = vld [vmem:[#allocation3 + $0x164] sm:$0xf]
        %v2916 = vld [vmem:[#allocation3 + $0x168] sm:$0xf]
        %v2917 = vld [vmem:[#allocation3 + $0x16c] sm:$0xf]
        %v2918 = vld [vmem:[#allocation3 + $0x170] sm:$0xf]
        %v2919 = vld [vmem:[#allocation3 + $0x174] sm:$0xf]
        %v2920 = vld [vmem:[#allocation3 + $0x178] sm:$0xf]
        %v2921 = vld [vmem:[#allocation3 + $0x17c] sm:$0xf]
        %v2922 = vld [vmem:[#allocation3 + $0x180] sm:$0xf]
        %v2923 = vld [vmem:[#allocation3 + $0x184] sm:$0xf]
        %v2924 = vld [vmem:[#allocation3 + $0x188] sm:$0xf]
        %v2925 = vld [vmem:[#allocation3 + $0x18c] sm:$0xf]
        %v2926 = vld [vmem:[#allocation3 + $0x190] sm:$0xf]
        %v2927 = vld [vmem:[#allocation3 + $0x194] sm:$0xf]
        %v2928 = vld [vmem:[#allocation3 + $0x198] sm:$0xf]
        %v2929 = vld [vmem:[#allocation3 + $0x19c] sm:$0xf]
        %v2930 = vld [vmem:[#allocation3 + $0x1a0] sm:$0xf]
        %v2931 = vld [vmem:[#allocation3 + $0x1a4] sm:$0xf]
        %v2932 = vld [vmem:[#allocation3 + $0x1a8] sm:$0xf]
        %v2933 = vld [vmem:[#allocation3 + $0x1ac] sm:$0xf]
        %v2934 = vld [vmem:[#allocation3 + $0x1b0] sm:$0xf]
        %v2935 = vld [vmem:[#allocation3 + $0x1b4] sm:$0xf]
        %v2936 = vld [vmem:[#allocation3 + $0x1b8] sm:$0xf]
        %v2937 = vld [vmem:[#allocation3 + $0x1bc] sm:$0xf]
        %v2938 = vld [vmem:[#allocation3 + $0x1c0] sm:$0xf]
        %v2939 = vld [vmem:[#allocation3 + $0x1c4] sm:$0xf]
        %v2940 = vld [vmem:[#allocation3 + $0x1c8] sm:$0xf]
        %v2941 = vld [vmem:[#allocation3 + $0x1cc] sm:$0xf]
        %v2942 = vld [vmem:[#allocation3 + $0x1d0] sm:$0xf]
        %v2943 = vld [vmem:[#allocation3 + $0x1d4] sm:$0xf]
        %v2944 = vld [vmem:[#allocation3 + $0x1d8] sm:$0xf]
        %v2945 = vld [vmem:[#allocation3 + $0x1dc] sm:$0xf]
        %v2946 = vld [vmem:[#allocation3 + $0x1e0] sm:$0xf]
        %v2947 = vld [vmem:[#allocation3 + $0x1e4] sm:$0xf]
        %v2948 = vld [vmem:[#allocation3 + $0x1e8] sm:$0xf]
        %v2949 = vld [vmem:[#allocation3 + $0x1ec] sm:$0xf]
        %v2950 = vld [vmem:[#allocation3 + $0x1f0] sm:$0xf]
        %v2951 = vld [vmem:[#allocation3 + $0x1f4] sm:$0xf]
        %v2952 = vld [vmem:[#allocation3 + $0x1f8] sm:$0xf]
        %v2953 = vld [vmem:[#allocation3 + $0x1fc] sm:$0xf]
        %v2954 = vld [vmem:[#allocation3 + $0x200] sm:$0xf]
        %v2955 = vld [vmem:[#allocation3 + $0x204] sm:$0xf]
        %v2956 = vld [vmem:[#allocation3 + $0x208] sm:$0xf]
        %v2957 = vld [vmem:[#allocation3 + $0x20c] sm:$0xf]
        %v2958 = vld [vmem:[#allocation3 + $0x210] sm:$0xf]
        %v2959 = vld [vmem:[#allocation3 + $0x214] sm:$0xf]
        %v2960 = vld [vmem:[#allocation3 + $0x218] sm:$0xf]
        %v2961 = vld [vmem:[#allocation3 + $0x21c] sm:$0xf]
        %v2962 = vld [vmem:[#allocation3 + $0x220] sm:$0xf]
        %v2963 = vld [vmem:[#allocation3 + $0x224] sm:$0xf]
        %v2964 = vld [vmem:[#allocation3 + $0x228] sm:$0xf]
        %v2965 = vld [vmem:[#allocation3 + $0x22c] sm:$0xf]
        %v2966 = vld [vmem:[#allocation3 + $0x230] sm:$0xf]
        %v2967 = vld [vmem:[#allocation3 + $0x234] sm:$0xf]
        %v2968 = vld [vmem:[#allocation3 + $0x238] sm:$0xf]
        %v2969 = vld [vmem:[#allocation3 + $0x23c] sm:$0xf]
        %v3130 = vunpack.c.l.b16 %v2666
        %v3131 = vunpack.c.h.b16 %v2666
        %v3132 = vunpack.c.l.b16 %v2667
        %v3133 = vunpack.c.h.b16 %v2667
        %v3134 = vunpack.c.l.b16 %v2668
        %v3135 = vunpack.c.h.b16 %v2668
        %v3136 = vunpack.c.l.b16 %v2669
        %v3137 = vunpack.c.h.b16 %v2669
        %v3138 = vunpack.c.l.b16 %v2670
        %v3139 = vunpack.c.l.b16 %v2671
        %v3140 = vunpack.c.h.b16 %v2671
        %v3141 = vunpack.c.l.b16 %v2672
        %v3142 = vunpack.c.h.b16 %v2672
        %v3143 = vunpack.c.l.b16 %v2673
        %v3144 = vunpack.c.h.b16 %v2673
        %v3145 = vunpack.c.l.b16 %v2674
        %v3146 = vunpack.c.h.b16 %v2674
        %v3147 = vunpack.c.l.b16 %v2675
        %v3148 = vunpack.c.l.b16 %v2676
        %v3149 = vunpack.c.h.b16 %v2676
        %v3150 = vunpack.c.l.b16 %v2677
        %v3151 = vunpack.c.h.b16 %v2677
        %v3152 = vunpack.c.l.b16 %v2678
        %v3153 = vunpack.c.h.b16 %v2678
        %v3154 = vunpack.c.l.b16 %v2679
        %v3155 = vunpack.c.h.b16 %v2679
        %v3156 = vunpack.c.l.b16 %v2680
        %v3157 = vunpack.c.l.b16 %v2681
        %v3158 = vunpack.c.h.b16 %v2681
        %v3159 = vunpack.c.l.b16 %v2682
        %v3160 = vunpack.c.h.b16 %v2682
        %v3161 = vunpack.c.l.b16 %v2683
        %v3162 = vunpack.c.h.b16 %v2683
        %v3163 = vunpack.c.l.b16 %v2684
        %v3164 = vunpack.c.h.b16 %v2684
        %v3165 = vunpack.c.l.b16 %v2685
        %v3166 = vunpack.c.l.b16 %v2686
        %v3167 = vunpack.c.h.b16 %v2686
        %v3168 = vunpack.c.l.b16 %v2687
        %v3169 = vunpack.c.h.b16 %v2687
        %v3170 = vunpack.c.l.b16 %v2688
        %v3171 = vunpack.c.h.b16 %v2688
        %v3172 = vunpack.c.l.b16 %v2689
        %v3173 = vunpack.c.h.b16 %v2689
        %v3174 = vunpack.c.l.b16 %v2690
        %v3175 = vunpack.c.l.b16 %v2691
        %v3176 = vunpack.c.h.b16 %v2691
        %v3177 = vunpack.c.l.b16 %v2692
        %v3178 = vunpack.c.h.b16 %v2692
        %v3179 = vunpack.c.l.b16 %v2693
        %v3180 = vunpack.c.h.b16 %v2693
        %v3181 = vunpack.c.l.b16 %v2694
        %v3182 = vunpack.c.h.b16 %v2694
        %v3183 = vunpack.c.l.b16 %v2695
        %v3184 = vunpack.c.l.b16 %v2696
        %v3185 = vunpack.c.h.b16 %v2696
        %v3186 = vunpack.c.l.b16 %v2697
        %v3187 = vunpack.c.h.b16 %v2697
        %v3188 = vunpack.c.l.b16 %v2698
        %v3189 = vunpack.c.h.b16 %v2698
        %v3190 = vunpack.c.l.b16 %v2699
        %v3191 = vunpack.c.h.b16 %v2699
        %v3192 = vunpack.c.l.b16 %v2700
        %v3193 = vunpack.c.l.b16 %v2701
        %v3194 = vunpack.c.h.b16 %v2701
        %v3195 = vunpack.c.l.b16 %v2702
        %v3196 = vunpack.c.h.b16 %v2702
        %v3197 = vunpack.c.l.b16 %v2703
        %v3198 = vunpack.c.h.b16 %v2703
        %v3199 = vunpack.c.l.b16 %v2704
        %v3200 = vunpack.c.h.b16 %v2704
        %v3201 = vunpack.c.l.b16 %v2705
        %v3202 = vunpack.c.l.b16 %v2706
        %v3203 = vunpack.c.h.b16 %v2706
        %v3204 = vunpack.c.l.b16 %v2707
        %v3205 = vunpack.c.h.b16 %v2707
        %v3206 = vunpack.c.l.b16 %v2708
        %v3207 = vunpack.c.h.b16 %v2708
        %v3208 = vunpack.c.l.b16 %v2709
        %v3209 = vunpack.c.h.b16 %v2709
        %v3210 = vunpack.c.l.b16 %v2710
        %v3211 = vunpack.c.l.b16 %v2711
        %v3212 = vunpack.c.h.b16 %v2711
        %v3213 = vunpack.c.l.b16 %v2712
        %v3214 = vunpack.c.h.b16 %v2712
        %v3215 = vunpack.c.l.b16 %v2713
        %v3216 = vunpack.c.h.b16 %v2713
        %v3217 = vunpack.c.l.b16 %v2714
        %v3218 = vunpack.c.h.b16 %v2714
        %v3219 = vunpack.c.l.b16 %v2715
        %v3220 = vunpack.c.l.b16 %v2716
        %v3221 = vunpack.c.h.b16 %v2716
        %v3222 = vunpack.c.l.b16 %v2717
        %v3223 = vunpack.c.h.b16 %v2717
        %v3224 = vunpack.c.l.b16 %v2718
        %v3225 = vunpack.c.h.b16 %v2718
        %v3226 = vunpack.c.l.b16 %v2719
        %v3227 = vunpack.c.h.b16 %v2719
        %v3228 = vunpack.c.l.b16 %v2720
        %v3229 = vunpack.c.l.b16 %v2721
        %v3230 = vunpack.c.h.b16 %v2721
        %v3231 = vunpack.c.l.b16 %v2722
        %v3232 = vunpack.c.h.b16 %v2722
        %v3233 = vunpack.c.l.b16 %v2723
        %v3234 = vunpack.c.h.b16 %v2723
        %v3235 = vunpack.c.l.b16 %v2724
        %v3236 = vunpack.c.h.b16 %v2724
        %v3237 = vunpack.c.l.b16 %v2725
        %v3238 = vunpack.c.l.b16 %v2726
        %v3239 = vunpack.c.h.b16 %v2726
        %v3240 = vunpack.c.l.b16 %v2727
        %v3241 = vunpack.c.h.b16 %v2727
        %v3242 = vunpack.c.l.b16 %v2728
        %v3243 = vunpack.c.h.b16 %v2728
        %v3244 = vunpack.c.l.b16 %v2729
        %v3245 = vunpack.c.h.b16 %v2729
        %v3246 = vunpack.c.l.b16 %v2730
        %v3247 = vunpack.c.l.b16 %v2731
        %v3248 = vunpack.c.h.b16 %v2731
        %v3249 = vunpack.c.l.b16 %v2732
        %v3250 = vunpack.c.h.b16 %v2732
        %v3251 = vunpack.c.l.b16 %v2733
        %v3252 = vunpack.c.h.b16 %v2733
        %v3253 = vunpack.c.l.b16 %v2734
        %v3254 = vunpack.c.h.b16 %v2734
        %v3255 = vunpack.c.l.b16 %v2735
        %v3256 = vunpack.c.l.b16 %v2736
        %v3257 = vunpack.c.h.b16 %v2736
        %v3258 = vunpack.c.l.b16 %v2737
        %v3259 = vunpack.c.h.b16 %v2737
        %v3260 = vunpack.c.l.b16 %v2738
        %v3261 = vunpack.c.h.b16 %v2738
        %v3262 = vunpack.c.l.b16 %v2739
        %v3263 = vunpack.c.h.b16 %v2739
        %v3264 = vunpack.c.l.b16 %v2740
        %v3265 = vunpack.c.l.b16 %v2741
        %v3266 = vunpack.c.h.b16 %v2741
        %v3267 = vunpack.c.l.b16 %v2742
        %v3268 = vunpack.c.h.b16 %v2742
        %v3269 = vunpack.c.l.b16 %v2743
        %v3270 = vunpack.c.h.b16 %v2743
        %v3271 = vunpack.c.l.b16 %v2744
        %v3272 = vunpack.c.h.b16 %v2744
        %v3273 = vunpack.c.l.b16 %v2745
        %v3274 = vunpack.c.l.b16 %v2746
        %v3275 = vunpack.c.h.b16 %v2746
        %v3276 = vunpack.c.l.b16 %v2747
        %v3277 = vunpack.c.h.b16 %v2747
        %v3278 = vunpack.c.l.b16 %v2748
        %v3279 = vunpack.c.h.b16 %v2748
        %v3280 = vunpack.c.l.b16 %v2749
        %v3281 = vunpack.c.h.b16 %v2749
        %v3282 = vunpack.c.l.b16 %v2750
        %v3283 = vunpack.c.l.b16 %v2751
        %v3284 = vunpack.c.h.b16 %v2751
        %v3285 = vunpack.c.l.b16 %v2752
        %v3286 = vunpack.c.h.b16 %v2752
        %v3287 = vunpack.c.l.b16 %v2753
        %v3288 = vunpack.c.h.b16 %v2753
        %v3289 = vunpack.c.l.b16 %v2754
        %v3290 = vunpack.c.h.b16 %v2754
        %v3291 = vunpack.c.l.b16 %v2755
        %v3292 = vunpack.c.l.b16 %v2756
        %v3293 = vunpack.c.h.b16 %v2756
        %v3294 = vunpack.c.l.b16 %v2757
        %v3295 = vunpack.c.h.b16 %v2757
        %v3296 = vunpack.c.l.b16 %v2758
        %v3297 = vunpack.c.h.b16 %v2758
        %v3298 = vunpack.c.l.b16 %v2759
        %v3299 = vunpack.c.h.b16 %v2759
        %v3300 = vunpack.c.l.b16 %v2760
        %v3301 = vunpack.c.l.b16 %v2761
        %v3302 = vunpack.c.h.b16 %v2761
        %v3303 = vunpack.c.l.b16 %v2762
        %v3304 = vunpack.c.h.b16 %v2762
        %v3305 = vunpack.c.l.b16 %v2763
        %v3306 = vunpack.c.h.b16 %v2763
        %v3307 = vunpack.c.l.b16 %v2764
        %v3308 = vunpack.c.h.b16 %v2764
        %v3309 = vunpack.c.l.b16 %v2765
        %v3310 = vunpack.c.l.b16 %v2766
        %v3311 = vunpack.c.h.b16 %v2766
        %v3312 = vunpack.c.l.b16 %v2767
        %v3313 = vunpack.c.h.b16 %v2767
        %v3314 = vunpack.c.l.b16 %v2768
        %v3315 = vunpack.c.h.b16 %v2768
        %v3316 = vunpack.c.l.b16 %v2769
        %v3317 = vunpack.c.h.b16 %v2769
        %v3318 = vunpack.c.l.b16 %v2770
        %v3319 = vunpack.c.l.b16 %v2771
        %v3320 = vunpack.c.h.b16 %v2771
        %v3321 = vunpack.c.l.b16 %v2772
        %v3322 = vunpack.c.h.b16 %v2772
        %v3323 = vunpack.c.l.b16 %v2773
        %v3324 = vunpack.c.h.b16 %v2773
        %v3325 = vunpack.c.l.b16 %v2774
        %v3326 = vunpack.c.h.b16 %v2774
        %v3327 = vunpack.c.l.b16 %v2775
        %v3328 = vunpack.c.l.b16 %v2776
        %v3329 = vunpack.c.h.b16 %v2776
        %v3330 = vunpack.c.l.b16 %v2777
        %v3331 = vunpack.c.h.b16 %v2777
        %v3332 = vunpack.c.l.b16 %v2778
        %v3333 = vunpack.c.h.b16 %v2778
        %v3334 = vunpack.c.l.b16 %v2779
        %v3335 = vunpack.c.h.b16 %v2779
        %v3336 = vunpack.c.l.b16 %v2780
        %v3337 = vunpack.c.l.b16 %v2781
        %v3338 = vunpack.c.h.b16 %v2781
        %v3339 = vunpack.c.l.b16 %v2782
        %v3340 = vunpack.c.h.b16 %v2782
        %v3341 = vunpack.c.l.b16 %v2783
        %v3342 = vunpack.c.h.b16 %v2783
        %v3343 = vunpack.c.l.b16 %v2784
        %v3344 = vunpack.c.h.b16 %v2784
        %v3345 = vunpack.c.l.b16 %v2785
        %v3346 = vunpack.c.l.b16 %v2786
        %v3347 = vunpack.c.h.b16 %v2786
        %v3348 = vunpack.c.l.b16 %v2787
        %v3349 = vunpack.c.h.b16 %v2787
        %v3350 = vunpack.c.l.b16 %v2788
        %v3351 = vunpack.c.h.b16 %v2788
        %v3352 = vunpack.c.l.b16 %v2789
        %v3353 = vunpack.c.h.b16 %v2789
        %v3354 = vunpack.c.l.b16 %v2790
        %v3355 = vunpack.c.l.b16 %v2791
        %v3356 = vunpack.c.h.b16 %v2791
        %v3357 = vunpack.c.l.b16 %v2792
        %v3358 = vunpack.c.h.b16 %v2792
        %v3359 = vunpack.c.l.b16 %v2793
        %v3360 = vunpack.c.h.b16 %v2793
        %v3361 = vunpack.c.l.b16 %v2794
        %v3362 = vunpack.c.h.b16 %v2794
        %v3363 = vunpack.c.l.b16 %v2795
        %v3364 = vunpack.c.l.b16 %v2796
        %v3365 = vunpack.c.h.b16 %v2796
        %v3366 = vunpack.c.l.b16 %v2797
        %v3367 = vunpack.c.h.b16 %v2797
        %v3368 = vunpack.c.l.b16 %v2798
        %v3369 = vunpack.c.h.b16 %v2798
        %v3370 = vunpack.c.l.b16 %v2799
        %v3371 = vunpack.c.h.b16 %v2799
        %v3372 = vunpack.c.l.b16 %v2800
        %v3373 = vunpack.c.l.b16 %v2801
        %v3374 = vunpack.c.h.b16 %v2801
        %v3375 = vunpack.c.l.b16 %v2802
        %v3376 = vunpack.c.h.b16 %v2802
        %v3377 = vunpack.c.l.b16 %v2803
        %v3378 = vunpack.c.h.b16 %v2803
        %v3379 = vunpack.c.l.b16 %v2804
        %v3380 = vunpack.c.h.b16 %v2804
        %v3381 = vunpack.c.l.b16 %v2805
        %v3382 = vunpack.c.l.b16 %v2806
        %v3383 = vunpack.c.h.b16 %v2806
        %v3384 = vunpack.c.l.b16 %v2807
        %v3385 = vunpack.c.h.b16 %v2807
        %v3386 = vunpack.c.l.b16 %v2808
        %v3387 = vunpack.c.h.b16 %v2808
        %v3388 = vunpack.c.l.b16 %v2809
        %v3389 = vunpack.c.h.b16 %v2809
        %v3390 = vunpack.c.l.b16 %v2810
        %v3391 = vunpack.c.l.b16 %v2811
        %v3392 = vunpack.c.h.b16 %v2811
        %v3393 = vunpack.c.l.b16 %v2812
        %v3394 = vunpack.c.h.b16 %v2812
        %v3395 = vunpack.c.l.b16 %v2813
        %v3396 = vunpack.c.h.b16 %v2813
        %v3397 = vunpack.c.l.b16 %v2814
        %v3398 = vunpack.c.h.b16 %v2814
        %v3399 = vunpack.c.l.b16 %v2815
        %v3400 = vunpack.c.l.b16 %v2816
        %v3401 = vunpack.c.h.b16 %v2816
        %v3402 = vunpack.c.l.b16 %v2817
        %v3403 = vunpack.c.h.b16 %v2817
        %v3404 = vunpack.c.l.b16 %v2818
        %v3405 = vunpack.c.h.b16 %v2818
        %v3406 = vunpack.c.l.b16 %v2819
        %v3407 = vunpack.c.h.b16 %v2819
        %v3408 = vunpack.c.l.b16 %v2820
        %v3409 = vunpack.c.l.b16 %v2821
        %v3410 = vunpack.c.h.b16 %v2821
        %v3411 = vunpack.c.l.b16 %v2822
        %v3412 = vunpack.c.h.b16 %v2822
        %v3413 = vunpack.c.l.b16 %v2823
        %v3414 = vunpack.c.h.b16 %v2823
        %v3415 = vunpack.c.l.b16 %v2824
        %v3416 = vunpack.c.h.b16 %v2824
        %v3417 = vunpack.c.l.b16 %v2825
        %v3418 = vpack.c.b16 %v3139, %v3130
        %v3419 = vpack.c.b16 %v3140, %v3131
        %v3420 = vpack.c.b16 %v3141, %v3132
        %v3421 = vpack.c.b16 %v3142, %v3133
        %v3422 = vpack.c.b16 %v3143, %v3134
        %v3423 = vpack.c.b16 %v3144, %v3135
        %v3424 = vpack.c.b16 %v3145, %v3136
        %v3425 = vpack.c.b16 %v3146, %v3137
        %v3426 = vpack.c.b16 %v3147, %v3138
        %v3427 = vpack.c.b16 %v3157, %v3148
        %v3428 = vpack.c.b16 %v3158, %v3149
        %v3429 = vpack.c.b16 %v3159, %v3150
        %v3430 = vpack.c.b16 %v3160, %v3151
        %v3431 = vpack.c.b16 %v3161, %v3152
        %v3432 = vpack.c.b16 %v3162, %v3153
        %v3433 = vpack.c.b16 %v3163, %v3154
        %v3434 = vpack.c.b16 %v3164, %v3155
        %v3435 = vpack.c.b16 %v3165, %v3156
        %v3436 = vpack.c.b16 %v3175, %v3166
        %v3437 = vpack.c.b16 %v3176, %v3167
        %v3438 = vpack.c.b16 %v3177, %v3168
        %v3439 = vpack.c.b16 %v3178, %v3169
        %v3440 = vpack.c.b16 %v3179, %v3170
        %v3441 = vpack.c.b16 %v3180, %v3171
        %v3442 = vpack.c.b16 %v3181, %v3172
        %v3443 = vpack.c.b16 %v3182, %v3173
        %v3444 = vpack.c.b16 %v3183, %v3174
        %v3445 = vpack.c.b16 %v3193, %v3184
        %v3446 = vpack.c.b16 %v3194, %v3185
        %v3447 = vpack.c.b16 %v3195, %v3186
        %v3448 = vpack.c.b16 %v3196, %v3187
        %v3449 = vpack.c.b16 %v3197, %v3188
        %v3450 = vpack.c.b16 %v3198, %v3189
        %v3451 = vpack.c.b16 %v3199, %v3190
        %v3452 = vpack.c.b16 %v3200, %v3191
        %v3453 = vpack.c.b16 %v3201, %v3192
        %v3454 = vpack.c.b16 %v3211, %v3202
        %v3455 = vpack.c.b16 %v3212, %v3203
        %v3456 = vpack.c.b16 %v3213, %v3204
        %v3457 = vpack.c.b16 %v3214, %v3205
        %v3458 = vpack.c.b16 %v3215, %v3206
        %v3459 = vpack.c.b16 %v3216, %v3207
        %v3460 = vpack.c.b16 %v3217, %v3208
        %v3461 = vpack.c.b16 %v3218, %v3209
        %v3462 = vpack.c.b16 %v3219, %v3210
        %v3463 = vpack.c.b16 %v3229, %v3220
        %v3464 = vpack.c.b16 %v3230, %v3221
        %v3465 = vpack.c.b16 %v3231, %v3222
        %v3466 = vpack.c.b16 %v3232, %v3223
        %v3467 = vpack.c.b16 %v3233, %v3224
        %v3468 = vpack.c.b16 %v3234, %v3225
        %v3469 = vpack.c.b16 %v3235, %v3226
        %v3470 = vpack.c.b16 %v3236, %v3227
        %v3471 = vpack.c.b16 %v3237, %v3228
        %v3472 = vpack.c.b16 %v3247, %v3238
        %v3473 = vpack.c.b16 %v3248, %v3239
        %v3474 = vpack.c.b16 %v3249, %v3240
        %v3475 = vpack.c.b16 %v3250, %v3241
        %v3476 = vpack.c.b16 %v3251, %v3242
        %v3477 = vpack.c.b16 %v3252, %v3243
        %v3478 = vpack.c.b16 %v3253, %v3244
        %v3479 = vpack.c.b16 %v3254, %v3245
        %v3480 = vpack.c.b16 %v3255, %v3246
        %v3481 = vpack.c.b16 %v3265, %v3256
        %v3482 = vpack.c.b16 %v3266, %v3257
        %v3483 = vpack.c.b16 %v3267, %v3258
        %v3484 = vpack.c.b16 %v3268, %v3259
        %v3485 = vpack.c.b16 %v3269, %v3260
        %v3486 = vpack.c.b16 %v3270, %v3261
        %v3487 = vpack.c.b16 %v3271, %v3262
        %v3488 = vpack.c.b16 %v3272, %v3263
        %v3489 = vpack.c.b16 %v3273, %v3264
        %v3490 = vpack.c.b16 %v3283, %v3274
        %v3491 = vpack.c.b16 %v3284, %v3275
        %v3492 = vpack.c.b16 %v3285, %v3276
        %v3493 = vpack.c.b16 %v3286, %v3277
        %v3494 = vpack.c.b16 %v3287, %v3278
        %v3495 = vpack.c.b16 %v3288, %v3279
        %v3496 = vpack.c.b16 %v3289, %v3280
        %v3497 = vpack.c.b16 %v3290, %v3281
        %v3498 = vpack.c.b16 %v3291, %v3282
        %v3499 = vpack.c.b16 %v3301, %v3292
        %v3500 = vpack.c.b16 %v3302, %v3293
        %v3501 = vpack.c.b16 %v3303, %v3294
        %v3502 = vpack.c.b16 %v3304, %v3295
        %v3503 = vpack.c.b16 %v3305, %v3296
        %v3504 = vpack.c.b16 %v3306, %v3297
        %v3505 = vpack.c.b16 %v3307, %v3298
        %v3506 = vpack.c.b16 %v3308, %v3299
        %v3507 = vpack.c.b16 %v3309, %v3300
        %v3508 = vpack.c.b16 %v3319, %v3310
        %v3509 = vpack.c.b16 %v3320, %v3311
        %v3510 = vpack.c.b16 %v3321, %v3312
        %v3511 = vpack.c.b16 %v3322, %v3313
        %v3512 = vpack.c.b16 %v3323, %v3314
        %v3513 = vpack.c.b16 %v3324, %v3315
        %v3514 = vpack.c.b16 %v3325, %v3316
        %v3515 = vpack.c.b16 %v3326, %v3317
        %v3516 = vpack.c.b16 %v3327, %v3318
        %v3517 = vpack.c.b16 %v3337, %v3328
        %v3518 = vpack.c.b16 %v3338, %v3329
        %v3519 = vpack.c.b16 %v3339, %v3330
        %v3520 = vpack.c.b16 %v3340, %v3331
        %v3521 = vpack.c.b16 %v3341, %v3332
        %v3522 = vpack.c.b16 %v3342, %v3333
        %v3523 = vpack.c.b16 %v3343, %v3334
        %v3524 = vpack.c.b16 %v3344, %v3335
        %v3525 = vpack.c.b16 %v3345, %v3336
        %v3526 = vpack.c.b16 %v3355, %v3346
        %v3527 = vpack.c.b16 %v3356, %v3347
        %v3528 = vpack.c.b16 %v3357, %v3348
        %v3529 = vpack.c.b16 %v3358, %v3349
        %v3530 = vpack.c.b16 %v3359, %v3350
        %v3531 = vpack.c.b16 %v3360, %v3351
        %v3532 = vpack.c.b16 %v3361, %v3352
        %v3533 = vpack.c.b16 %v3362, %v3353
        %v3534 = vpack.c.b16 %v3363, %v3354
        %v3535 = vpack.c.b16 %v3373, %v3364
        %v3536 = vpack.c.b16 %v3374, %v3365
        %v3537 = vpack.c.b16 %v3375, %v3366
        %v3538 = vpack.c.b16 %v3376, %v3367
        %v3539 = vpack.c.b16 %v3377, %v3368
        %v3540 = vpack.c.b16 %v3378, %v3369
        %v3541 = vpack.c.b16 %v3379, %v3370
        %v3542 = vpack.c.b16 %v3380, %v3371
        %v3543 = vpack.c.b16 %v3381, %v3372
        %v3544 = vpack.c.b16 %v3391, %v3382
        %v3545 = vpack.c.b16 %v3392, %v3383
        %v3546 = vpack.c.b16 %v3393, %v3384
        %v3547 = vpack.c.b16 %v3394, %v3385
        %v3548 = vpack.c.b16 %v3395, %v3386
        %v3549 = vpack.c.b16 %v3396, %v3387
        %v3550 = vpack.c.b16 %v3397, %v3388
        %v3551 = vpack.c.b16 %v3398, %v3389
        %v3552 = vpack.c.b16 %v3399, %v3390
        %v3553 = vpack.c.b16 %v3409, %v3400
        %v3554 = vpack.c.b16 %v3410, %v3401
        %v3555 = vpack.c.b16 %v3411, %v3402
        %v3556 = vpack.c.b16 %v3412, %v3403
        %v3557 = vpack.c.b16 %v3413, %v3404
        %v3558 = vpack.c.b16 %v3414, %v3405
        %v3559 = vpack.c.b16 %v3415, %v3406
        %v3560 = vpack.c.b16 %v3416, %v3407
        %v3561 = vpack.c.b16 %v3417, %v3408
        %v3850 = vunpack.c.l.b16 %v2826
        %v3851 = vunpack.c.l.b16 %v2827
        %v3852 = vunpack.c.l.b16 %v2828
        %v3853 = vunpack.c.l.b16 %v2829
        %v3854 = vunpack.c.l.b16 %v2830
        %v3855 = vunpack.c.l.b16 %v2831
        %v3856 = vunpack.c.l.b16 %v2832
        %v3857 = vunpack.c.l.b16 %v2833
        %v3858 = vunpack.c.l.b16 %v2834
        %v3859 = vunpack.c.l.b16 %v2835
        %v3860 = vunpack.c.l.b16 %v2836
        %v3861 = vunpack.c.l.b16 %v2837
        %v3862 = vunpack.c.l.b16 %v2838
        %v3863 = vunpack.c.l.b16 %v2839
        %v3864 = vunpack.c.l.b16 %v2840
        %v3865 = vunpack.c.l.b16 %v2841
        %v3866 = vunpack.c.l.b16 %v2842
        %v3867 = vunpack.c.l.b16 %v2843
        %v3868 = vunpack.c.l.b16 %v2844
        %v3869 = vunpack.c.l.b16 %v2845
        %v3870 = vunpack.c.l.b16 %v2846
        %v3871 = vunpack.c.l.b16 %v2847
        %v3872 = vunpack.c.l.b16 %v2848
        %v3873 = vunpack.c.l.b16 %v2849
        %v3874 = vunpack.c.l.b16 %v2850
        %v3875 = vunpack.c.l.b16 %v2851
        %v3876 = vunpack.c.l.b16 %v2852
        %v3877 = vunpack.c.l.b16 %v2853
        %v3878 = vunpack.c.l.b16 %v2854
        %v3879 = vunpack.c.l.b16 %v2855
        %v3880 = vunpack.c.l.b16 %v2856
        %v3881 = vunpack.c.l.b16 %v2857
        %v3882 = vunpack.c.l.b16 %v2858
        %v3883 = vunpack.c.l.b16 %v2859
        %v3884 = vunpack.c.l.b16 %v2860
        %v3885 = vunpack.c.l.b16 %v2861
        %v3886 = vunpack.c.l.b16 %v2862
        %v3887 = vunpack.c.l.b16 %v2863
        %v3888 = vunpack.c.l.b16 %v2864
        %v3889 = vunpack.c.l.b16 %v2865
        %v3890 = vunpack.c.l.b16 %v2866
        %v3891 = vunpack.c.l.b16 %v2867
        %v3892 = vunpack.c.l.b16 %v2868
        %v3893 = vunpack.c.l.b16 %v2869
        %v3894 = vunpack.c.l.b16 %v2870
        %v3895 = vunpack.c.l.b16 %v2871
        %v3896 = vunpack.c.l.b16 %v2872
        %v3897 = vunpack.c.l.b16 %v2873
        %v3898 = vunpack.c.l.b16 %v2874
        %v3899 = vunpack.c.l.b16 %v2875
        %v3900 = vunpack.c.l.b16 %v2876
        %v3901 = vunpack.c.l.b16 %v2877
        %v3902 = vunpack.c.l.b16 %v2878
        %v3903 = vunpack.c.l.b16 %v2879
        %v3904 = vunpack.c.l.b16 %v2880
        %v3905 = vunpack.c.l.b16 %v2881
        %v3906 = vunpack.c.l.b16 %v2882
        %v3907 = vunpack.c.l.b16 %v2883
        %v3908 = vunpack.c.l.b16 %v2884
        %v3909 = vunpack.c.l.b16 %v2885
        %v3910 = vunpack.c.l.b16 %v2886
        %v3911 = vunpack.c.l.b16 %v2887
        %v3912 = vunpack.c.l.b16 %v2888
        %v3913 = vunpack.c.l.b16 %v2889
        %v3914 = vunpack.c.l.b16 %v2890
        %v3915 = vunpack.c.l.b16 %v2891
        %v3916 = vunpack.c.l.b16 %v2892
        %v3917 = vunpack.c.l.b16 %v2893
        %v3918 = vunpack.c.l.b16 %v2894
        %v3919 = vunpack.c.l.b16 %v2895
        %v3920 = vunpack.c.l.b16 %v2896
        %v3921 = vunpack.c.l.b16 %v2897
        %v3922 = vunpack.c.l.b16 %v2898
        %v3923 = vunpack.c.l.b16 %v2899
        %v3924 = vunpack.c.l.b16 %v2900
        %v3925 = vunpack.c.l.b16 %v2901
        %v3926 = vunpack.c.l.b16 %v2902
        %v3927 = vunpack.c.l.b16 %v2903
        %v3928 = vunpack.c.l.b16 %v2904
        %v3929 = vunpack.c.l.b16 %v2905
        %v3930 = vunpack.c.l.b16 %v2906
        %v3931 = vunpack.c.l.b16 %v2907
        %v3932 = vunpack.c.l.b16 %v2908
        %v3933 = vunpack.c.l.b16 %v2909
        %v3934 = vunpack.c.l.b16 %v2910
        %v3935 = vunpack.c.l.b16 %v2911
        %v3936 = vunpack.c.l.b16 %v2912
        %v3937 = vunpack.c.l.b16 %v2913
        %v3938 = vunpack.c.l.b16 %v2914
        %v3939 = vunpack.c.l.b16 %v2915
        %v3940 = vunpack.c.l.b16 %v2916
        %v3941 = vunpack.c.l.b16 %v2917
        %v3942 = vunpack.c.l.b16 %v2918
        %v3943 = vunpack.c.l.b16 %v2919
        %v3944 = vunpack.c.l.b16 %v2920
        %v3945 = vunpack.c.l.b16 %v2921
        %v3946 = vunpack.c.l.b16 %v2922
        %v3947 = vunpack.c.l.b16 %v2923
        %v3948 = vunpack.c.l.b16 %v2924
        %v3949 = vunpack.c.l.b16 %v2925
        %v3950 = vunpack.c.l.b16 %v2926
        %v3951 = vunpack.c.l.b16 %v2927
        %v3952 = vunpack.c.l.b16 %v2928
        %v3953 = vunpack.c.l.b16 %v2929
        %v3954 = vunpack.c.l.b16 %v2930
        %v3955 = vunpack.c.l.b16 %v2931
        %v3956 = vunpack.c.l.b16 %v2932
        %v3957 = vunpack.c.l.b16 %v2933
        %v3958 = vunpack.c.l.b16 %v2934
        %v3959 = vunpack.c.l.b16 %v2935
        %v3960 = vunpack.c.l.b16 %v2936
        %v3961 = vunpack.c.l.b16 %v2937
        %v3962 = vunpack.c.l.b16 %v2938
        %v3963 = vunpack.c.l.b16 %v2939
        %v3964 = vunpack.c.l.b16 %v2940
        %v3965 = vunpack.c.l.b16 %v2941
        %v3966 = vunpack.c.l.b16 %v2942
        %v3967 = vunpack.c.l.b16 %v2943
        %v3968 = vunpack.c.l.b16 %v2944
        %v3969 = vunpack.c.l.b16 %v2945
        %v3970 = vunpack.c.l.b16 %v2946
        %v3971 = vunpack.c.l.b16 %v2947
        %v3972 = vunpack.c.l.b16 %v2948
        %v3973 = vunpack.c.l.b16 %v2949
        %v3974 = vunpack.c.l.b16 %v2950
        %v3975 = vunpack.c.l.b16 %v2951
        %v3976 = vunpack.c.l.b16 %v2952
        %v3977 = vunpack.c.l.b16 %v2953
        %v3978 = vunpack.c.l.b16 %v2954
        %v3979 = vunpack.c.l.b16 %v2955
        %v3980 = vunpack.c.l.b16 %v2956
        %v3981 = vunpack.c.l.b16 %v2957
        %v3982 = vunpack.c.l.b16 %v2958
        %v3983 = vunpack.c.l.b16 %v2959
        %v3984 = vunpack.c.l.b16 %v2960
        %v3985 = vunpack.c.l.b16 %v2961
        %v3986 = vunpack.c.l.b16 %v2962
        %v3987 = vunpack.c.l.b16 %v2963
        %v3988 = vunpack.c.l.b16 %v2964
        %v3989 = vunpack.c.l.b16 %v2965
        %v3990 = vunpack.c.l.b16 %v2966
        %v3991 = vunpack.c.l.b16 %v2967
        %v3992 = vunpack.c.l.b16 %v2968
        %v3993 = vunpack.c.l.b16 %v2969
        %v3994 = vpack.c.b16 %v3851, %v3850
        %v3995 = vpack.c.b16 %v3853, %v3852
        %v3996 = vpack.c.b16 %v3855, %v3854
        %v3997 = vpack.c.b16 %v3857, %v3856
        %v3998 = vpack.c.b16 %v3859, %v3858
        %v3999 = vpack.c.b16 %v3861, %v3860
        %v4000 = vpack.c.b16 %v3863, %v3862
        %v4001 = vpack.c.b16 %v3865, %v3864
        %v4002 = vpack.c.b16 %v3867, %v3866
        %v4003 = vpack.c.b16 %v3869, %v3868
        %v4004 = vpack.c.b16 %v3871, %v3870
        %v4005 = vpack.c.b16 %v3873, %v3872
        %v4006 = vpack.c.b16 %v3875, %v3874
        %v4007 = vpack.c.b16 %v3877, %v3876
        %v4008 = vpack.c.b16 %v3879, %v3878
        %v4009 = vpack.c.b16 %v3881, %v3880
        %v4010 = vpack.c.b16 %v3883, %v3882
        %v4011 = vpack.c.b16 %v3885, %v3884
        %v4012 = vpack.c.b16 %v3887, %v3886
        %v4013 = vpack.c.b16 %v3889, %v3888
        %v4014 = vpack.c.b16 %v3891, %v3890
        %v4015 = vpack.c.b16 %v3893, %v3892
        %v4016 = vpack.c.b16 %v3895, %v3894
        %v4017 = vpack.c.b16 %v3897, %v3896
        %v4018 = vpack.c.b16 %v3899, %v3898
        %v4019 = vpack.c.b16 %v3901, %v3900
        %v4020 = vpack.c.b16 %v3903, %v3902
        %v4021 = vpack.c.b16 %v3905, %v3904
        %v4022 = vpack.c.b16 %v3907, %v3906
        %v4023 = vpack.c.b16 %v3909, %v3908
        %v4024 = vpack.c.b16 %v3911, %v3910
        %v4025 = vpack.c.b16 %v3913, %v3912
        %v4026 = vpack.c.b16 %v3915, %v3914
        %v4027 = vpack.c.b16 %v3917, %v3916
        %v4028 = vpack.c.b16 %v3919, %v3918
        %v4029 = vpack.c.b16 %v3921, %v3920
        %v4030 = vpack.c.b16 %v3923, %v3922
        %v4031 = vpack.c.b16 %v3925, %v3924
        %v4032 = vpack.c.b16 %v3927, %v3926
        %v4033 = vpack.c.b16 %v3929, %v3928
        %v4034 = vpack.c.b16 %v3931, %v3930
        %v4035 = vpack.c.b16 %v3933, %v3932
        %v4036 = vpack.c.b16 %v3935, %v3934
        %v4037 = vpack.c.b16 %v3937, %v3936
        %v4038 = vpack.c.b16 %v3939, %v3938
        %v4039 = vpack.c.b16 %v3941, %v3940
        %v4040 = vpack.c.b16 %v3943, %v3942
        %v4041 = vpack.c.b16 %v3945, %v3944
        %v4042 = vpack.c.b16 %v3947, %v3946
        %v4043 = vpack.c.b16 %v3949, %v3948
        %v4044 = vpack.c.b16 %v3951, %v3950
        %v4045 = vpack.c.b16 %v3953, %v3952
        %v4046 = vpack.c.b16 %v3955, %v3954
        %v4047 = vpack.c.b16 %v3957, %v3956
        %v4048 = vpack.c.b16 %v3959, %v3958
        %v4049 = vpack.c.b16 %v3961, %v3960
        %v4050 = vpack.c.b16 %v3963, %v3962
        %v4051 = vpack.c.b16 %v3965, %v3964
        %v4052 = vpack.c.b16 %v3967, %v3966
        %v4053 = vpack.c.b16 %v3969, %v3968
        %v4054 = vpack.c.b16 %v3971, %v3970
        %v4055 = vpack.c.b16 %v3973, %v3972
        %v4056 = vpack.c.b16 %v3975, %v3974
        %v4057 = vpack.c.b16 %v3977, %v3976
        %v4058 = vpack.c.b16 %v3979, %v3978
        %v4059 = vpack.c.b16 %v3981, %v3980
        %v4060 = vpack.c.b16 %v3983, %v3982
        %v4061 = vpack.c.b16 %v3985, %v3984
        %v4062 = vpack.c.b16 %v3987, %v3986
        %v4063 = vpack.c.b16 %v3989, %v3988
        %v4064 = vpack.c.b16 %v3991, %v3990
        %v4065 = vpack.c.b16 %v3993, %v3992
        %4138 = vmatprep.subr.bf16.mxu0 0
        %4139 = vmatpush1.bf16.msra.mxu0 %v4001
        %4140 = vmatprep.subr.bf16.mxu0 0
        %4141 = vmatpush1.bf16.msra.mxu0 %v4000
        %4142 = vmatprep.subr.bf16.mxu0 0
        %4143 = vmatpush1.bf16.msra.mxu0 %v3999
        %4144 = vmatprep.subr.bf16.mxu0 0
        %4145 = vmatpush1.bf16.msra.mxu0 %v3998
        %4146 = vmatprep.subr.bf16.mxu0 0
        %4147 = vmatpush1.bf16.msra.mxu0 %v3997
        %4148 = vmatprep.subr.bf16.mxu0 0
        %4149 = vmatpush1.bf16.msra.mxu0 %v3996
        %4150 = vmatprep.subr.bf16.mxu0 0
        %4151 = vmatpush1.bf16.msra.mxu0 %v3995
        %4152 = vmatprep.subr.bf16.mxu0 0
        %4153 = vmatpush1.bf16.msra.mxu0 %v3994
        %4154 = vmatprep.subr.bf16.mxu0 0
        %4155 = vmatpush2.bf16.msra.mxu0 %v4009
        %4156 = vmatprep.subr.bf16.mxu0 0
        %4157 = vmatpush2.bf16.msra.mxu0 %v4008
        %4158 = vmatprep.subr.bf16.mxu0 0
        %4159 = vmatpush2.bf16.msra.mxu0 %v4007
        %4160 = vmatprep.subr.bf16.mxu0 0
        %4161 = vmatpush2.bf16.msra.mxu0 %v4006
        %4162 = vmatprep.subr.bf16.mxu0 0
        %4163 = vmatpush2.bf16.msra.mxu0 %v4005
        %4164 = vmatprep.subr.bf16.mxu0 0
        %4165 = vmatpush2.bf16.msra.mxu0 %v4004
        %4166 = vmatprep.subr.bf16.mxu0 0
        %4167 = vmatpush2.bf16.msra.mxu0 %v4003
        %4168 = vmatprep.subr.bf16.mxu0 0
        %4169 = vmatpush2.bf16.msra.mxu0 %v4002
        %4170 = vmatprep.mubr.bf16.mxu0 %v3419
        %4171 = vmatmul.mubr.bf16.gmra.mxu0 %v3418
        %v4172 = vpop.f32.mrf.mxu0
        %v4173 = vadd.f32 0.0, %v4172
        %v4174 = vpop.f32.mrf.mxu0
        %v4175 = vpop.f32.mrf.mxu0
        %v4176 = vadd.f32 0.0, %v4175
        %v4177 = vpop.f32.mrf.mxu0
        %4178 = vmatprep.mubr.bf16.mxu0 %v3428
        %4179 = vmatmul.mubr.bf16.gmra.mxu0 %v3427
        %v4180 = vpop.f32.mrf.mxu0
        %v4181 = vadd.f32 0.0, %v4180
        %v4182 = vpop.f32.mrf.mxu0
        %v4183 = vpop.f32.mrf.mxu0
        %v4184 = vadd.f32 0.0, %v4183
        %v4185 = vpop.f32.mrf.mxu0
        %4186 = vmatprep.mubr.bf16.mxu0 %v3437
        %4187 = vmatmul.mubr.bf16.gmra.mxu0 %v3436
        %v4188 = vpop.f32.mrf.mxu0
        %v4189 = vadd.f32 0.0, %v4188
        %v4190 = vpop.f32.mrf.mxu0
        %v4191 = vpop.f32.mrf.mxu0
        %v4192 = vadd.f32 0.0, %v4191
        %v4193 = vpop.f32.mrf.mxu0
        %4194 = vmatprep.mubr.bf16.mxu0 %v3446
        %4195 = vmatmul.mubr.bf16.gmra.mxu0 %v3445
        %v4196 = vpop.f32.mrf.mxu0
        %v4197 = vadd.f32 0.0, %v4196
        %v4198 = vpop.f32.mrf.mxu0
        %v4199 = vpop.f32.mrf.mxu0
        %v4200 = vadd.f32 0.0, %v4199
        %v4201 = vpop.f32.mrf.mxu0
        %4202 = vmatprep.mubr.bf16.mxu0 %v3455
        %4203 = vmatmul.mubr.bf16.gmra.mxu0 %v3454
        %v4204 = vpop.f32.mrf.mxu0
        %v4205 = vadd.f32 0.0, %v4204
        %v4206 = vpop.f32.mrf.mxu0
        %v4207 = vpop.f32.mrf.mxu0
        %v4208 = vadd.f32 0.0, %v4207
        %v4209 = vpop.f32.mrf.mxu0
        %4210 = vmatprep.mubr.bf16.mxu0 %v3464
        %4211 = vmatmul.mubr.bf16.gmra.mxu0 %v3463
        %v4212 = vpop.f32.mrf.mxu0
        %v4213 = vadd.f32 0.0, %v4212
        %v4214 = vpop.f32.mrf.mxu0
        %v4215 = vpop.f32.mrf.mxu0
        %v4216 = vadd.f32 0.0, %v4215
        %v4217 = vpop.f32.mrf.mxu0
        %4218 = vmatprep.mubr.bf16.mxu0 %v3473
        %4219 = vmatmul.mubr.bf16.gmra.mxu0 %v3472
        %v4220 = vpop.f32.mrf.mxu0
        %v4221 = vadd.f32 0.0, %v4220
        %v4222 = vpop.f32.mrf.mxu0
        %v4223 = vpop.f32.mrf.mxu0
        %v4224 = vadd.f32 0.0, %v4223
        %v4225 = vpop.f32.mrf.mxu0
        %4226 = vmatprep.mubr.bf16.mxu0 %v3482
        %4227 = vmatmul.mubr.bf16.gmra.mxu0 %v3481
        %v4228 = vpop.f32.mrf.mxu0
        %v4229 = vadd.f32 0.0, %v4228
        %v4230 = vpop.f32.mrf.mxu0
        %v4231 = vpop.f32.mrf.mxu0
        %v4232 = vadd.f32 0.0, %v4231
        %v4233 = vpop.f32.mrf.mxu0
        %4234 = vmatprep.mubr.bf16.mxu0 %v3491
        %4235 = vmatmul.mubr.bf16.gmra.mxu0 %v3490
        %v4236 = vpop.f32.mrf.mxu0
        %v4237 = vadd.f32 0.0, %v4236
        %v4238 = vpop.f32.mrf.mxu0
        %v4239 = vpop.f32.mrf.mxu0
        %v4240 = vadd.f32 0.0, %v4239
        %v4241 = vpop.f32.mrf.mxu0
        %4242 = vmatprep.mubr.bf16.mxu0 %v3500
        %4243 = vmatmul.mubr.bf16.gmra.mxu0 %v3499
        %v4244 = vpop.f32.mrf.mxu0
        %v4245 = vadd.f32 0.0, %v4244
        %v4246 = vpop.f32.mrf.mxu0
        %v4247 = vpop.f32.mrf.mxu0
        %v4248 = vadd.f32 0.0, %v4247
        %v4249 = vpop.f32.mrf.mxu0
        %4250 = vmatprep.mubr.bf16.mxu0 %v3509
        %4251 = vmatmul.mubr.bf16.gmra.mxu0 %v3508
        %v4252 = vpop.f32.mrf.mxu0
        %v4253 = vadd.f32 0.0, %v4252
        %v4254 = vpop.f32.mrf.mxu0
        %v4255 = vpop.f32.mrf.mxu0
        %v4256 = vadd.f32 0.0, %v4255
        %v4257 = vpop.f32.mrf.mxu0
        %4258 = vmatprep.mubr.bf16.mxu0 %v3518
        %4259 = vmatmul.mubr.bf16.gmra.mxu0 %v3517
        %v4260 = vpop.f32.mrf.mxu0
        %v4261 = vadd.f32 0.0, %v4260
        %v4262 = vpop.f32.mrf.mxu0
        %v4263 = vpop.f32.mrf.mxu0
        %v4264 = vadd.f32 0.0, %v4263
        %v4265 = vpop.f32.mrf.mxu0
        %4266 = vmatprep.mubr.bf16.mxu0 %v3527
        %4267 = vmatmul.mubr.bf16.gmra.mxu0 %v3526
        %v4268 = vpop.f32.mrf.mxu0
        %v4269 = vadd.f32 0.0, %v4268
        %v4270 = vpop.f32.mrf.mxu0
        %v4271 = vpop.f32.mrf.mxu0
        %v4272 = vadd.f32 0.0, %v4271
        %v4273 = vpop.f32.mrf.mxu0
        %4274 = vmatprep.mubr.bf16.mxu0 %v3536
        %4275 = vmatmul.mubr.bf16.gmra.mxu0 %v3535
        %v4276 = vpop.f32.mrf.mxu0
        %v4277 = vadd.f32 0.0, %v4276
        %v4278 = vpop.f32.mrf.mxu0
        %v4279 = vpop.f32.mrf.mxu0
        %v4280 = vadd.f32 0.0, %v4279
        %v4281 = vpop.f32.mrf.mxu0
        %4282 = vmatprep.mubr.bf16.mxu0 %v3545
        %4283 = vmatmul.mubr.bf16.gmra.mxu0 %v3544
        %v4284 = vpop.f32.mrf.mxu0
        %v4285 = vadd.f32 0.0, %v4284
        %v4286 = vpop.f32.mrf.mxu0
        %v4287 = vpop.f32.mrf.mxu0
        %v4288 = vadd.f32 0.0, %v4287
        %v4289 = vpop.f32.mrf.mxu0
        %4290 = vmatprep.mubr.bf16.mxu0 %v3554
        %4291 = vmatmul.mubr.bf16.gmra.mxu0 %v3553
        %v4292 = vpop.f32.mrf.mxu0
        %v4293 = vadd.f32 0.0, %v4292
        %v4294 = vpop.f32.mrf.mxu0
        %v4295 = vpop.f32.mrf.mxu0
        %v4296 = vadd.f32 0.0, %v4295
        %v4297 = vpop.f32.mrf.mxu0
        %4298 = vdwg.mxu0
        %4299 = vmatprep.subr.bf16.mxu0 0
        %4300 = vmatpush1.bf16.msra.mxu0 %v4017
        %4301 = vmatprep.subr.bf16.mxu0 0
        %4302 = vmatpush1.bf16.msra.mxu0 %v4016
        %4303 = vmatprep.subr.bf16.mxu0 0
        %4304 = vmatpush1.bf16.msra.mxu0 %v4015
        %4305 = vmatprep.subr.bf16.mxu0 0
        %4306 = vmatpush1.bf16.msra.mxu0 %v4014
        %4307 = vmatprep.subr.bf16.mxu0 0
        %4308 = vmatpush1.bf16.msra.mxu0 %v4013
        %4309 = vmatprep.subr.bf16.mxu0 0
        %4310 = vmatpush1.bf16.msra.mxu0 %v4012
        %4311 = vmatprep.subr.bf16.mxu0 0
        %4312 = vmatpush1.bf16.msra.mxu0 %v4011
        %4313 = vmatprep.subr.bf16.mxu0 0
        %4314 = vmatpush1.bf16.msra.mxu0 %v4010
        %4315 = vmatprep.subr.bf16.mxu0 0
        %4316 = vmatpush2.bf16.msra.mxu0 %v4025
        %4317 = vmatprep.subr.bf16.mxu0 0
        %4318 = vmatpush2.bf16.msra.mxu0 %v4024
        %4319 = vmatprep.subr.bf16.mxu0 0
        %4320 = vmatpush2.bf16.msra.mxu0 %v4023
        %4321 = vmatprep.subr.bf16.mxu0 0
        %4322 = vmatpush2.bf16.msra.mxu0 %v4022
        %4323 = vmatprep.subr.bf16.mxu0 0
        %4324 = vmatpush2.bf16.msra.mxu0 %v4021
        %4325 = vmatprep.subr.bf16.mxu0 0
        %4326 = vmatpush2.bf16.msra.mxu0 %v4020
        %4327 = vmatprep.subr.bf16.mxu0 0
        %4328 = vmatpush2.bf16.msra.mxu0 %v4019
        %4329 = vmatprep.subr.bf16.mxu0 0
        %4330 = vmatpush2.bf16.msra.mxu0 %v4018
        %4331 = vmatprep.mubr.bf16.mxu0 %v3421
        %4332 = vmatmul.mubr.bf16.gmra.mxu0 %v3420
        %v4333 = vpop.f32.mrf.mxu0
        %v4334 = vadd.f32 %v4173, %v4333
        %v4335 = vpop.f32.mrf.mxu0
        %v4336 = vpop.f32.mrf.mxu0
        %v4337 = vadd.f32 %v4176, %v4336
        %v4338 = vpop.f32.mrf.mxu0
        %4339 = vmatprep.mubr.bf16.mxu0 %v3430
        %4340 = vmatmul.mubr.bf16.gmra.mxu0 %v3429
        %v4341 = vpop.f32.mrf.mxu0
        %v4342 = vadd.f32 %v4181, %v4341
        %v4343 = vpop.f32.mrf.mxu0
        %v4344 = vpop.f32.mrf.mxu0
        %v4345 = vadd.f32 %v4184, %v4344
        %v4346 = vpop.f32.mrf.mxu0
        %4347 = vmatprep.mubr.bf16.mxu0 %v3439
        %4348 = vmatmul.mubr.bf16.gmra.mxu0 %v3438
        %v4349 = vpop.f32.mrf.mxu0
        %v4350 = vadd.f32 %v4189, %v4349
        %v4351 = vpop.f32.mrf.mxu0
        %v4352 = vpop.f32.mrf.mxu0
        %v4353 = vadd.f32 %v4192, %v4352
        %v4354 = vpop.f32.mrf.mxu0
        %4355 = vmatprep.mubr.bf16.mxu0 %v3448
        %4356 = vmatmul.mubr.bf16.gmra.mxu0 %v3447
        %v4357 = vpop.f32.mrf.mxu0
        %v4358 = vadd.f32 %v4197, %v4357
        %v4359 = vpop.f32.mrf.mxu0
        %v4360 = vpop.f32.mrf.mxu0
        %v4361 = vadd.f32 %v4200, %v4360
        %v4362 = vpop.f32.mrf.mxu0
        %4363 = vmatprep.mubr.bf16.mxu0 %v3457
        %4364 = vmatmul.mubr.bf16.gmra.mxu0 %v3456
        %v4365 = vpop.f32.mrf.mxu0
        %v4366 = vadd.f32 %v4205, %v4365
        %v4367 = vpop.f32.mrf.mxu0
        %v4368 = vpop.f32.mrf.mxu0
        %v4369 = vadd.f32 %v4208, %v4368
        %v4370 = vpop.f32.mrf.mxu0
        %4371 = vmatprep.mubr.bf16.mxu0 %v3466
        %4372 = vmatmul.mubr.bf16.gmra.mxu0 %v3465
        %v4373 = vpop.f32.mrf.mxu0
        %v4374 = vadd.f32 %v4213, %v4373
        %v4375 = vpop.f32.mrf.mxu0
        %v4376 = vpop.f32.mrf.mxu0
        %v4377 = vadd.f32 %v4216, %v4376
        %v4378 = vpop.f32.mrf.mxu0
        %4379 = vmatprep.mubr.bf16.mxu0 %v3475
        %4380 = vmatmul.mubr.bf16.gmra.mxu0 %v3474
        %v4381 = vpop.f32.mrf.mxu0
        %v4382 = vadd.f32 %v4221, %v4381
        %v4383 = vpop.f32.mrf.mxu0
        %v4384 = vpop.f32.mrf.mxu0
        %v4385 = vadd.f32 %v4224, %v4384
        %v4386 = vpop.f32.mrf.mxu0
        %4387 = vmatprep.mubr.bf16.mxu0 %v3484
        %4388 = vmatmul.mubr.bf16.gmra.mxu0 %v3483
        %v4389 = vpop.f32.mrf.mxu0
        %v4390 = vadd.f32 %v4229, %v4389
        %v4391 = vpop.f32.mrf.mxu0
        %v4392 = vpop.f32.mrf.mxu0
        %v4393 = vadd.f32 %v4232, %v4392
        %v4394 = vpop.f32.mrf.mxu0
        %4395 = vmatprep.mubr.bf16.mxu0 %v3493
        %4396 = vmatmul.mubr.bf16.gmra.mxu0 %v3492
        %v4397 = vpop.f32.mrf.mxu0
        %v4398 = vadd.f32 %v4237, %v4397
        %v4399 = vpop.f32.mrf.mxu0
        %v4400 = vpop.f32.mrf.mxu0
        %v4401 = vadd.f32 %v4240, %v4400
        %v4402 = vpop.f32.mrf.mxu0
        %4403 = vmatprep.mubr.bf16.mxu0 %v3502
        %4404 = vmatmul.mubr.bf16.gmra.mxu0 %v3501
        %v4405 = vpop.f32.mrf.mxu0
        %v4406 = vadd.f32 %v4245, %v4405
        %v4407 = vpop.f32.mrf.mxu0
        %v4408 = vpop.f32.mrf.mxu0
        %v4409 = vadd.f32 %v4248, %v4408
        %v4410 = vpop.f32.mrf.mxu0
        %4411 = vmatprep.mubr.bf16.mxu0 %v3511
        %4412 = vmatmul.mubr.bf16.gmra.mxu0 %v3510
        %v4413 = vpop.f32.mrf.mxu0
        %v4414 = vadd.f32 %v4253, %v4413
        %v4415 = vpop.f32.mrf.mxu0
        %v4416 = vpop.f32.mrf.mxu0
        %v4417 = vadd.f32 %v4256, %v4416
        %v4418 = vpop.f32.mrf.mxu0
        %4419 = vmatprep.mubr.bf16.mxu0 %v3520
        %4420 = vmatmul.mubr.bf16.gmra.mxu0 %v3519
        %v4421 = vpop.f32.mrf.mxu0
        %v4422 = vadd.f32 %v4261, %v4421
        %v4423 = vpop.f32.mrf.mxu0
        %v4424 = vpop.f32.mrf.mxu0
        %v4425 = vadd.f32 %v4264, %v4424
        %v4426 = vpop.f32.mrf.mxu0
        %4427 = vmatprep.mubr.bf16.mxu0 %v3529
        %4428 = vmatmul.mubr.bf16.gmra.mxu0 %v3528
        %v4429 = vpop.f32.mrf.mxu0
        %v4430 = vadd.f32 %v4269, %v4429
        %v4431 = vpop.f32.mrf.mxu0
        %v4432 = vpop.f32.mrf.mxu0
        %v4433 = vadd.f32 %v4272, %v4432
        %v4434 = vpop.f32.mrf.mxu0
        %4435 = vmatprep.mubr.bf16.mxu0 %v3538
        %4436 = vmatmul.mubr.bf16.gmra.mxu0 %v3537
        %v4437 = vpop.f32.mrf.mxu0
        %v4438 = vadd.f32 %v4277, %v4437
        %v4439 = vpop.f32.mrf.mxu0
        %v4440 = vpop.f32.mrf.mxu0
        %v4441 = vadd.f32 %v4280, %v4440
        %v4442 = vpop.f32.mrf.mxu0
        %4443 = vmatprep.mubr.bf16.mxu0 %v3547
        %4444 = vmatmul.mubr.bf16.gmra.mxu0 %v3546
        %v4445 = vpop.f32.mrf.mxu0
        %v4446 = vadd.f32 %v4285, %v4445
        %v4447 = vpop.f32.mrf.mxu0
        %v4448 = vpop.f32.mrf.mxu0
        %v4449 = vadd.f32 %v4288, %v4448
        %v4450 = vpop.f32.mrf.mxu0
        %4451 = vmatprep.mubr.bf16.mxu0 %v3556
        %4452 = vmatmul.mubr.bf16.gmra.mxu0 %v3555
        %v4453 = vpop.f32.mrf.mxu0
        %v4454 = vadd.f32 %v4293, %v4453
        %v4455 = vpop.f32.mrf.mxu0
        %v4456 = vpop.f32.mrf.mxu0
        %v4457 = vadd.f32 %v4296, %v4456
        %v4458 = vpop.f32.mrf.mxu0
        %4459 = vdwg.mxu0
        %4460 = vmatprep.subr.bf16.mxu0 0
        %4461 = vmatpush1.bf16.msra.mxu0 %v4033
        %4462 = vmatprep.subr.bf16.mxu0 0
        %4463 = vmatpush1.bf16.msra.mxu0 %v4032
        %4464 = vmatprep.subr.bf16.mxu0 0
        %4465 = vmatpush1.bf16.msra.mxu0 %v4031
        %4466 = vmatprep.subr.bf16.mxu0 0
        %4467 = vmatpush1.bf16.msra.mxu0 %v4030
        %4468 = vmatprep.subr.bf16.mxu0 0
        %4469 = vmatpush1.bf16.msra.mxu0 %v4029
        %4470 = vmatprep.subr.bf16.mxu0 0
        %4471 = vmatpush1.bf16.msra.mxu0 %v4028
        %4472 = vmatprep.subr.bf16.mxu0 0
        %4473 = vmatpush1.bf16.msra.mxu0 %v4027
        %4474 = vmatprep.subr.bf16.mxu0 0
        %4475 = vmatpush1.bf16.msra.mxu0 %v4026
        %4476 = vmatprep.subr.bf16.mxu0 0
        %4477 = vmatpush2.bf16.msra.mxu0 %v4041
        %4478 = vmatprep.subr.bf16.mxu0 0
        %4479 = vmatpush2.bf16.msra.mxu0 %v4040
        %4480 = vmatprep.subr.bf16.mxu0 0
        %4481 = vmatpush2.bf16.msra.mxu0 %v4039
        %4482 = vmatprep.subr.bf16.mxu0 0
        %4483 = vmatpush2.bf16.msra.mxu0 %v4038
        %4484 = vmatprep.subr.bf16.mxu0 0
        %4485 = vmatpush2.bf16.msra.mxu0 %v4037
        %4486 = vmatprep.subr.bf16.mxu0 0
        %4487 = vmatpush2.bf16.msra.mxu0 %v4036
        %4488 = vmatprep.subr.bf16.mxu0 0
        %4489 = vmatpush2.bf16.msra.mxu0 %v4035
        %4490 = vmatprep.subr.bf16.mxu0 0
        %4491 = vmatpush2.bf16.msra.mxu0 %v4034
        %4492 = vmatprep.mubr.bf16.mxu0 %v3423
        %4493 = vmatmul.mubr.bf16.gmra.mxu0 %v3422
        %v4494 = vpop.f32.mrf.mxu0
        %v4495 = vadd.f32 %v4334, %v4494
        %v4496 = vpop.f32.mrf.mxu0
        %v4497 = vpop.f32.mrf.mxu0
        %v4498 = vadd.f32 %v4337, %v4497
        %v4499 = vpop.f32.mrf.mxu0
        %4500 = vmatprep.mubr.bf16.mxu0 %v3432
        %4501 = vmatmul.mubr.bf16.gmra.mxu0 %v3431
        %v4502 = vpop.f32.mrf.mxu0
        %v4503 = vadd.f32 %v4342, %v4502
        %v4504 = vpop.f32.mrf.mxu0
        %v4505 = vpop.f32.mrf.mxu0
        %v4506 = vadd.f32 %v4345, %v4505
        %v4507 = vpop.f32.mrf.mxu0
        %4508 = vmatprep.mubr.bf16.mxu0 %v3441
        %4509 = vmatmul.mubr.bf16.gmra.mxu0 %v3440
        %v4510 = vpop.f32.mrf.mxu0
        %v4511 = vadd.f32 %v4350, %v4510
        %v4512 = vpop.f32.mrf.mxu0
        %v4513 = vpop.f32.mrf.mxu0
        %v4514 = vadd.f32 %v4353, %v4513
        %v4515 = vpop.f32.mrf.mxu0
        %4516 = vmatprep.mubr.bf16.mxu0 %v3450
        %4517 = vmatmul.mubr.bf16.gmra.mxu0 %v3449
        %v4518 = vpop.f32.mrf.mxu0
        %v4519 = vadd.f32 %v4358, %v4518
        %v4520 = vpop.f32.mrf.mxu0
        %v4521 = vpop.f32.mrf.mxu0
        %v4522 = vadd.f32 %v4361, %v4521
        %v4523 = vpop.f32.mrf.mxu0
        %4524 = vmatprep.mubr.bf16.mxu0 %v3459
        %4525 = vmatmul.mubr.bf16.gmra.mxu0 %v3458
        %v4526 = vpop.f32.mrf.mxu0
        %v4527 = vadd.f32 %v4366, %v4526
        %v4528 = vpop.f32.mrf.mxu0
        %v4529 = vpop.f32.mrf.mxu0
        %v4530 = vadd.f32 %v4369, %v4529
        %v4531 = vpop.f32.mrf.mxu0
        %4532 = vmatprep.mubr.bf16.mxu0 %v3468
        %4533 = vmatmul.mubr.bf16.gmra.mxu0 %v3467
        %v4534 = vpop.f32.mrf.mxu0
        %v4535 = vadd.f32 %v4374, %v4534
        %v4536 = vpop.f32.mrf.mxu0
        %v4537 = vpop.f32.mrf.mxu0
        %v4538 = vadd.f32 %v4377, %v4537
        %v4539 = vpop.f32.mrf.mxu0
        %4540 = vmatprep.mubr.bf16.mxu0 %v3477
        %4541 = vmatmul.mubr.bf16.gmra.mxu0 %v3476
        %v4542 = vpop.f32.mrf.mxu0
        %v4543 = vadd.f32 %v4382, %v4542
        %v4544 = vpop.f32.mrf.mxu0
        %v4545 = vpop.f32.mrf.mxu0
        %v4546 = vadd.f32 %v4385, %v4545
        %v4547 = vpop.f32.mrf.mxu0
        %4548 = vmatprep.mubr.bf16.mxu0 %v3486
        %4549 = vmatmul.mubr.bf16.gmra.mxu0 %v3485
        %v4550 = vpop.f32.mrf.mxu0
        %v4551 = vadd.f32 %v4390, %v4550
        %v4552 = vpop.f32.mrf.mxu0
        %v4553 = vpop.f32.mrf.mxu0
        %v4554 = vadd.f32 %v4393, %v4553
        %v4555 = vpop.f32.mrf.mxu0
        %4556 = vmatprep.mubr.bf16.mxu0 %v3495
        %4557 = vmatmul.mubr.bf16.gmra.mxu0 %v3494
        %v4558 = vpop.f32.mrf.mxu0
        %v4559 = vadd.f32 %v4398, %v4558
        %v4560 = vpop.f32.mrf.mxu0
        %v4561 = vpop.f32.mrf.mxu0
        %v4562 = vadd.f32 %v4401, %v4561
        %v4563 = vpop.f32.mrf.mxu0
        %4564 = vmatprep.mubr.bf16.mxu0 %v3504
        %4565 = vmatmul.mubr.bf16.gmra.mxu0 %v3503
        %v4566 = vpop.f32.mrf.mxu0
        %v4567 = vadd.f32 %v4406, %v4566
        %v4568 = vpop.f32.mrf.mxu0
        %v4569 = vpop.f32.mrf.mxu0
        %v4570 = vadd.f32 %v4409, %v4569
        %v4571 = vpop.f32.mrf.mxu0
        %4572 = vmatprep.mubr.bf16.mxu0 %v3513
        %4573 = vmatmul.mubr.bf16.gmra.mxu0 %v3512
        %v4574 = vpop.f32.mrf.mxu0
        %v4575 = vadd.f32 %v4414, %v4574
        %v4576 = vpop.f32.mrf.mxu0
        %v4577 = vpop.f32.mrf.mxu0
        %v4578 = vadd.f32 %v4417, %v4577
        %v4579 = vpop.f32.mrf.mxu0
        %4580 = vmatprep.mubr.bf16.mxu0 %v3522
        %4581 = vmatmul.mubr.bf16.gmra.mxu0 %v3521
        %v4582 = vpop.f32.mrf.mxu0
        %v4583 = vadd.f32 %v4422, %v4582
        %v4584 = vpop.f32.mrf.mxu0
        %v4585 = vpop.f32.mrf.mxu0
        %v4586 = vadd.f32 %v4425, %v4585
        %v4587 = vpop.f32.mrf.mxu0
        %4588 = vmatprep.mubr.bf16.mxu0 %v3531
        %4589 = vmatmul.mubr.bf16.gmra.mxu0 %v3530
        %v4590 = vpop.f32.mrf.mxu0
        %v4591 = vadd.f32 %v4430, %v4590
        %v4592 = vpop.f32.mrf.mxu0
        %v4593 = vpop.f32.mrf.mxu0
        %v4594 = vadd.f32 %v4433, %v4593
        %v4595 = vpop.f32.mrf.mxu0
        %4596 = vmatprep.mubr.bf16.mxu0 %v3540
        %4597 = vmatmul.mubr.bf16.gmra.mxu0 %v3539
        %v4598 = vpop.f32.mrf.mxu0
        %v4599 = vadd.f32 %v4438, %v4598
        %v4600 = vpop.f32.mrf.mxu0
        %v4601 = vpop.f32.mrf.mxu0
        %v4602 = vadd.f32 %v4441, %v4601
        %v4603 = vpop.f32.mrf.mxu0
        %4604 = vmatprep.mubr.bf16.mxu0 %v3549
        %4605 = vmatmul.mubr.bf16.gmra.mxu0 %v3548
        %v4606 = vpop.f32.mrf.mxu0
        %v4607 = vadd.f32 %v4446, %v4606
        %v4608 = vpop.f32.mrf.mxu0
        %v4609 = vpop.f32.mrf.mxu0
        %v4610 = vadd.f32 %v4449, %v4609
        %v4611 = vpop.f32.mrf.mxu0
        %4612 = vmatprep.mubr.bf16.mxu0 %v3558
        %4613 = vmatmul.mubr.bf16.gmra.mxu0 %v3557
        %v4614 = vpop.f32.mrf.mxu0
        %v4615 = vadd.f32 %v4454, %v4614
        %v4616 = vpop.f32.mrf.mxu0
        %v4617 = vpop.f32.mrf.mxu0
        %v4618 = vadd.f32 %v4457, %v4617
        %v4619 = vpop.f32.mrf.mxu0
        %4620 = vdwg.mxu0
        %4621 = vmatprep.subr.bf16.mxu0 0
        %4622 = vmatpush1.bf16.msra.mxu0 %v4049
        %4623 = vmatprep.subr.bf16.mxu0 0
        %4624 = vmatpush1.bf16.msra.mxu0 %v4048
        %4625 = vmatprep.subr.bf16.mxu0 0
        %4626 = vmatpush1.bf16.msra.mxu0 %v4047
        %4627 = vmatprep.subr.bf16.mxu0 0
        %4628 = vmatpush1.bf16.msra.mxu0 %v4046
        %4629 = vmatprep.subr.bf16.mxu0 0
        %4630 = vmatpush1.bf16.msra.mxu0 %v4045
        %4631 = vmatprep.subr.bf16.mxu0 0
        %4632 = vmatpush1.bf16.msra.mxu0 %v4044
        %4633 = vmatprep.subr.bf16.mxu0 0
        %4634 = vmatpush1.bf16.msra.mxu0 %v4043
        %4635 = vmatprep.subr.bf16.mxu0 0
        %4636 = vmatpush1.bf16.msra.mxu0 %v4042
        %4637 = vmatprep.subr.bf16.mxu0 0
        %4638 = vmatpush2.bf16.msra.mxu0 %v4057
        %4639 = vmatprep.subr.bf16.mxu0 0
        %4640 = vmatpush2.bf16.msra.mxu0 %v4056
        %4641 = vmatprep.subr.bf16.mxu0 0
        %4642 = vmatpush2.bf16.msra.mxu0 %v4055
        %4643 = vmatprep.subr.bf16.mxu0 0
        %4644 = vmatpush2.bf16.msra.mxu0 %v4054
        %4645 = vmatprep.subr.bf16.mxu0 0
        %4646 = vmatpush2.bf16.msra.mxu0 %v4053
        %4647 = vmatprep.subr.bf16.mxu0 0
        %4648 = vmatpush2.bf16.msra.mxu0 %v4052
        %4649 = vmatprep.subr.bf16.mxu0 0
        %4650 = vmatpush2.bf16.msra.mxu0 %v4051
        %4651 = vmatprep.subr.bf16.mxu0 0
        %4652 = vmatpush2.bf16.msra.mxu0 %v4050
        %4653 = vmatprep.mubr.bf16.mxu0 %v3425
        %4654 = vmatmul.mubr.bf16.gmra.mxu0 %v3424
        %v4655 = vpop.f32.mrf.mxu0
        %v4656 = vadd.f32 %v4495, %v4655
        %v4657 = vpop.f32.mrf.mxu0
        %v4658 = vpop.f32.mrf.mxu0
        %v4659 = vadd.f32 %v4498, %v4658
        %v4660 = vpop.f32.mrf.mxu0
        %4661 = vmatprep.mubr.bf16.mxu0 %v3434
        %4662 = vmatmul.mubr.bf16.gmra.mxu0 %v3433
        %v4663 = vpop.f32.mrf.mxu0
        %v4664 = vadd.f32 %v4503, %v4663
        %v4665 = vpop.f32.mrf.mxu0
        %v4666 = vpop.f32.mrf.mxu0
        %v4667 = vadd.f32 %v4506, %v4666
        %v4668 = vpop.f32.mrf.mxu0
        %4669 = vmatprep.mubr.bf16.mxu0 %v3443
        %4670 = vmatmul.mubr.bf16.gmra.mxu0 %v3442
        %v4671 = vpop.f32.mrf.mxu0
        %v4672 = vadd.f32 %v4511, %v4671
        %v4673 = vpop.f32.mrf.mxu0
        %v4674 = vpop.f32.mrf.mxu0
        %v4675 = vadd.f32 %v4514, %v4674
        %v4676 = vpop.f32.mrf.mxu0
        %4677 = vmatprep.mubr.bf16.mxu0 %v3452
        %4678 = vmatmul.mubr.bf16.gmra.mxu0 %v3451
        %v4679 = vpop.f32.mrf.mxu0
        %v4680 = vadd.f32 %v4519, %v4679
        %v4681 = vpop.f32.mrf.mxu0
        %v4682 = vpop.f32.mrf.mxu0
        %v4683 = vadd.f32 %v4522, %v4682
        %v4684 = vpop.f32.mrf.mxu0
        %4685 = vmatprep.mubr.bf16.mxu0 %v3461
        %4686 = vmatmul.mubr.bf16.gmra.mxu0 %v3460
        %v4687 = vpop.f32.mrf.mxu0
        %v4688 = vadd.f32 %v4527, %v4687
        %v4689 = vpop.f32.mrf.mxu0
        %v4690 = vpop.f32.mrf.mxu0
        %v4691 = vadd.f32 %v4530, %v4690
        %v4692 = vpop.f32.mrf.mxu0
        %4693 = vmatprep.mubr.bf16.mxu0 %v3470
        %4694 = vmatmul.mubr.bf16.gmra.mxu0 %v3469
        %v4695 = vpop.f32.mrf.mxu0
        %v4696 = vadd.f32 %v4535, %v4695
        %v4697 = vpop.f32.mrf.mxu0
        %v4698 = vpop.f32.mrf.mxu0
        %v4699 = vadd.f32 %v4538, %v4698
        %v4700 = vpop.f32.mrf.mxu0
        %4701 = vmatprep.mubr.bf16.mxu0 %v3479
        %4702 = vmatmul.mubr.bf16.gmra.mxu0 %v3478
        %v4703 = vpop.f32.mrf.mxu0
        %v4704 = vadd.f32 %v4543, %v4703
        %v4705 = vpop.f32.mrf.mxu0
        %v4706 = vpop.f32.mrf.mxu0
        %v4707 = vadd.f32 %v4546, %v4706
        %v4708 = vpop.f32.mrf.mxu0
        %4709 = vmatprep.mubr.bf16.mxu0 %v3488
        %4710 = vmatmul.mubr.bf16.gmra.mxu0 %v3487
        %v4711 = vpop.f32.mrf.mxu0
        %v4712 = vadd.f32 %v4551, %v4711
        %v4713 = vpop.f32.mrf.mxu0
        %v4714 = vpop.f32.mrf.mxu0
        %v4715 = vadd.f32 %v4554, %v4714
        %v4716 = vpop.f32.mrf.mxu0
        %4717 = vmatprep.mubr.bf16.mxu0 %v3497
        %4718 = vmatmul.mubr.bf16.gmra.mxu0 %v3496
        %v4719 = vpop.f32.mrf.mxu0
        %v4720 = vadd.f32 %v4559, %v4719
        %v4721 = vpop.f32.mrf.mxu0
        %v4722 = vpop.f32.mrf.mxu0
        %v4723 = vadd.f32 %v4562, %v4722
        %v4724 = vpop.f32.mrf.mxu0
        %4725 = vmatprep.mubr.bf16.mxu0 %v3506
        %4726 = vmatmul.mubr.bf16.gmra.mxu0 %v3505
        %v4727 = vpop.f32.mrf.mxu0
        %v4728 = vadd.f32 %v4567, %v4727
        %v4729 = vpop.f32.mrf.mxu0
        %v4730 = vpop.f32.mrf.mxu0
        %v4731 = vadd.f32 %v4570, %v4730
        %v4732 = vpop.f32.mrf.mxu0
        %4733 = vmatprep.mubr.bf16.mxu0 %v3515
        %4734 = vmatmul.mubr.bf16.gmra.mxu0 %v3514
        %v4735 = vpop.f32.mrf.mxu0
        %v4736 = vadd.f32 %v4575, %v4735
        %v4737 = vpop.f32.mrf.mxu0
        %v4738 = vpop.f32.mrf.mxu0
        %v4739 = vadd.f32 %v4578, %v4738
        %v4740 = vpop.f32.mrf.mxu0
        %4741 = vmatprep.mubr.bf16.mxu0 %v3524
        %4742 = vmatmul.mubr.bf16.gmra.mxu0 %v3523
        %v4743 = vpop.f32.mrf.mxu0
        %v4744 = vadd.f32 %v4583, %v4743
        %v4745 = vpop.f32.mrf.mxu0
        %v4746 = vpop.f32.mrf.mxu0
        %v4747 = vadd.f32 %v4586, %v4746
        %v4748 = vpop.f32.mrf.mxu0
        %4749 = vmatprep.mubr.bf16.mxu0 %v3533
        %4750 = vmatmul.mubr.bf16.gmra.mxu0 %v3532
        %v4751 = vpop.f32.mrf.mxu0
        %v4752 = vadd.f32 %v4591, %v4751
        %v4753 = vpop.f32.mrf.mxu0
        %v4754 = vpop.f32.mrf.mxu0
        %v4755 = vadd.f32 %v4594, %v4754
        %v4756 = vpop.f32.mrf.mxu0
        %4757 = vmatprep.mubr.bf16.mxu0 %v3542
        %4758 = vmatmul.mubr.bf16.gmra.mxu0 %v3541
        %v4759 = vpop.f32.mrf.mxu0
        %v4760 = vadd.f32 %v4599, %v4759
        %v4761 = vpop.f32.mrf.mxu0
        %v4762 = vpop.f32.mrf.mxu0
        %v4763 = vadd.f32 %v4602, %v4762
        %v4764 = vpop.f32.mrf.mxu0
        %4765 = vmatprep.mubr.bf16.mxu0 %v3551
        %4766 = vmatmul.mubr.bf16.gmra.mxu0 %v3550
        %v4767 = vpop.f32.mrf.mxu0
        %v4768 = vadd.f32 %v4607, %v4767
        %v4769 = vpop.f32.mrf.mxu0
        %v4770 = vpop.f32.mrf.mxu0
        %v4771 = vadd.f32 %v4610, %v4770
        %v4772 = vpop.f32.mrf.mxu0
        %4773 = vmatprep.mubr.bf16.mxu0 %v3560
        %4774 = vmatmul.mubr.bf16.gmra.mxu0 %v3559
        %v4775 = vpop.f32.mrf.mxu0
        %v4776 = vadd.f32 %v4615, %v4775
        %v4777 = vpop.f32.mrf.mxu0
        %v4778 = vpop.f32.mrf.mxu0
        %v4779 = vadd.f32 %v4618, %v4778
        %v4780 = vpop.f32.mrf.mxu0
        %4781 = vdwg.mxu0
        %4782 = vmatprep.subr.bf16.mxu0 0
        %4783 = vmatpush1.bf16.msra.mxu0 %v4065
        %4784 = vmatprep.subr.bf16.mxu0 0
        %4785 = vmatpush1.bf16.msra.mxu0 %v4064
        %4786 = vmatprep.subr.bf16.mxu0 0
        %4787 = vmatpush1.bf16.msra.mxu0 %v4063
        %4788 = vmatprep.subr.bf16.mxu0 0
        %4789 = vmatpush1.bf16.msra.mxu0 %v4062
        %4790 = vmatprep.subr.bf16.mxu0 0
        %4791 = vmatpush1.bf16.msra.mxu0 %v4061
        %4792 = vmatprep.subr.bf16.mxu0 0
        %4793 = vmatpush1.bf16.msra.mxu0 %v4060
        %4794 = vmatprep.subr.bf16.mxu0 0
        %4795 = vmatpush1.bf16.msra.mxu0 %v4059
        %4796 = vmatprep.subr.bf16.mxu0 0
        %4797 = vmatpush1.bf16.msra.mxu0 %v4058
        %4798 = vmatprep.subr.bf16.mxu0 0
        %4799 = vmatpush2.bf16.msra.mxu0 0
        %4800 = vmatprep.subr.bf16.mxu0 0
        %4801 = vmatpush2.bf16.msra.mxu0 0
        %4802 = vmatprep.subr.bf16.mxu0 0
        %4803 = vmatpush2.bf16.msra.mxu0 0
        %4804 = vmatprep.subr.bf16.mxu0 0
        %4805 = vmatpush2.bf16.msra.mxu0 0
        %4806 = vmatprep.subr.bf16.mxu0 0
        %4807 = vmatpush2.bf16.msra.mxu0 0
        %4808 = vmatprep.subr.bf16.mxu0 0
        %4809 = vmatpush2.bf16.msra.mxu0 0
        %4810 = vmatprep.subr.bf16.mxu0 0
        %4811 = vmatpush2.bf16.msra.mxu0 0
        %4812 = vmatprep.subr.bf16.mxu0 0
        %4813 = vmatpush2.bf16.msra.mxu0 0
        %4814 = vmatprep.mubr.bf16.mxu0 0
        %4815 = vmatmul.mubr.bf16.gmra.mxu0 %v3426
        %v4816 = vpop.f32.mrf.mxu0
        %v4817 = vadd.f32 %v4656, %v4816
        %v4818 = vpop.f32.mrf.mxu0
        %v4819 = vpop.f32.mrf.mxu0
        %v4820 = vadd.f32 %v4659, %v4819
        %v4821 = vpop.f32.mrf.mxu0
        %4822 = vmatprep.mubr.bf16.mxu0 0
        %4823 = vmatmul.mubr.bf16.gmra.mxu0 %v3435
        %v4824 = vpop.f32.mrf.mxu0
        %v4825 = vadd.f32 %v4664, %v4824
        %v4826 = vpop.f32.mrf.mxu0
        %v4827 = vpop.f32.mrf.mxu0
        %v4828 = vadd.f32 %v4667, %v4827
        %v4829 = vpop.f32.mrf.mxu0
        %4830 = vmatprep.mubr.bf16.mxu0 0
        %4831 = vmatmul.mubr.bf16.gmra.mxu0 %v3444
        %v4832 = vpop.f32.mrf.mxu0
        %v4833 = vadd.f32 %v4672, %v4832
        %v4834 = vpop.f32.mrf.mxu0
        %v4835 = vpop.f32.mrf.mxu0
        %v4836 = vadd.f32 %v4675, %v4835
        %v4837 = vpop.f32.mrf.mxu0
        %4838 = vmatprep.mubr.bf16.mxu0 0
        %4839 = vmatmul.mubr.bf16.gmra.mxu0 %v3453
        %v4840 = vpop.f32.mrf.mxu0
        %v4841 = vadd.f32 %v4680, %v4840
        %v4842 = vpop.f32.mrf.mxu0
        %v4843 = vpop.f32.mrf.mxu0
        %v4844 = vadd.f32 %v4683, %v4843
        %v4845 = vpop.f32.mrf.mxu0
        %4846 = vmatprep.mubr.bf16.mxu0 0
        %4847 = vmatmul.mubr.bf16.gmra.mxu0 %v3462
        %v4848 = vpop.f32.mrf.mxu0
        %v4849 = vadd.f32 %v4688, %v4848
        %v4850 = vpop.f32.mrf.mxu0
        %v4851 = vpop.f32.mrf.mxu0
        %v4852 = vadd.f32 %v4691, %v4851
        %v4853 = vpop.f32.mrf.mxu0
        %4854 = vmatprep.mubr.bf16.mxu0 0
        %4855 = vmatmul.mubr.bf16.gmra.mxu0 %v3471
        %v4856 = vpop.f32.mrf.mxu0
        %v4857 = vadd.f32 %v4696, %v4856
        %v4858 = vpop.f32.mrf.mxu0
        %v4859 = vpop.f32.mrf.mxu0
        %v4860 = vadd.f32 %v4699, %v4859
        %v4861 = vpop.f32.mrf.mxu0
        %4862 = vmatprep.mubr.bf16.mxu0 0
        %4863 = vmatmul.mubr.bf16.gmra.mxu0 %v3480
        %v4864 = vpop.f32.mrf.mxu0
        %v4865 = vadd.f32 %v4704, %v4864
        %v4866 = vpop.f32.mrf.mxu0
        %v4867 = vpop.f32.mrf.mxu0
        %v4868 = vadd.f32 %v4707, %v4867
        %v4869 = vpop.f32.mrf.mxu0
        %4870 = vmatprep.mubr.bf16.mxu0 0
        %4871 = vmatmul.mubr.bf16.gmra.mxu0 %v3489
        %v4872 = vpop.f32.mrf.mxu0
        %v4873 = vadd.f32 %v4712, %v4872
        %v4874 = vpop.f32.mrf.mxu0
        %v4875 = vpop.f32.mrf.mxu0
        %v4876 = vadd.f32 %v4715, %v4875
        %v4877 = vpop.f32.mrf.mxu0
        %4878 = vmatprep.mubr.bf16.mxu0 0
        %4879 = vmatmul.mubr.bf16.gmra.mxu0 %v3498
        %v4880 = vpop.f32.mrf.mxu0
        %v4881 = vadd.f32 %v4720, %v4880
        %v4882 = vpop.f32.mrf.mxu0
        %v4883 = vpop.f32.mrf.mxu0
        %v4884 = vadd.f32 %v4723, %v4883
        %v4885 = vpop.f32.mrf.mxu0
        %4886 = vmatprep.mubr.bf16.mxu0 0
        %4887 = vmatmul.mubr.bf16.gmra.mxu0 %v3507
        %v4888 = vpop.f32.mrf.mxu0
        %v4889 = vadd.f32 %v4728, %v4888
        %v4890 = vpop.f32.mrf.mxu0
        %v4891 = vpop.f32.mrf.mxu0
        %v4892 = vadd.f32 %v4731, %v4891
        %v4893 = vpop.f32.mrf.mxu0
        %4894 = vmatprep.mubr.bf16.mxu0 0
        %4895 = vmatmul.mubr.bf16.gmra.mxu0 %v3516
        %v4896 = vpop.f32.mrf.mxu0
        %v4897 = vadd.f32 %v4736, %v4896
        %v4898 = vpop.f32.mrf.mxu0
        %v4899 = vpop.f32.mrf.mxu0
        %v4900 = vadd.f32 %v4739, %v4899
        %v4901 = vpop.f32.mrf.mxu0
        %4902 = vmatprep.mubr.bf16.mxu0 0
        %4903 = vmatmul.mubr.bf16.gmra.mxu0 %v3525
        %v4904 = vpop.f32.mrf.mxu0
        %v4905 = vadd.f32 %v4744, %v4904
        %v4906 = vpop.f32.mrf.mxu0
        %v4907 = vpop.f32.mrf.mxu0
        %v4908 = vadd.f32 %v4747, %v4907
        %v4909 = vpop.f32.mrf.mxu0
        %4910 = vmatprep.mubr.bf16.mxu0 0
        %4911 = vmatmul.mubr.bf16.gmra.mxu0 %v3534
        %v4912 = vpop.f32.mrf.mxu0
        %v4913 = vadd.f32 %v4752, %v4912
        %v4914 = vpop.f32.mrf.mxu0
        %v4915 = vpop.f32.mrf.mxu0
        %v4916 = vadd.f32 %v4755, %v4915
        %v4917 = vpop.f32.mrf.mxu0
        %4918 = vmatprep.mubr.bf16.mxu0 0
        %4919 = vmatmul.mubr.bf16.gmra.mxu0 %v3543
        %v4920 = vpop.f32.mrf.mxu0
        %v4921 = vadd.f32 %v4760, %v4920
        %v4922 = vpop.f32.mrf.mxu0
        %v4923 = vpop.f32.mrf.mxu0
        %v4924 = vadd.f32 %v4763, %v4923
        %v4925 = vpop.f32.mrf.mxu0
        %4926 = vmatprep.mubr.bf16.mxu0 0
        %4927 = vmatmul.mubr.bf16.gmra.mxu0 %v3552
        %v4928 = vpop.f32.mrf.mxu0
        %v4929 = vadd.f32 %v4768, %v4928
        %v4930 = vpop.f32.mrf.mxu0
        %v4931 = vpop.f32.mrf.mxu0
        %v4932 = vadd.f32 %v4771, %v4931
        %v4933 = vpop.f32.mrf.mxu0
        %4934 = vmatprep.mubr.bf16.mxu0 0
        %4935 = vmatmul.mubr.bf16.gmra.mxu0 %v3561
        %v4936 = vpop.f32.mrf.mxu0
        %v4937 = vadd.f32 %v4776, %v4936
        %v4938 = vpop.f32.mrf.mxu0
        %v4939 = vpop.f32.mrf.mxu0
        %v4940 = vadd.f32 %v4779, %v4939
        %v4941 = vpop.f32.mrf.mxu0
        %4942 = vdwg.mxu0
        %v4943 = vld [vmem:[#allocation4] sm:$0x1]
        %v4944 = vlaneseq
        %v4945 = vshrl.u32 %v4944, 7
        %v4946 = vsub.s32 0, %v4945
        %v4947 = vrot.slane %v4943, %v4946
        %v4948 = vmul.f32 %v4817, %v4947
        %v4949 = vmul.f32 %v4820, %v4947
        %v4950 = vmul.f32 %v4825, %v4947
        %v4951 = vmul.f32 %v4828, %v4947
        %v4952 = vmul.f32 %v4833, %v4947
        %v4953 = vmul.f32 %v4836, %v4947
        %v4954 = vmul.f32 %v4841, %v4947
        %v4955 = vmul.f32 %v4844, %v4947
        %v4956 = vmul.f32 %v4849, %v4947
        %v4957 = vmul.f32 %v4852, %v4947
        %v4958 = vmul.f32 %v4857, %v4947
        %v4959 = vmul.f32 %v4860, %v4947
        %v4960 = vmul.f32 %v4865, %v4947
        %v4961 = vmul.f32 %v4868, %v4947
        %v4962 = vmul.f32 %v4873, %v4947
        %v4963 = vmul.f32 %v4876, %v4947
        %v4964 = vmul.f32 %v4881, %v4947
        %v4965 = vmul.f32 %v4884, %v4947
        %v4966 = vmul.f32 %v4889, %v4947
        %v4967 = vmul.f32 %v4892, %v4947
        %v4968 = vmul.f32 %v4897, %v4947
        %v4969 = vmul.f32 %v4900, %v4947
        %v4970 = vmul.f32 %v4905, %v4947
        %v4971 = vmul.f32 %v4908, %v4947
        %v4972 = vmul.f32 %v4913, %v4947
        %v4973 = vmul.f32 %v4916, %v4947
        %v4974 = vmul.f32 %v4921, %v4947
        %v4975 = vmul.f32 %v4924, %v4947
        %v4976 = vmul.f32 %v4929, %v4947
        %v4977 = vmul.f32 %v4932, %v4947
        %v4978 = vmul.f32 %v4937, %v4947
        %v4979 = vmul.f32 %v4940, %v4947
        %v4980 = vld [vmem:[#allocation4 + $0x1] sm:$0x1]
        %v4981 = vlaneseq
        %v4982 = vshrl.u32 %v4981, 7
        %v4983 = vsub.s32 0, %v4982
        %v4984 = vrot.slane %v4980, %v4983
        %v4985 = vadd.f32 %v4948, %v4984
        %v4986 = vadd.f32 %v4949, %v4984
        %v4987 = vadd.f32 %v4950, %v4984
        %v4988 = vadd.f32 %v4951, %v4984
        %v4989 = vadd.f32 %v4952, %v4984
        %v4990 = vadd.f32 %v4953, %v4984
        %v4991 = vadd.f32 %v4954, %v4984
        %v4992 = vadd.f32 %v4955, %v4984
        %v4993 = vadd.f32 %v4956, %v4984
        %v4994 = vadd.f32 %v4957, %v4984
        %v4995 = vadd.f32 %v4958, %v4984
        %v4996 = vadd.f32 %v4959, %v4984
        %v4997 = vadd.f32 %v4960, %v4984
        %v4998 = vadd.f32 %v4961, %v4984
        %v4999 = vadd.f32 %v4962, %v4984
        %v5000 = vadd.f32 %v4963, %v4984
        %v5001 = vadd.f32 %v4964, %v4984
        %v5002 = vadd.f32 %v4965, %v4984
        %v5003 = vadd.f32 %v4966, %v4984
        %v5004 = vadd.f32 %v4967, %v4984
        %v5005 = vadd.f32 %v4968, %v4984
        %v5006 = vadd.f32 %v4969, %v4984
        %v5007 = vadd.f32 %v4970, %v4984
        %v5008 = vadd.f32 %v4971, %v4984
        %v5009 = vadd.f32 %v4972, %v4984
        %v5010 = vadd.f32 %v4973, %v4984
        %v5011 = vadd.f32 %v4974, %v4984
        %v5012 = vadd.f32 %v4975, %v4984
        %v5013 = vadd.f32 %v4976, %v4984
        %v5014 = vadd.f32 %v4977, %v4984
        %v5015 = vadd.f32 %v4978, %v4984
        %v5016 = vadd.f32 %v4979, %v4984
        %v5017 = vmax.f32 %v4985, 0.0
        %v5018 = vmax.f32 %v4986, 0.0
        %v5019 = vmax.f32 %v4987, 0.0
        %v5020 = vmax.f32 %v4988, 0.0
        %v5021 = vmax.f32 %v4989, 0.0
        %v5022 = vmax.f32 %v4990, 0.0
        %v5023 = vmax.f32 %v4991, 0.0
        %v5024 = vmax.f32 %v4992, 0.0
        %v5025 = vmax.f32 %v4993, 0.0
        %v5026 = vmax.f32 %v4994, 0.0
        %v5027 = vmax.f32 %v4995, 0.0
        %v5028 = vmax.f32 %v4996, 0.0
        %v5029 = vmax.f32 %v4997, 0.0
        %v5030 = vmax.f32 %v4998, 0.0
        %v5031 = vmax.f32 %v4999, 0.0
        %v5032 = vmax.f32 %v5000, 0.0
        %v5033 = vmax.f32 %v5001, 0.0
        %v5034 = vmax.f32 %v5002, 0.0
        %v5035 = vmax.f32 %v5003, 0.0
        %v5036 = vmax.f32 %v5004, 0.0
        %v5037 = vmax.f32 %v5005, 0.0
        %v5038 = vmax.f32 %v5006, 0.0
        %v5039 = vmax.f32 %v5007, 0.0
        %v5040 = vmax.f32 %v5008, 0.0
        %v5041 = vmax.f32 %v5009, 0.0
        %v5042 = vmax.f32 %v5010, 0.0
        %v5043 = vmax.f32 %v5011, 0.0
        %v5044 = vmax.f32 %v5012, 0.0
        %v5045 = vmax.f32 %v5013, 0.0
        %v5046 = vmax.f32 %v5014, 0.0
        %v5047 = vmax.f32 %v5015, 0.0
        %v5048 = vmax.f32 %v5016, 0.0
        %v5049 = vpack.c.bf16 %v5018, %v5017
        %v5050 = vpack.c.bf16 %v5020, %v5019
        %v5051 = vpack.c.bf16 %v5022, %v5021
        %v5052 = vpack.c.bf16 %v5024, %v5023
        %v5053 = vpack.c.bf16 %v5026, %v5025
        %v5054 = vpack.c.bf16 %v5028, %v5027
        %v5055 = vpack.c.bf16 %v5030, %v5029
        %v5056 = vpack.c.bf16 %v5032, %v5031
        %v5057 = vpack.c.bf16 %v5034, %v5033
        %v5058 = vpack.c.bf16 %v5036, %v5035
        %v5059 = vpack.c.bf16 %v5038, %v5037
        %v5060 = vpack.c.bf16 %v5040, %v5039
        %v5061 = vpack.c.bf16 %v5042, %v5041
        %v5062 = vpack.c.bf16 %v5044, %v5043
        %v5063 = vpack.c.bf16 %v5046, %v5045
        %v5064 = vpack.c.bf16 %v5048, %v5047
        %v5081 = vunpack.c.l.b16 %v5049
        %v5082 = vunpack.c.h.b16 %v5049
        %v5083 = vunpack.c.l.b16 %v5050
        %v5084 = vunpack.c.h.b16 %v5050
        %v5085 = vunpack.c.l.b16 %v5051
        %v5086 = vunpack.c.h.b16 %v5051
        %v5087 = vunpack.c.l.b16 %v5052
        %v5088 = vunpack.c.h.b16 %v5052
        %v5089 = vunpack.c.l.b16 %v5053
        %v5090 = vunpack.c.h.b16 %v5053
        %v5091 = vunpack.c.l.b16 %v5054
        %v5092 = vunpack.c.h.b16 %v5054
        %v5093 = vunpack.c.l.b16 %v5055
        %v5094 = vunpack.c.h.b16 %v5055
        %v5095 = vunpack.c.l.b16 %v5056
        %v5096 = vunpack.c.h.b16 %v5056
        %v5097 = vunpack.c.l.b16 %v5057
        %v5098 = vunpack.c.h.b16 %v5057
        %v5099 = vunpack.c.l.b16 %v5058
        %v5100 = vunpack.c.h.b16 %v5058
        %v5101 = vunpack.c.l.b16 %v5059
        %v5102 = vunpack.c.h.b16 %v5059
        %v5103 = vunpack.c.l.b16 %v5060
        %v5104 = vunpack.c.h.b16 %v5060
        %v5105 = vunpack.c.l.b16 %v5061
        %v5106 = vunpack.c.h.b16 %v5061
        %v5107 = vunpack.c.l.b16 %v5062
        %v5108 = vunpack.c.h.b16 %v5062
        %v5109 = vunpack.c.l.b16 %v5063
        %v5110 = vunpack.c.h.b16 %v5063
        %v5111 = vunpack.c.l.b16 %v5064
        %v5112 = vunpack.c.h.b16 %v5064
        %v5113 = vpack.c.b16 %v5081, %v5081
        %v5114 = vpack.c.b16 %v5082, %v5082
        %v5115 = vpack.c.b16 %v5083, %v5083
        %v5116 = vpack.c.b16 %v5084, %v5084
        %v5117 = vpack.c.b16 %v5085, %v5085
        %v5118 = vpack.c.b16 %v5086, %v5086
        %v5119 = vpack.c.b16 %v5087, %v5087
        %v5120 = vpack.c.b16 %v5088, %v5088
        %v5121 = vpack.c.b16 %v5089, %v5089
        %v5122 = vpack.c.b16 %v5090, %v5090
        %v5123 = vpack.c.b16 %v5091, %v5091
        %v5124 = vpack.c.b16 %v5092, %v5092
        %v5125 = vpack.c.b16 %v5093, %v5093
        %v5126 = vpack.c.b16 %v5094, %v5094
        %v5127 = vpack.c.b16 %v5095, %v5095
        %v5128 = vpack.c.b16 %v5096, %v5096
        %v5129 = vpack.c.b16 %v5097, %v5097
        %v5130 = vpack.c.b16 %v5098, %v5098
        %v5131 = vpack.c.b16 %v5099, %v5099
        %v5132 = vpack.c.b16 %v5100, %v5100
        %v5133 = vpack.c.b16 %v5101, %v5101
        %v5134 = vpack.c.b16 %v5102, %v5102
        %v5135 = vpack.c.b16 %v5103, %v5103
        %v5136 = vpack.c.b16 %v5104, %v5104
        %v5137 = vpack.c.b16 %v5105, %v5105
        %v5138 = vpack.c.b16 %v5106, %v5106
        %v5139 = vpack.c.b16 %v5107, %v5107
        %v5140 = vpack.c.b16 %v5108, %v5108
        %v5141 = vpack.c.b16 %v5109, %v5109
        %v5142 = vpack.c.b16 %v5110, %v5110
        %v5143 = vpack.c.b16 %v5111, %v5111
        %v5144 = vpack.c.b16 %v5112, %v5112
        %5177 = vst [vmem:[%s48] sm:$0xf] %v5113
        %5178 = vst [vmem:[%s48 + $0x4] sm:$0xf] %v5114
        %5179 = vst [vmem:[%s48 + $0x8] sm:$0xf] %v5115
        %5180 = vst [vmem:[%s48 + $0xc] sm:$0xf] %v5116
        %5181 = vst [vmem:[%s48 + $0x10] sm:$0xf] %v5117
        %5182 = vst [vmem:[%s48 + $0x14] sm:$0xf] %v5118
        %5183 = vst [vmem:[%s48 + $0x18] sm:$0xf] %v5119
        %5184 = vst [vmem:[%s48 + $0x1c] sm:$0xf] %v5120
        %5185 = vst [vmem:[%s48 + $0x20] sm:$0xf] %v5121
        %5186 = vst [vmem:[%s48 + $0x24] sm:$0xf] %v5122
        %5187 = vst [vmem:[%s48 + $0x28] sm:$0xf] %v5123
        %5188 = vst [vmem:[%s48 + $0x2c] sm:$0xf] %v5124
        %5189 = vst [vmem:[%s48 + $0x30] sm:$0xf] %v5125
        %5190 = vst [vmem:[%s48 + $0x34] sm:$0xf] %v5126
        %5191 = vst [vmem:[%s48 + $0x38] sm:$0xf] %v5127
        %5192 = vst [vmem:[%s48 + $0x3c] sm:$0xf] %v5128
        %5193 = vst [vmem:[%s48 + $0x40] sm:$0xf] %v5129
        %5194 = vst [vmem:[%s48 + $0x44] sm:$0xf] %v5130
        %5195 = vst [vmem:[%s48 + $0x48] sm:$0xf] %v5131
        %5196 = vst [vmem:[%s48 + $0x4c] sm:$0xf] %v5132
        %5197 = vst [vmem:[%s48 + $0x50] sm:$0xf] %v5133
        %5198 = vst [vmem:[%s48 + $0x54] sm:$0xf] %v5134
        %5199 = vst [vmem:[%s48 + $0x58] sm:$0xf] %v5135
        %5200 = vst [vmem:[%s48 + $0x5c] sm:$0xf] %v5136
        %5201 = vst [vmem:[%s48 + $0x60] sm:$0xf] %v5137
        %5202 = vst [vmem:[%s48 + $0x64] sm:$0xf] %v5138
        %5203 = vst [vmem:[%s48 + $0x68] sm:$0xf] %v5139
        %5204 = vst [vmem:[%s48 + $0x6c] sm:$0xf] %v5140
        %5205 = vst [vmem:[%s48 + $0x70] sm:$0xf] %v5141
        %5206 = vst [vmem:[%s48 + $0x74] sm:$0xf] %v5142
        %5207 = vst [vmem:[%s48 + $0x78] sm:$0xf] %v5143
        %5208 = vst [vmem:[%s48 + $0x7c] sm:$0xf] %v5144
        %s5209 = sand.u32 %s21, 1
        %s5210 = scalar_lea.sflag [#allocation8], %s5209
        %s5211 = sand.u32 %s21, 1
        %s5212 = smul.addr %s5211, 128
        %s5213 = scalar_lea.vmem [#allocation7], %s5212
        // Predicated region
        $region63: #{tpu_custom_call.1} parent=11 // pred_check
          %p5214 = pneg %p27
        $region64: #{tpu_custom_call.1} parent=11 // pred_check_branch
          %5216 = sbr.rel (%p5214) target = $region66
        $region65: #{tpu_custom_call.1} parent=11 // pred_region
          %s5217 = smul.u32 32, %s12
          %s5219 = ssub.s32 2048, 2048
          %5220 = vsyncadd %s5210, %s5219
          %s5221 = smul.addr %s5217, 64
          %s5222 = scalar_lea.hbm %s3, %s5221
          %s5223 = sshll.u32 %s5213, 4
          %s5224 = int_to_ptr.vmem [resolvable:$true] %s5223
          %5229 = dma.vmem_to_hbm [thread:$0]  %s5224, 2048, %s5222, %s5210, 64, 64, 4
        $region66: #{tpu_custom_call.1} parent=11 // pred_fallthru
          _
      $region12: #{tpu_custom_call.1} parent=5 // pred_fallthru
        _
      %p5230 = scmp.le.s32.totalorder 1, %s12
      // Predicated region
      $region67: #{tpu_custom_call.1} parent=5 // pred_check
        %p5231 = pneg %p5230
      $region68: #{tpu_custom_call.1} parent=5 // pred_check_branch
        %5233 = sbr.rel (%p5231) target = $region70
      $region69: #{tpu_custom_call.1} parent=5 // pred_region
        %s5234 = ssub.s32 %s12, 1
        // Predicated region
        $region71: #{tpu_custom_call.1} parent=69 // pred_check
          %p5235 = pneg %p33
        $region72: #{tpu_custom_call.1} parent=69 // pred_check_branch
          %5237 = sbr.rel (%p5235) target = $region74
        $region73: #{tpu_custom_call.1} parent=69 // pred_region
          %s5238 = sand.u32 %s24, 1
          %s5239 = scalar_lea.sflag [#allocation8], %s5238
          %s5240 = sand.u32 %s24, 1
          %s5241 = smul.addr %s5240, 128
          %s5242 = scalar_lea.vmem [#allocation7], %s5241
          %5243 = dma.done %s5239, 2048
        $region74: #{tpu_custom_call.1} parent=69 // pred_fallthru
          _
      $region70: #{tpu_custom_call.1} parent=5 // pred_fallthru
        _
    $region6: #{tpu_custom_call.1} parent=1 // loop_footer
      %s16 = sadd.s32 1, %s12
    $region7: #{tpu_custom_call.1} parent=1 // loop_footer_branch
      %11 = sbr.rel target = $region3
    $region8: #{tpu_custom_call.1} parent=1 // loop_exit
      _
    %5244 = vsyncpa [#allocation8], 1
    %s5245 = scalar_lea.sflag [#allocation8], 1
    %5246 = vsyncpa %s5245, 1
  %5247 = vsyncmov [#allocation6]
  %s5248 = vpop.sfrf %5247
  %p5249 = scmp.eq.s32.totalorder %s5248, 0
  %p5250 = pneg %p5249
  %5252 = shalt.err (%p5250)
  %s5253 = scalar_lea.sflag [#allocation6], 1
  %5254 = vsyncmov %s5253
  %s5255 = vpop.sfrf %5254
  %p5256 = scmp.eq.s32.totalorder %s5255, 0
  %p5257 = pneg %p5256
  %5259 = shalt.err (%p5257)
  %s5260 = scalar_lea.sflag [#allocation6], 2
  %5261 = vsyncmov %s5260
  %s5262 = vpop.sfrf %5261
  %p5263 = scmp.eq.s32.totalorder %s5262, 0
  %p5264 = pneg %p5263
  %5266 = shalt.err (%p5264)
  %s5267 = scalar_lea.sflag [#allocation6], 3
  %5268 = vsyncmov %s5267
  %s5269 = vpop.sfrf %5268
  %p5270 = scmp.eq.s32.totalorder %s5269, 0
  %p5271 = pneg %p5270
  %5273 = shalt.err (%p5271)

</llo_original>
